<compile_context>
chip_gen: v6e
topology: v6e:2x2x1
jax: 0.10.0
libtpu: 0.0.40
codegen_flags: <defaults>
</compile_context>

<pallas_src>
import functools

import numpy as np
import jax
import jax.numpy as jnp
from jax import lax
from jax.experimental import pallas as pl
from jax.experimental.pallas import tpu as pltpu

B_TILE = 8     # images per grid step
IN_ROWS = 40   # 32 image rows + 8 zero rows (kh-tap overrun for garbage output rows)


# ---------------------------------------------------------------------------
# The fused kernel: conv1(5x5)+ReLU+pool -> conv2(5x5)+ReLU+pool -> fc1 -> fc2 -> fc3
# One grid step processes B images.
# ---------------------------------------------------------------------------
def _lenet_kernel(x_ref, w1_ref, b1_ref, w2_ref, b2_ref,
                  wf1_ref, bf1_ref, wf2_ref, bf2_ref, wf3_ref, bf3_ref,
                  o_ref,
                  acc1_ref, y1p_ref, acc2_ref, feat_ref, *, B):
    bf16 = jnp.bfloat16
    f32 = jnp.float32

    # ----- conv1: input (B, 40, 128) with row = h, lane = w*4 + c ------------
    # Each kh tap is one K=128 matmul; output lane = parity*128 + pw*8 + oc with
    # ow = 2*pw + parity, so the 2x2 pool over ow is a max of the two lane halves
    # and the pooled result is already in conv2's input layout (lane = w*8 + c).
    acc = None
    for kh in range(5):
        lhs = x_ref[:, kh:kh + 32, :].reshape(B * 32, 128).astype(bf16)
        part = jnp.dot(lhs, w1_ref[kh], preferred_element_type=f32)
        acc = part if acc is None else acc + part
    acc1_ref[...] = jnp.maximum(acc[:, :128], acc[:, 128:])          # pool over ow
    y1 = jnp.maximum(acc1_ref[pl.ds(0, B * 16, 2), :],               # pool over oh
                     acc1_ref[pl.ds(1, B * 16, 2), :])
    y1 = jnp.maximum(y1 + b1_ref[...], 0.0)                          # bias + ReLU
    y1p_ref[:, 0:16, :] = y1.reshape(B, 16, 128)                     # rows 0..13 valid
    y1p_ref[:, 16:24, :] = jnp.zeros((B, 8, 128), f32)               # tap-overrun pad

    # ----- conv2: input rows = pooled h, lane = w*8 + c (6 valid of 8) -------
    acc = None
    for kh in range(5):
        lhs = y1p_ref[:, kh:kh + 16, :].reshape(B * 16, 128).astype(bf16)
        part = jnp.dot(lhs, w2_ref[kh], preferred_element_type=f32)
        acc = part if acc is None else acc + part
    acc2_ref[...] = jnp.maximum(acc[:, :128], acc[:, 128:])          # pool over ow
    y2 = jnp.maximum(acc2_ref[pl.ds(0, B * 8, 2), :],                # pool over oh
                     acc2_ref[pl.ds(1, B * 8, 2), :])
    y2 = jnp.maximum(y2 + b2_ref[...], 0.0)
    feat_ref[...] = y2                                               # (B*8,128); rows 0..4/img valid

    # ----- fc1 -> ReLU -> fc2 -> ReLU -> fc3 (effective fc1 K = 5*128 = 640) -
    h = None
    for r in range(5):
        lhs = feat_ref[pl.ds(r, B, 8), :].astype(bf16)               # row r of every image: (B,128)
        part = jnp.dot(lhs, wf1_ref[r], preferred_element_type=f32)
        h = part if h is None else h + part
    h = jnp.maximum(h + bf1_ref[...], 0.0)
    h = jnp.dot(h.astype(bf16), wf2_ref[...], preferred_element_type=f32)
    h = jnp.maximum(h + bf2_ref[...], 0.0)
    h = jnp.dot(h.astype(bf16), wf3_ref[...], preferred_element_type=f32)
    o_ref[...] = h + bf3_ref[...]                                    # (B,128), lanes 0..9 valid


def _lenet_call(x, pp):
    n_pad = x.shape[0]
    B = B_TILE
    kern = functools.partial(_lenet_kernel, B=B)
    const3 = lambda i: (0, 0, 0)
    const2 = lambda i: (0, 0)
    return pl.pallas_call(
        kern,
        out_shape=jax.ShapeDtypeStruct((n_pad, 128), jnp.float32),
        grid=(n_pad // B,),
        in_specs=[
            pl.BlockSpec((B, IN_ROWS, 128), lambda i: (i, 0, 0)),   # images
            pl.BlockSpec((5, 128, 256), const3),                    # conv1 taps (bf16, resident)
            pl.BlockSpec((1, 128), const2),                         # conv1 bias (pooled lane layout)
            pl.BlockSpec((5, 128, 256), const3),                    # conv2 taps
            pl.BlockSpec((1, 128), const2),                         # conv2 bias
            pl.BlockSpec((5, 128, 128), const3),                    # fc1 (split over pooled rows)
            pl.BlockSpec((1, 128), const2),                         # fc1 bias
            pl.BlockSpec((128, 128), const2),                       # fc2
            pl.BlockSpec((1, 128), const2),                         # fc2 bias
            pl.BlockSpec((128, 128), const2),                       # fc3
            pl.BlockSpec((1, 128), const2),                         # fc3 bias
        ],
        out_specs=pl.BlockSpec((B, 128), lambda i: (i, 0)),
        scratch_shapes=[
            pltpu.VMEM((B * 32, 128), jnp.float32),   # conv1 acc after ow-pool
            pltpu.VMEM((B, 24, 128), jnp.float32),    # conv1 pooled out == conv2 input
            pltpu.VMEM((B * 16, 128), jnp.float32),   # conv2 acc after ow-pool
            pltpu.VMEM((B * 8, 128), jnp.float32),    # conv2 pooled out == fc input
        ],
        compiler_params=pltpu.CompilerParams(
            dimension_semantics=("parallel",),        # megacore-shard batch tiles on v7x
            vmem_limit_bytes=32 * 1024 * 1024,        # actual usage ~4 MB; safe on v5e/v6e/v7x
        ),
    )(x, pp["w1"], pp["b1"], pp["w2"], pp["b2"],
      pp["wf1"], pp["bf1"], pp["wf2"], pp["bf2"], pp["wf3"], pp["bf3"])


# ------------------------------- parameters --------------------------------
def init_params():
    k = jax.random.PRNGKey(0)
    ks = jax.random.split(k, 10)
    s = 0.05
    return {
        "conv1_w": jax.random.normal(ks[0], (6, 3, 5, 5), jnp.float32) * s,
        "conv1_b": jax.random.normal(ks[1], (6,), jnp.float32) * s,
        "conv2_w": jax.random.normal(ks[2], (16, 6, 5, 5), jnp.float32) * s,
        "conv2_b": jax.random.normal(ks[3], (16,), jnp.float32) * s,
        "fc1_w": jax.random.normal(ks[4], (120, 16 * 5 * 5), jnp.float32) * s,
        "fc1_b": jax.random.normal(ks[5], (120,), jnp.float32) * s,
        "fc2_w": jax.random.normal(ks[6], (84, 120), jnp.float32) * s,
        "fc2_b": jax.random.normal(ks[7], (84,), jnp.float32) * s,
        "fc3_w": jax.random.normal(ks[8], (10, 84), jnp.float32) * s,
        "fc3_b": jax.random.normal(ks[9], (10,), jnp.float32) * s,
    }


def prepare_params(p):
    """One-time layout prep: pack conv taps / fc weights into the kernel layouts,
    fold torch's NCHW flatten and the pool lane layouts in, pre-cast to bf16."""
    c1 = np.asarray(p["conv1_w"], np.float32)                 # (oc, c, kh, kw)
    c2 = np.asarray(p["conv2_w"], np.float32)
    f1 = np.asarray(p["fc1_w"], np.float32).reshape(120, 16, 5, 5)   # (n, c, h, w): torch flatten order
    f2 = np.asarray(p["fc2_w"], np.float32)
    f3 = np.asarray(p["fc3_w"], np.float32)

    # conv1 taps: w1[kh, w*4 + c, parity*128 + pw*8 + oc] = c1[oc, c, kh, w - ow],
    # with ow = 2*pw + parity and 0 <= w - ow <= 4. Unused entries stay 0.
    w1 = np.zeros((5, 128, 256), np.float32)
    ow = np.arange(28); pw = ow // 2; par = ow % 2
    for kh in range(5):
        for kw in range(5):
            for c in range(3):
                for oc in range(6):
                    w1[kh, (ow + kw) * 4 + c, par * 128 + pw * 8 + oc] = c1[oc, c, kh, kw]

    # conv2 taps: w2[kh, w*8 + c, parity*128 + pw*16 + oc] = c2[oc, c, kh, w - ow]
    w2 = np.zeros((5, 128, 256), np.float32)
    ow2 = np.arange(10); pw2 = ow2 // 2; par2 = ow2 % 2
    for kh in range(5):
        for kw in range(5):
            for c in range(6):
                for oc in range(16):
                    w2[kh, (ow2 + kw) * 8 + c, par2 * 128 + pw2 * 16 + oc] = c2[oc, c, kh, kw]

    # fc1 split over the pooled-row index r: wf1[r, pw*16 + oc, n] = fc1_w[n, oc, r, pw]
    wf1 = np.zeros((5, 128, 128), np.float32)
    for r in range(5):
        for pw_ in range(5):
            for oc in range(16):
                wf1[r, pw_ * 16 + oc, :120] = f1[:, oc, r, pw_]

    wf2 = np.zeros((128, 128), np.float32); wf2[:120, :84] = f2.T
    wf3 = np.zeros((128, 128), np.float32); wf3[:84, :10] = f3.T

    # biases, laid out to match the pooled activation lanes
    b1 = np.zeros((1, 128), np.float32)
    for pw_ in range(14):
        b1[0, pw_ * 8: pw_ * 8 + 6] = np.asarray(p["conv1_b"], np.float32)
    b2 = np.zeros((1, 128), np.float32)
    for pw_ in range(5):
        b2[0, pw_ * 16: pw_ * 16 + 16] = np.asarray(p["conv2_b"], np.float32)
    bf1 = np.zeros((1, 128), np.float32); bf1[0, :120] = np.asarray(p["fc1_b"], np.float32)
    bf2 = np.zeros((1, 128), np.float32); bf2[0, :84] = np.asarray(p["fc2_b"], np.float32)
    bf3 = np.zeros((1, 128), np.float32); bf3[0, :10] = np.asarray(p["fc3_b"], np.float32)

    bf = jnp.bfloat16
    return {
        "w1": jnp.asarray(w1, bf), "b1": jnp.asarray(b1),
        "w2": jnp.asarray(w2, bf), "b2": jnp.asarray(b2),
        "wf1": jnp.asarray(wf1, bf), "bf1": jnp.asarray(bf1),
        "wf2": jnp.asarray(wf2, bf), "bf2": jnp.asarray(bf2),
        "wf3": jnp.asarray(wf3, bf), "bf3": jnp.asarray(bf3),
    }


# --------------------------------- forward ---------------------------------
@jax.jit
def _forward(pp, image):
    n = image.shape[0]
    x = image.astype(jnp.float32)
    x = jnp.transpose(x, (0, 2, 3, 1))                    # NCHW -> NHWC (one-time glue)
    x = jnp.pad(x, ((0, 0), (0, 0), (0, 0), (0, 1)))      # channels 3 -> 4
    x = x.reshape(n, 32, 32 * 4)                          # row = h, lane = w*4 + c
    x = jnp.pad(x, ((0, 0), (0, IN_ROWS - 32), (0, 0)))   # zero rows for tap overrun
    n_pad = ((n + B_TILE - 1) // B_TILE) * B_TILE
    if n_pad != n:                                        # pad batch to the 8-image tile
        x = jnp.pad(x, ((0, n_pad - n), (0, 0), (0, 0)))
    logits = _lenet_call(x, pp)                           # (n_pad, 128)
    return logits[:n, :10]                                # drop padded lanes / images


def net_forward(prepared_params, sample):
    out = dict(sample)
    out["output"] = _forward(prepared_params, sample["image"])
    return out


# -------------------- pure-JAX f32 reference (for checking) ----------------
def _reference_forward(p, image):
    hp = lax.Precision.HIGHEST
    x = image.astype(jnp.float32)
    y = lax.conv_general_dilated(x, p["conv1_w"], (1, 1), "VALID",
                                 dimension_numbers=("NCHW", "OIHW", "NCHW"),
                                 precision=hp) + p["conv1_b"][None, :, None, None]
    y = jnp.maximum(y, 0.0)
    y = lax.reduce_window(y, -jnp.inf, lax.max, (1, 1, 2, 2), (1, 1, 2, 2), "VALID")
    y = lax.conv_general_dilated(y, p["conv2_w"], (1, 1), "VALID",
                                 dimension_numbers=("NCHW", "OIHW", "NCHW"),
                                 precision=hp) + p["conv2_b"][None, :, None, None]
    y = jnp.maximum(y, 0.0)
    y = lax.reduce_window(y, -jnp.inf, lax.max, (1, 1, 2, 2), (1, 1, 2, 2), "VALID")
    y = y.reshape(y.shape[0], 400)
    y = jnp.maximum(jnp.dot(y, p["fc1_w"].T, precision=hp) + p["fc1_b"], 0.0)
    y = jnp.maximum(jnp.dot(y, p["fc2_w"].T, precision=hp) + p["fc2_b"], 0.0)
    return jnp.dot(y, p["fc3_w"].T, precision=hp) + p["fc3_b"]


if __name__ == "__main__":
    params = init_params()
    prepared = prepare_params(params)
    # forward implies CIFAR10-sized images (needed for the 16*5*5 flatten)
    image = jax.random.normal(jax.random.PRNGKey(0), (2, 3, 32, 32), dtype=jnp.float32)
    sample = {"image": image}
    result = net_forward(prepared, sample)
    logits = jax.block_until_ready(result["output"])
    assert logits.shape == (2, 10) and logits.dtype == jnp.float32
    assert bool(jnp.all(jnp.isfinite(logits)))
    # compare against an f32 XLA reference (kernel uses bf16 MXU -> loose tolerance)
    ref = _reference_forward(params, image)
    err = float(jnp.max(jnp.abs(logits - ref)))
    assert err < 5e-2, f"kernel deviates from f32 reference: max abs err {err}"
    print("KERNEL_OK")
</pallas_src>

<mosaic_0001>
module attributes {stable_mosaic.version = 11 : i64} {
  func.func @_lenet_kernel(%arg0: i32, %arg1: memref<8x40x128xf32, #tpu.memory_space<vmem>>, %arg2: memref<5x128x256xbf16, #tpu.memory_space<vmem>>, %arg3: memref<1x128xf32, #tpu.memory_space<vmem>>, %arg4: memref<5x128x256xbf16, #tpu.memory_space<vmem>>, %arg5: memref<1x128xf32, #tpu.memory_space<vmem>>, %arg6: memref<5x128x128xbf16, #tpu.memory_space<vmem>>, %arg7: memref<1x128xf32, #tpu.memory_space<vmem>>, %arg8: memref<128x128xbf16, #tpu.memory_space<vmem>>, %arg9: memref<1x128xf32, #tpu.memory_space<vmem>>, %arg10: memref<128x128xbf16, #tpu.memory_space<vmem>>, %arg11: memref<1x128xf32, #tpu.memory_space<vmem>>, %arg12: memref<8x128xf32, #tpu.memory_space<vmem>>, %arg13: memref<256x128xf32, #tpu.memory_space<vmem>>, %arg14: memref<8x24x128xf32, #tpu.memory_space<vmem>>, %arg15: memref<128x128xf32, #tpu.memory_space<vmem>>, %arg16: memref<64x128xf32, #tpu.memory_space<vmem>>) attributes {dimension_semantics = [#tpu.dimension_semantics<parallel>], iteration_bounds = array<i64: 1>, scalar_prefetch = 0 : i64, scratch_operands = 4 : i64, tpu.core_type = #tpu.core_type<tc>, window_params = [{transform_indices = @transform_0, window_bounds = array<i64: 8, 40, 128>}, {pipeline_mode = #tpu.pipeline_mode<synchronous>, transform_indices = @transform_1, window_bounds = array<i64: 5, 128, 256>}, {pipeline_mode = #tpu.pipeline_mode<synchronous>, transform_indices = @transform_2, window_bounds = array<i64: 1, 128>}, {pipeline_mode = #tpu.pipeline_mode<synchronous>, transform_indices = @transform_3, window_bounds = array<i64: 5, 128, 256>}, {pipeline_mode = #tpu.pipeline_mode<synchronous>, transform_indices = @transform_4, window_bounds = array<i64: 1, 128>}, {pipeline_mode = #tpu.pipeline_mode<synchronous>, transform_indices = @transform_5, window_bounds = array<i64: 5, 128, 128>}, {pipeline_mode = #tpu.pipeline_mode<synchronous>, transform_indices = @transform_6, window_bounds = array<i64: 1, 128>}, {pipeline_mode = #tpu.pipeline_mode<synchronous>, transform_indices = @transform_7, window_bounds = array<i64: 128, 128>}, {pipeline_mode = #tpu.pipeline_mode<synchronous>, transform_indices = @transform_8, window_bounds = array<i64: 1, 128>}, {pipeline_mode = #tpu.pipeline_mode<synchronous>, transform_indices = @transform_9, window_bounds = array<i64: 128, 128>}, {pipeline_mode = #tpu.pipeline_mode<synchronous>, transform_indices = @transform_10, window_bounds = array<i64: 1, 128>}, {transform_indices = @transform_11, window_bounds = array<i64: 8, 128>}]} {
    %c0 = arith.constant 0 : index
    %c0_0 = arith.constant 0 : index
    %c0_1 = arith.constant 0 : index
    %0 = vector.load %arg1[%c0, %c0_0, %c0_1] : memref<8x40x128xf32, #tpu.memory_space<vmem>>, vector<8x32x128xf32>
    %1 = vector.shape_cast %0 : vector<8x32x128xf32> to vector<256x128xf32>
    %2 = arith.truncf %1 : vector<256x128xf32> to vector<256x128xbf16>
    %c0_2 = arith.constant 0 : index
    %c0_3 = arith.constant 0 : index
    %c0_4 = arith.constant 0 : index
    %3 = vector.load %arg2[%c0_2, %c0_3, %c0_4] : memref<5x128x256xbf16, #tpu.memory_space<vmem>>, vector<1x128x256xbf16>
    %4 = vector.shape_cast %3 : vector<1x128x256xbf16> to vector<128x256xbf16>
    %cst = arith.constant dense<0.000000e+00> : vector<256x256xf32>
    %5 = tpu.matmul %2, %4, %cst {dimension_numbers = #tpu.dot_dimension_numbers<[1], [0], [0], [1], [0, 0, 1, 1], [], []>} : vector<256x128xbf16>, vector<128x256xbf16>, vector<256x256xf32> -> vector<256x256xf32>
    %c0_5 = arith.constant 0 : index
    %c1 = arith.constant 1 : index
    %c0_6 = arith.constant 0 : index
    %6 = vector.load %arg1[%c0_5, %c1, %c0_6] : memref<8x40x128xf32, #tpu.memory_space<vmem>>, vector<8x32x128xf32>
    %7 = vector.shape_cast %6 : vector<8x32x128xf32> to vector<256x128xf32>
    %8 = arith.truncf %7 : vector<256x128xf32> to vector<256x128xbf16>
    %c1_7 = arith.constant 1 : index
    %c0_8 = arith.constant 0 : index
    %c0_9 = arith.constant 0 : index
    %9 = vector.load %arg2[%c1_7, %c0_8, %c0_9] : memref<5x128x256xbf16, #tpu.memory_space<vmem>>, vector<1x128x256xbf16>
    %10 = vector.shape_cast %9 : vector<1x128x256xbf16> to vector<128x256xbf16>
    %cst_10 = arith.constant dense<0.000000e+00> : vector<256x256xf32>
    %11 = tpu.matmul %8, %10, %cst_10 {dimension_numbers = #tpu.dot_dimension_numbers<[1], [0], [0], [1], [0, 0, 1, 1], [], []>} : vector<256x128xbf16>, vector<128x256xbf16>, vector<256x256xf32> -> vector<256x256xf32>
    %12 = arith.addf %5, %11 : vector<256x256xf32>
    %c0_11 = arith.constant 0 : index
    %c2 = arith.constant 2 : index
    %c0_12 = arith.constant 0 : index
    %13 = vector.load %arg1[%c0_11, %c2, %c0_12] : memref<8x40x128xf32, #tpu.memory_space<vmem>>, vector<8x32x128xf32>
    %14 = vector.shape_cast %13 : vector<8x32x128xf32> to vector<256x128xf32>
    %15 = arith.truncf %14 : vector<256x128xf32> to vector<256x128xbf16>
    %c2_13 = arith.constant 2 : index
    %c0_14 = arith.constant 0 : index
    %c0_15 = arith.constant 0 : index
    %16 = vector.load %arg2[%c2_13, %c0_14, %c0_15] : memref<5x128x256xbf16, #tpu.memory_space<vmem>>, vector<1x128x256xbf16>
    %17 = vector.shape_cast %16 : vector<1x128x256xbf16> to vector<128x256xbf16>
    %cst_16 = arith.constant dense<0.000000e+00> : vector<256x256xf32>
    %18 = tpu.matmul %15, %17, %cst_16 {dimension_numbers = #tpu.dot_dimension_numbers<[1], [0], [0], [1], [0, 0, 1, 1], [], []>} : vector<256x128xbf16>, vector<128x256xbf16>, vector<256x256xf32> -> vector<256x256xf32>
    %19 = arith.addf %12, %18 : vector<256x256xf32>
    %c0_17 = arith.constant 0 : index
    %c3 = arith.constant 3 : index
    %c0_18 = arith.constant 0 : index
    %20 = vector.load %arg1[%c0_17, %c3, %c0_18] : memref<8x40x128xf32, #tpu.memory_space<vmem>>, vector<8x32x128xf32>
    %21 = vector.shape_cast %20 : vector<8x32x128xf32> to vector<256x128xf32>
    %22 = arith.truncf %21 : vector<256x128xf32> to vector<256x128xbf16>
    %c3_19 = arith.constant 3 : index
    %c0_20 = arith.constant 0 : index
    %c0_21 = arith.constant 0 : index
    %23 = vector.load %arg2[%c3_19, %c0_20, %c0_21] : memref<5x128x256xbf16, #tpu.memory_space<vmem>>, vector<1x128x256xbf16>
    %24 = vector.shape_cast %23 : vector<1x128x256xbf16> to vector<128x256xbf16>
    %cst_22 = arith.constant dense<0.000000e+00> : vector<256x256xf32>
    %25 = tpu.matmul %22, %24, %cst_22 {dimension_numbers = #tpu.dot_dimension_numbers<[1], [0], [0], [1], [0, 0, 1, 1], [], []>} : vector<256x128xbf16>, vector<128x256xbf16>, vector<256x256xf32> -> vector<256x256xf32>
    %26 = arith.addf %19, %25 : vector<256x256xf32>
    %c0_23 = arith.constant 0 : index
    %c4 = arith.constant 4 : index
    %c0_24 = arith.constant 0 : index
    %27 = vector.load %arg1[%c0_23, %c4, %c0_24] : memref<8x40x128xf32, #tpu.memory_space<vmem>>, vector<8x32x128xf32>
    %28 = vector.shape_cast %27 : vector<8x32x128xf32> to vector<256x128xf32>
    %29 = arith.truncf %28 : vector<256x128xf32> to vector<256x128xbf16>
    %c4_25 = arith.constant 4 : index
    %c0_26 = arith.constant 0 : index
    %c0_27 = arith.constant 0 : index
    %30 = vector.load %arg2[%c4_25, %c0_26, %c0_27] : memref<5x128x256xbf16, #tpu.memory_space<vmem>>, vector<1x128x256xbf16>
    %31 = vector.shape_cast %30 : vector<1x128x256xbf16> to vector<128x256xbf16>
    %cst_28 = arith.constant dense<0.000000e+00> : vector<256x256xf32>
    %32 = tpu.matmul %29, %31, %cst_28 {dimension_numbers = #tpu.dot_dimension_numbers<[1], [0], [0], [1], [0, 0, 1, 1], [], []>} : vector<256x128xbf16>, vector<128x256xbf16>, vector<256x256xf32> -> vector<256x256xf32>
    %33 = arith.addf %26, %32 : vector<256x256xf32>
    %34 = vector.extract_strided_slice %33 {offsets = [0, 0], sizes = [256, 128], strides = [1, 1]} : vector<256x256xf32> to vector<256x128xf32>
    %35 = vector.extract_strided_slice %33 {offsets = [0, 128], sizes = [256, 128], strides = [1, 1]} : vector<256x256xf32> to vector<256x128xf32>
    %36 = arith.maximumf %34, %35 : vector<256x128xf32>
    %c0_29 = arith.constant 0 : index
    %c0_30 = arith.constant 0 : index
    %37 = vector.load %arg13[%c0_29, %c0_30] : memref<256x128xf32, #tpu.memory_space<vmem>>, vector<256x128xf32>
    tpu.vector_store %arg13[%c0_29, %c0_30], %36 {strides = array<i32>} : memref<256x128xf32, #tpu.memory_space<vmem>>, vector<256x128xf32>,
    %c0_31 = arith.constant 0 : index
    %c0_32 = arith.constant 0 : index
    %38 = tpu.strided_load %arg13[%c0_31, %c0_32] {strides = array<i32: 2, 1>} : memref<256x128xf32, #tpu.memory_space<vmem>>, vector<128x128xf32>
    %c1_33 = arith.constant 1 : index
    %c0_34 = arith.constant 0 : index
    %39 = tpu.strided_load %arg13[%c1_33, %c0_34] {strides = array<i32: 2, 1>} : memref<256x128xf32, #tpu.memory_space<vmem>>, vector<128x128xf32>
    %40 = arith.maximumf %38, %39 : vector<128x128xf32>
    %c0_35 = arith.constant 0 : index
    %c0_36 = arith.constant 0 : index
    %41 = vector.load %arg3[%c0_35, %c0_36] : memref<1x128xf32, #tpu.memory_space<vmem>>, vector<1x128xf32>
    %42 = vector.broadcast %41 : vector<1x128xf32> to vector<128x128xf32>
    %43 = arith.addf %40, %42 : vector<128x128xf32>
    %cst_37 = arith.constant 0.000000e+00 : f32
    %44 = vector.broadcast %cst_37 : f32 to vector<128x128xf32>
    %45 = arith.maximumf %43, %44 : vector<128x128xf32>
    %46 = vector.shape_cast %45 : vector<128x128xf32> to vector<8x16x128xf32>
    %c0_38 = arith.constant 0 : index
    %c0_39 = arith.constant 0 : index
    %c0_40 = arith.constant 0 : index
    %47 = vector.load %arg14[%c0_38, %c0_39, %c0_40] : memref<8x24x128xf32, #tpu.memory_space<vmem>>, vector<8x16x128xf32>
    tpu.vector_store %arg14[%c0_38, %c0_39, %c0_40], %46 {strides = array<i32>} : memref<8x24x128xf32, #tpu.memory_space<vmem>>, vector<8x16x128xf32>,
    %cst_41 = arith.constant 0.000000e+00 : f32
    %48 = vector.broadcast %cst_41 : f32 to vector<8x8x128xf32>
    %c0_42 = arith.constant 0 : index
    %c16 = arith.constant 16 : index
    %c0_43 = arith.constant 0 : index
    %49 = vector.load %arg14[%c0_42, %c16, %c0_43] : memref<8x24x128xf32, #tpu.memory_space<vmem>>, vector<8x8x128xf32>
    tpu.vector_store %arg14[%c0_42, %c16, %c0_43], %48 {strides = array<i32>} : memref<8x24x128xf32, #tpu.memory_space<vmem>>, vector<8x8x128xf32>,
    %c0_44 = arith.constant 0 : index
    %c0_45 = arith.constant 0 : index
    %c0_46 = arith.constant 0 : index
    %50 = vector.load %arg14[%c0_44, %c0_45, %c0_46] : memref<8x24x128xf32, #tpu.memory_space<vmem>>, vector<8x16x128xf32>
    %51 = vector.shape_cast %50 : vector<8x16x128xf32> to vector<128x128xf32>
    %52 = arith.truncf %51 : vector<128x128xf32> to vector<128x128xbf16>
    %c0_47 = arith.constant 0 : index
    %c0_48 = arith.constant 0 : index
    %c0_49 = arith.constant 0 : index
    %53 = vector.load %arg4[%c0_47, %c0_48, %c0_49] : memref<5x128x256xbf16, #tpu.memory_space<vmem>>, vector<1x128x256xbf16>
    %54 = vector.shape_cast %53 : vector<1x128x256xbf16> to vector<128x256xbf16>
    %cst_50 = arith.constant dense<0.000000e+00> : vector<128x256xf32>
    %55 = tpu.matmul %52, %54, %cst_50 {dimension_numbers = #tpu.dot_dimension_numbers<[1], [0], [0], [1], [0, 0, 1, 1], [], []>} : vector<128x128xbf16>, vector<128x256xbf16>, vector<128x256xf32> -> vector<128x256xf32>
    %c0_51 = arith.constant 0 : index
    %c1_52 = arith.constant 1 : index
    %c0_53 = arith.constant 0 : index
    %56 = vector.load %arg14[%c0_51, %c1_52, %c0_53] : memref<8x24x128xf32, #tpu.memory_space<vmem>>, vector<8x16x128xf32>
    %57 = vector.shape_cast %56 : vector<8x16x128xf32> to vector<128x128xf32>
    %58 = arith.truncf %57 : vector<128x128xf32> to vector<128x128xbf16>
    %c1_54 = arith.constant 1 : index
    %c0_55 = arith.constant 0 : index
    %c0_56 = arith.constant 0 : index
    %59 = vector.load %arg4[%c1_54, %c0_55, %c0_56] : memref<5x128x256xbf16, #tpu.memory_space<vmem>>, vector<1x128x256xbf16>
    %60 = vector.shape_cast %59 : vector<1x128x256xbf16> to vector<128x256xbf16>
    %cst_57 = arith.constant dense<0.000000e+00> : vector<128x256xf32>
    %61 = tpu.matmul %58, %60, %cst_57 {dimension_numbers = #tpu.dot_dimension_numbers<[1], [0], [0], [1], [0, 0, 1, 1], [], []>} : vector<128x128xbf16>, vector<128x256xbf16>, vector<128x256xf32> -> vector<128x256xf32>
    %62 = arith.addf %55, %61 : vector<128x256xf32>
    %c0_58 = arith.constant 0 : index
    %c2_59 = arith.constant 2 : index
    %c0_60 = arith.constant 0 : index
    %63 = vector.load %arg14[%c0_58, %c2_59, %c0_60] : memref<8x24x128xf32, #tpu.memory_space<vmem>>, vector<8x16x128xf32>
    %64 = vector.shape_cast %63 : vector<8x16x128xf32> to vector<128x128xf32>
    %65 = arith.truncf %64 : vector<128x128xf32> to vector<128x128xbf16>
    %c2_61 = arith.constant 2 : index
    %c0_62 = arith.constant 0 : index
    %c0_63 = arith.constant 0 : index
    %66 = vector.load %arg4[%c2_61, %c0_62, %c0_63] : memref<5x128x256xbf16, #tpu.memory_space<vmem>>, vector<1x128x256xbf16>
    %67 = vector.shape_cast %66 : vector<1x128x256xbf16> to vector<128x256xbf16>
    %cst_64 = arith.constant dense<0.000000e+00> : vector<128x256xf32>
    %68 = tpu.matmul %65, %67, %cst_64 {dimension_numbers = #tpu.dot_dimension_numbers<[1], [0], [0], [1], [0, 0, 1, 1], [], []>} : vector<128x128xbf16>, vector<128x256xbf16>, vector<128x256xf32> -> vector<128x256xf32>
    %69 = arith.addf %62, %68 : vector<128x256xf32>
    %c0_65 = arith.constant 0 : index
    %c3_66 = arith.constant 3 : index
    %c0_67 = arith.constant 0 : index
    %70 = vector.load %arg14[%c0_65, %c3_66, %c0_67] : memref<8x24x128xf32, #tpu.memory_space<vmem>>, vector<8x16x128xf32>
    %71 = vector.shape_cast %70 : vector<8x16x128xf32> to vector<128x128xf32>
    %72 = arith.truncf %71 : vector<128x128xf32> to vector<128x128xbf16>
    %c3_68 = arith.constant 3 : index
    %c0_69 = arith.constant 0 : index
    %c0_70 = arith.constant 0 : index
    %73 = vector.load %arg4[%c3_68, %c0_69, %c0_70] : memref<5x128x256xbf16, #tpu.memory_space<vmem>>, vector<1x128x256xbf16>
    %74 = vector.shape_cast %73 : vector<1x128x256xbf16> to vector<128x256xbf16>
    %cst_71 = arith.constant dense<0.000000e+00> : vector<128x256xf32>
    %75 = tpu.matmul %72, %74, %cst_71 {dimension_numbers = #tpu.dot_dimension_numbers<[1], [0], [0], [1], [0, 0, 1, 1], [], []>} : vector<128x128xbf16>, vector<128x256xbf16>, vector<128x256xf32> -> vector<128x256xf32>
    %76 = arith.addf %69, %75 : vector<128x256xf32>
    %c0_72 = arith.constant 0 : index
    %c4_73 = arith.constant 4 : index
    %c0_74 = arith.constant 0 : index
    %77 = vector.load %arg14[%c0_72, %c4_73, %c0_74] : memref<8x24x128xf32, #tpu.memory_space<vmem>>, vector<8x16x128xf32>
    %78 = vector.shape_cast %77 : vector<8x16x128xf32> to vector<128x128xf32>
    %79 = arith.truncf %78 : vector<128x128xf32> to vector<128x128xbf16>
    %c4_75 = arith.constant 4 : index
    %c0_76 = arith.constant 0 : index
    %c0_77 = arith.constant 0 : index
    %80 = vector.load %arg4[%c4_75, %c0_76, %c0_77] : memref<5x128x256xbf16, #tpu.memory_space<vmem>>, vector<1x128x256xbf16>
    %81 = vector.shape_cast %80 : vector<1x128x256xbf16> to vector<128x256xbf16>
    %cst_78 = arith.constant dense<0.000000e+00> : vector<128x256xf32>
    %82 = tpu.matmul %79, %81, %cst_78 {dimension_numbers = #tpu.dot_dimension_numbers<[1], [0], [0], [1], [0, 0, 1, 1], [], []>} : vector<128x128xbf16>, vector<128x256xbf16>, vector<128x256xf32> -> vector<128x256xf32>
    %83 = arith.addf %76, %82 : vector<128x256xf32>
    %84 = vector.extract_strided_slice %83 {offsets = [0, 0], sizes = [128, 128], strides = [1, 1]} : vector<128x256xf32> to vector<128x128xf32>
    %85 = vector.extract_strided_slice %83 {offsets = [0, 128], sizes = [128, 128], strides = [1, 1]} : vector<128x256xf32> to vector<128x128xf32>
    %86 = arith.maximumf %84, %85 : vector<128x128xf32>
    %c0_79 = arith.constant 0 : index
    %c0_80 = arith.constant 0 : index
    %87 = vector.load %arg15[%c0_79, %c0_80] : memref<128x128xf32, #tpu.memory_space<vmem>>, vector<128x128xf32>
    tpu.vector_store %arg15[%c0_79, %c0_80], %86 {strides = array<i32>} : memref<128x128xf32, #tpu.memory_space<vmem>>, vector<128x128xf32>,
    %c0_81 = arith.constant 0 : index
    %c0_82 = arith.constant 0 : index
    %88 = tpu.strided_load %arg15[%c0_81, %c0_82] {strides = array<i32: 2, 1>} : memref<128x128xf32, #tpu.memory_space<vmem>>, vector<64x128xf32>
    %c1_83 = arith.constant 1 : index
    %c0_84 = arith.constant 0 : index
    %89 = tpu.strided_load %arg15[%c1_83, %c0_84] {strides = array<i32: 2, 1>} : memref<128x128xf32, #tpu.memory_space<vmem>>, vector<64x128xf32>
    %90 = arith.maximumf %88, %89 : vector<64x128xf32>
    %c0_85 = arith.constant 0 : index
    %c0_86 = arith.constant 0 : index
    %91 = vector.load %arg5[%c0_85, %c0_86] : memref<1x128xf32, #tpu.memory_space<vmem>>, vector<1x128xf32>
    %92 = vector.broadcast %91 : vector<1x128xf32> to vector<64x128xf32>
    %93 = arith.addf %90, %92 : vector<64x128xf32>
    %cst_87 = arith.constant 0.000000e+00 : f32
    %94 = vector.broadcast %cst_87 : f32 to vector<64x128xf32>
    %95 = arith.maximumf %93, %94 : vector<64x128xf32>
    %c0_88 = arith.constant 0 : index
    %c0_89 = arith.constant 0 : index
    %96 = vector.load %arg16[%c0_88, %c0_89] : memref<64x128xf32, #tpu.memory_space<vmem>>, vector<64x128xf32>
    tpu.vector_store %arg16[%c0_88, %c0_89], %95 {strides = array<i32>} : memref<64x128xf32, #tpu.memory_space<vmem>>, vector<64x128xf32>,
    %c0_90 = arith.constant 0 : index
    %c0_91 = arith.constant 0 : index
    %97 = tpu.strided_load %arg16[%c0_90, %c0_91] {strides = array<i32: 8, 1>} : memref<64x128xf32, #tpu.memory_space<vmem>>, vector<8x128xf32>
    %98 = arith.truncf %97 : vector<8x128xf32> to vector<8x128xbf16>
    %c0_92 = arith.constant 0 : index
    %c0_93 = arith.constant 0 : index
    %c0_94 = arith.constant 0 : index
    %99 = vector.load %arg6[%c0_92, %c0_93, %c0_94] : memref<5x128x128xbf16, #tpu.memory_space<vmem>>, vector<1x128x128xbf16>
    %100 = vector.shape_cast %99 : vector<1x128x128xbf16> to vector<128x128xbf16>
    %cst_95 = arith.constant dense<0.000000e+00> : vector<8x128xf32>
    %101 = tpu.matmul %98, %100, %cst_95 {dimension_numbers = #tpu.dot_dimension_numbers<[1], [0], [0], [1], [0, 0, 1, 1], [], []>} : vector<8x128xbf16>, vector<128x128xbf16>, vector<8x128xf32> -> vector<8x128xf32>
    %c1_96 = arith.constant 1 : index
    %c0_97 = arith.constant 0 : index
    %102 = tpu.strided_load %arg16[%c1_96, %c0_97] {strides = array<i32: 8, 1>} : memref<64x128xf32, #tpu.memory_space<vmem>>, vector<8x128xf32>
    %103 = arith.truncf %102 : vector<8x128xf32> to vector<8x128xbf16>
    %c1_98 = arith.constant 1 : index
    %c0_99 = arith.constant 0 : index
    %c0_100 = arith.constant 0 : index
    %104 = vector.load %arg6[%c1_98, %c0_99, %c0_100] : memref<5x128x128xbf16, #tpu.memory_space<vmem>>, vector<1x128x128xbf16>
    %105 = vector.shape_cast %104 : vector<1x128x128xbf16> to vector<128x128xbf16>
    %cst_101 = arith.constant dense<0.000000e+00> : vector<8x128xf32>
    %106 = tpu.matmul %103, %105, %cst_101 {dimension_numbers = #tpu.dot_dimension_numbers<[1], [0], [0], [1], [0, 0, 1, 1], [], []>} : vector<8x128xbf16>, vector<128x128xbf16>, vector<8x128xf32> -> vector<8x128xf32>
    %107 = arith.addf %101, %106 : vector<8x128xf32>
    %c2_102 = arith.constant 2 : index
    %c0_103 = arith.constant 0 : index
    %108 = tpu.strided_load %arg16[%c2_102, %c0_103] {strides = array<i32: 8, 1>} : memref<64x128xf32, #tpu.memory_space<vmem>>, vector<8x128xf32>
    %109 = arith.truncf %108 : vector<8x128xf32> to vector<8x128xbf16>
    %c2_104 = arith.constant 2 : index
    %c0_105 = arith.constant 0 : index
    %c0_106 = arith.constant 0 : index
    %110 = vector.load %arg6[%c2_104, %c0_105, %c0_106] : memref<5x128x128xbf16, #tpu.memory_space<vmem>>, vector<1x128x128xbf16>
    %111 = vector.shape_cast %110 : vector<1x128x128xbf16> to vector<128x128xbf16>
    %cst_107 = arith.constant dense<0.000000e+00> : vector<8x128xf32>
    %112 = tpu.matmul %109, %111, %cst_107 {dimension_numbers = #tpu.dot_dimension_numbers<[1], [0], [0], [1], [0, 0, 1, 1], [], []>} : vector<8x128xbf16>, vector<128x128xbf16>, vector<8x128xf32> -> vector<8x128xf32>
    %113 = arith.addf %107, %112 : vector<8x128xf32>
    %c3_108 = arith.constant 3 : index
    %c0_109 = arith.constant 0 : index
    %114 = tpu.strided_load %arg16[%c3_108, %c0_109] {strides = array<i32: 8, 1>} : memref<64x128xf32, #tpu.memory_space<vmem>>, vector<8x128xf32>
    %115 = arith.truncf %114 : vector<8x128xf32> to vector<8x128xbf16>
    %c3_110 = arith.constant 3 : index
    %c0_111 = arith.constant 0 : index
    %c0_112 = arith.constant 0 : index
    %116 = vector.load %arg6[%c3_110, %c0_111, %c0_112] : memref<5x128x128xbf16, #tpu.memory_space<vmem>>, vector<1x128x128xbf16>
    %117 = vector.shape_cast %116 : vector<1x128x128xbf16> to vector<128x128xbf16>
    %cst_113 = arith.constant dense<0.000000e+00> : vector<8x128xf32>
    %118 = tpu.matmul %115, %117, %cst_113 {dimension_numbers = #tpu.dot_dimension_numbers<[1], [0], [0], [1], [0, 0, 1, 1], [], []>} : vector<8x128xbf16>, vector<128x128xbf16>, vector<8x128xf32> -> vector<8x128xf32>
    %119 = arith.addf %113, %118 : vector<8x128xf32>
    %c4_114 = arith.constant 4 : index
    %c0_115 = arith.constant 0 : index
    %120 = tpu.strided_load %arg16[%c4_114, %c0_115] {strides = array<i32: 8, 1>} : memref<64x128xf32, #tpu.memory_space<vmem>>, vector<8x128xf32>
    %121 = arith.truncf %120 : vector<8x128xf32> to vector<8x128xbf16>
    %c4_116 = arith.constant 4 : index
    %c0_117 = arith.constant 0 : index
    %c0_118 = arith.constant 0 : index
    %122 = vector.load %arg6[%c4_116, %c0_117, %c0_118] : memref<5x128x128xbf16, #tpu.memory_space<vmem>>, vector<1x128x128xbf16>
    %123 = vector.shape_cast %122 : vector<1x128x128xbf16> to vector<128x128xbf16>
    %cst_119 = arith.constant dense<0.000000e+00> : vector<8x128xf32>
    %124 = tpu.matmul %121, %123, %cst_119 {dimension_numbers = #tpu.dot_dimension_numbers<[1], [0], [0], [1], [0, 0, 1, 1], [], []>} : vector<8x128xbf16>, vector<128x128xbf16>, vector<8x128xf32> -> vector<8x128xf32>
    %125 = arith.addf %119, %124 : vector<8x128xf32>
    %c0_120 = arith.constant 0 : index
    %c0_121 = arith.constant 0 : index
    %126 = vector.load %arg7[%c0_120, %c0_121] : memref<1x128xf32, #tpu.memory_space<vmem>>, vector<1x128xf32>
    %127 = vector.broadcast %126 : vector<1x128xf32> to vector<8x128xf32>
    %128 = arith.addf %125, %127 : vector<8x128xf32>
    %cst_122 = arith.constant 0.000000e+00 : f32
    %129 = vector.broadcast %cst_122 : f32 to vector<8x128xf32>
    %130 = arith.maximumf %128, %129 : vector<8x128xf32>
    %131 = arith.truncf %130 : vector<8x128xf32> to vector<8x128xbf16>
    %c0_123 = arith.constant 0 : index
    %c0_124 = arith.constant 0 : index
    %132 = vector.load %arg8[%c0_123, %c0_124] : memref<128x128xbf16, #tpu.memory_space<vmem>>, vector<128x128xbf16>
    %cst_125 = arith.constant dense<0.000000e+00> : vector<8x128xf32>
    %133 = tpu.matmul %131, %132, %cst_125 {dimension_numbers = #tpu.dot_dimension_numbers<[1], [0], [0], [1], [0, 0, 1, 1], [], []>} : vector<8x128xbf16>, vector<128x128xbf16>, vector<8x128xf32> -> vector<8x128xf32>
    %c0_126 = arith.constant 0 : index
    %c0_127 = arith.constant 0 : index
    %134 = vector.load %arg9[%c0_126, %c0_127] : memref<1x128xf32, #tpu.memory_space<vmem>>, vector<1x128xf32>
    %135 = vector.broadcast %134 : vector<1x128xf32> to vector<8x128xf32>
    %136 = arith.addf %133, %135 : vector<8x128xf32>
    %cst_128 = arith.constant 0.000000e+00 : f32
    %137 = vector.broadcast %cst_128 : f32 to vector<8x128xf32>
    %138 = arith.maximumf %136, %137 : vector<8x128xf32>
    %139 = arith.truncf %138 : vector<8x128xf32> to vector<8x128xbf16>
    %c0_129 = arith.constant 0 : index
    %c0_130 = arith.constant 0 : index
    %140 = vector.load %arg10[%c0_129, %c0_130] : memref<128x128xbf16, #tpu.memory_space<vmem>>, vector<128x128xbf16>
    %cst_131 = arith.constant dense<0.000000e+00> : vector<8x128xf32>
    %141 = tpu.matmul %139, %140, %cst_131 {dimension_numbers = #tpu.dot_dimension_numbers<[1], [0], [0], [1], [0, 0, 1, 1], [], []>} : vector<8x128xbf16>, vector<128x128xbf16>, vector<8x128xf32> -> vector<8x128xf32>
    %c0_132 = arith.constant 0 : index
    %c0_133 = arith.constant 0 : index
    %142 = vector.load %arg11[%c0_132, %c0_133] : memref<1x128xf32, #tpu.memory_space<vmem>>, vector<1x128xf32>
    %143 = vector.broadcast %142 : vector<1x128xf32> to vector<8x128xf32>
    %144 = arith.addf %141, %143 : vector<8x128xf32>
    %c0_134 = arith.constant 0 : index
    %c0_135 = arith.constant 0 : index
    %145 = vector.load %arg12[%c0_134, %c0_135] : memref<8x128xf32, #tpu.memory_space<vmem>>, vector<8x128xf32>
    tpu.vector_store %arg12[%c0_134, %c0_135], %144 {strides = array<i32>} : memref<8x128xf32, #tpu.memory_space<vmem>>, vector<8x128xf32>,
    return
  }
  func.func @transform_0(%arg0: i32) -> (i32, i32, i32) {
    %c0_i32 = arith.constant 0 : i32
    %c0_i32_0 = arith.constant 0 : i32
    %c0_i32_1 = arith.constant 0 : i32
    return %arg0, %c0_i32, %c0_i32_0 : i32, i32, i32
  }
  func.func @transform_1(%arg0: i32) -> (i32, i32, i32) {
    %c0_i32 = arith.constant 0 : i32
    %c0_i32_0 = arith.constant 0 : i32
    %c0_i32_1 = arith.constant 0 : i32
    %c0_i32_2 = arith.constant 0 : i32
    return %c0_i32, %c0_i32_0, %c0_i32_1 : i32, i32, i32
  }
  func.func @transform_2(%arg0: i32) -> (i32, i32) {
    %c0_i32 = arith.constant 0 : i32
    %c0_i32_0 = arith.constant 0 : i32
    %c0_i32_1 = arith.constant 0 : i32
    return %c0_i32, %c0_i32_0 : i32, i32
  }
  func.func @transform_3(%arg0: i32) -> (i32, i32, i32) {
    %c0_i32 = arith.constant 0 : i32
    %c0_i32_0 = arith.constant 0 : i32
    %c0_i32_1 = arith.constant 0 : i32
    %c0_i32_2 = arith.constant 0 : i32
    return %c0_i32, %c0_i32_0, %c0_i32_1 : i32, i32, i32
  }
  func.func @transform_4(%arg0: i32) -> (i32, i32) {
    %c0_i32 = arith.constant 0 : i32
    %c0_i32_0 = arith.constant 0 : i32
    %c0_i32_1 = arith.constant 0 : i32
    return %c0_i32, %c0_i32_0 : i32, i32
  }
  func.func @transform_5(%arg0: i32) -> (i32, i32, i32) {
    %c0_i32 = arith.constant 0 : i32
    %c0_i32_0 = arith.constant 0 : i32
    %c0_i32_1 = arith.constant 0 : i32
    %c0_i32_2 = arith.constant 0 : i32
    return %c0_i32, %c0_i32_0, %c0_i32_1 : i32, i32, i32
  }
  func.func @transform_6(%arg0: i32) -> (i32, i32) {
    %c0_i32 = arith.constant 0 : i32
    %c0_i32_0 = arith.constant 0 : i32
    %c0_i32_1 = arith.constant 0 : i32
    return %c0_i32, %c0_i32_0 : i32, i32
  }
  func.func @transform_7(%arg0: i32) -> (i32, i32) {
    %c0_i32 = arith.constant 0 : i32
    %c0_i32_0 = arith.constant 0 : i32
    %c0_i32_1 = arith.constant 0 : i32
    return %c0_i32, %c0_i32_0 : i32, i32
  }
  func.func @transform_8(%arg0: i32) -> (i32, i32) {
    %c0_i32 = arith.constant 0 : i32
    %c0_i32_0 = arith.constant 0 : i32
    %c0_i32_1 = arith.constant 0 : i32
    return %c0_i32, %c0_i32_0 : i32, i32
  }
  func.func @transform_9(%arg0: i32) -> (i32, i32) {
    %c0_i32 = arith.constant 0 : i32
    %c0_i32_0 = arith.constant 0 : i32
    %c0_i32_1 = arith.constant 0 : i32
    return %c0_i32, %c0_i32_0 : i32, i32
  }
  func.func @transform_10(%arg0: i32) -> (i32, i32) {
    %c0_i32 = arith.constant 0 : i32
    %c0_i32_0 = arith.constant 0 : i32
    %c0_i32_1 = arith.constant 0 : i32
    return %c0_i32, %c0_i32_0 : i32, i32
  }
  func.func @transform_11(%arg0: i32) -> (i32, i32) {
    %c0_i32 = arith.constant 0 : i32
    %c0_i32_0 = arith.constant 0 : i32
    return %arg0, %c0_i32 : i32, i32
  }
}

</mosaic_0001>

<llo_original>
// kernel: _forward.1
$region0: #{_forward.1}
  #allocation0 [shape = 'u32[]', space=smem, size = 0x4, offset = 0x4, fixed_abs, tag = 'smem constant byte address 0x4 - core index']
  #allocation1 [shape = 'u32[144,128]{1,0:T(1,128)}', space=vmem, size = 0x12000, scoped, tag = 'internal scratch']
  #allocation2 [shape = 'f32[256,128]{1,0:T(8,128)}', space=vmem, size = 0x20000, scoped, tag = 'scratch operand']
  #allocation3 [shape = 'f32[8,24,128]{2,1,0:T(8,128)}', space=vmem, size = 0x18000, scoped, tag = 'scratch operand']
  #allocation4 [shape = 'f32[128,128]{1,0:T(8,128)}', space=vmem, size = 0x10000, scoped, tag = 'scratch operand']
  #allocation5 [shape = 'f32[64,128]{1,0:T(8,128)}', space=vmem, size = 0x8000, scoped, tag = 'scratch operand']
  %s0 = inlined_call_operand.vmem [shape: f32[8,40,128], index: 0, kind: input, shape index: {}]
  %s1 = inlined_call_operand.vmem [shape: bf16[5,128,256], index: 1, kind: input, shape index: {}]
  %s2 = inlined_call_operand.vmem [shape: f32[1,128], index: 2, kind: input, shape index: {}]
  %s3 = inlined_call_operand.vmem [shape: bf16[5,128,256], index: 3, kind: input, shape index: {}]
  %s4 = inlined_call_operand.vmem [shape: f32[1,128], index: 4, kind: input, shape index: {}]
  %s5 = inlined_call_operand.vmem [shape: bf16[5,128,128], index: 5, kind: input, shape index: {}]
  %s6 = inlined_call_operand.vmem [shape: f32[1,128], index: 6, kind: input, shape index: {}]
  %s7 = inlined_call_operand.vmem [shape: bf16[128,128], index: 7, kind: input, shape index: {}]
  %s8 = inlined_call_operand.hbm [shape: f32[1,128], index: 8, kind: input, shape index: {}]
  %s9 = inlined_call_operand.hbm [shape: bf16[128,128], index: 9, kind: input, shape index: {}]
  %s10 = inlined_call_operand.hbm [shape: f32[1,128], index: 10, kind: input, shape index: {}]
  %s11 = inlined_call_operand.vmem [shape: f32[8,128], index: 11, kind: output, shape index: {}]
  %s12 = sld [smem:[#allocation0]]
  $region66: #{_forward.1} parent=0
    _
  %s14 = ssub.s32 1, %s12
  %s15 = scalar_select 0, %s14, %s12
  $region1: #{_forward.1} parent=0
    #allocation6 [shape = 'u8[512]{0}', space=vmem, size = 0x400, scoped, tag = 'input window, operand 8, single buffered']
    #allocation7 [shape = 's32[1]{0}', space=sflag, size = 0x4, scoped, tag = 'scoped memory for _forward.1']
    #allocation8 [shape = 'u8[32768]{0}', space=vmem, size = 0x8000, scoped, tag = 'input window, operand 9, single buffered']
    #allocation9 [shape = 's32[1]{0}', space=sflag, size = 0x4, scoped, tag = 'scoped memory for _forward.1']
    #allocation10 [shape = 'u8[512]{0}', space=vmem, size = 0x400, scoped, tag = 'input window, operand 10, single buffered']
    %16 = vsyncpa [#allocation7], 0
    %17 = vsyncpa [#allocation9], 0
    // Predicated region
    $region2: #{_forward.1} parent=1 // pred_check
      _
    $region3: #{_forward.1} parent=1 // pred_check_branch
      %19 = sbr.rel (0) target = $region5
    $region4: #{_forward.1} parent=1 // pred_region
      _
    $region5: #{_forward.1} parent=1 // pred_fallthru
      _
    // Predicated region
    $region6: #{_forward.1} parent=1 // pred_check
      _
    $region7: #{_forward.1} parent=1 // pred_check_branch
      %21 = sbr.rel (0) target = $region9
    $region8: #{_forward.1} parent=1 // pred_region
      _
    $region9: #{_forward.1} parent=1 // pred_fallthru
      _
    // Predicated region
    $region10: #{_forward.1} parent=1 // pred_check
      _
    $region11: #{_forward.1} parent=1 // pred_check_branch
      %23 = sbr.rel (0) target = $region13
    $region12: #{_forward.1} parent=1 // pred_region
      _
    $region13: #{_forward.1} parent=1 // pred_fallthru
      _
    // Predicated region
    $region14: #{_forward.1} parent=1 // pred_check
      _
    $region15: #{_forward.1} parent=1 // pred_check_branch
      %25 = sbr.rel (0) target = $region17
    $region16: #{_forward.1} parent=1 // pred_region
      _
    $region17: #{_forward.1} parent=1 // pred_fallthru
      _
    // Predicated region
    $region18: #{_forward.1} parent=1 // pred_check
      _
    $region19: #{_forward.1} parent=1 // pred_check_branch
      %27 = sbr.rel (0) target = $region21
    $region20: #{_forward.1} parent=1 // pred_region
      _
    $region21: #{_forward.1} parent=1 // pred_fallthru
      _
    // Predicated region
    $region22: #{_forward.1} parent=1 // pred_check
      _
    $region23: #{_forward.1} parent=1 // pred_check_branch
      %29 = sbr.rel (0) target = $region25
    $region24: #{_forward.1} parent=1 // pred_region
      _
    $region25: #{_forward.1} parent=1 // pred_fallthru
      _
    // Predicated region
    $region26: #{_forward.1} parent=1 // pred_check
      _
    $region27: #{_forward.1} parent=1 // pred_check_branch
      %31 = sbr.rel (0) target = $region29
    $region28: #{_forward.1} parent=1 // pred_region
      _
    $region29: #{_forward.1} parent=1 // pred_fallthru
      _
    // Predicated region
    $region30: #{_forward.1} parent=1 // pred_check
      _
    $region31: #{_forward.1} parent=1 // pred_check_branch
      %33 = sbr.rel (0) target = $region33
    $region32: #{_forward.1} parent=1 // pred_region
      _
    $region33: #{_forward.1} parent=1 // pred_fallthru
      _
    // Predicated region
    $region34: #{_forward.1} parent=1 // pred_check
      _
    $region35: #{_forward.1} parent=1 // pred_check_branch
      %35 = sbr.rel (0) target = $region37
    $region36: #{_forward.1} parent=1 // pred_region
      %s37 = ssub.s32 16, 16
      %38 = vsyncadd [#allocation7], %s37
      %s40 = sshll.u32 [#allocation6], 4
      %s41 = int_to_ptr.vmem [resolvable:$true] %s40
      %43 = dma.hbm_to_vmem [thread:$0]  %s8, 16, %s41, [#allocation7]
    $region37: #{_forward.1} parent=1 // pred_fallthru
      _
    // Predicated region
    $region38: #{_forward.1} parent=1 // pred_check
      _
    $region39: #{_forward.1} parent=1 // pred_check_branch
      %45 = sbr.rel (0) target = $region41
    $region40: #{_forward.1} parent=1 // pred_region
      %s47 = ssub.s32 1024, 1024
      %48 = vsyncadd [#allocation9], %s47
      %s49 = sshll.u32 [#allocation8], 4
      %s50 = int_to_ptr.vmem [resolvable:$true] %s49
      %55 = dma.hbm_to_vmem [thread:$0]  %s9, 1024, %s50, [#allocation9], 64, 64, 4
    $region41: #{_forward.1} parent=1 // pred_fallthru
      _
    // Predicated region
    $region42: #{_forward.1} parent=1 // pred_check
      _
    $region43: #{_forward.1} parent=1 // pred_check_branch
      %57 = sbr.rel (0) target = $region45
    $region44: #{_forward.1} parent=1 // pred_region
      %s59 = ssub.s32 16, 16
      %60 = vsyncadd [#allocation9], %s59
      %s62 = sshll.u32 [#allocation10], 4
      %s63 = int_to_ptr.vmem [resolvable:$true] %s62
      %65 = dma.hbm_to_vmem [thread:$0]  %s10, 16, %s63, [#allocation9]
    $region45: #{_forward.1} parent=1 // pred_fallthru
      _
    // Predicated region
    $region46: #{_forward.1} parent=1 // pred_check
      _
    $region47: #{_forward.1} parent=1 // pred_check_branch
      %67 = sbr.rel (0) target = $region49
    $region48: #{_forward.1} parent=1 // pred_region
      %68 = dma.done [#allocation7], 16
    $region49: #{_forward.1} parent=1 // pred_fallthru
      _
    // Predicated region
    $region50: #{_forward.1} parent=1 // pred_check
      _
    $region51: #{_forward.1} parent=1 // pred_check_branch
      %70 = sbr.rel (0) target = $region53
    $region52: #{_forward.1} parent=1 // pred_region
      %71 = dma.done [#allocation9], 1024
    $region53: #{_forward.1} parent=1 // pred_fallthru
      _
    // Predicated region
    $region54: #{_forward.1} parent=1 // pred_check
      _
    $region55: #{_forward.1} parent=1 // pred_check_branch
      %73 = sbr.rel (0) target = $region57
    $region56: #{_forward.1} parent=1 // pred_region
      %74 = dma.done [#allocation9], 16
    $region57: #{_forward.1} parent=1 // pred_fallthru
      _
    %v76 = vld [vmem:[%s0] sm:$0xff]
    %v77 = vld [vmem:[%s0 + $0x8] sm:$0xff]
    %v78 = vld [vmem:[%s0 + $0x10] sm:$0xff]
    %v79 = vld [vmem:[%s0 + $0x18] sm:$0xff]
    %v80 = vld [vmem:[%s0 + $0x28] sm:$0xff]
    %v81 = vld [vmem:[%s0 + $0x30] sm:$0xff]
    %v82 = vld [vmem:[%s0 + $0x38] sm:$0xff]
    %v83 = vld [vmem:[%s0 + $0x40] sm:$0xff]
    %v84 = vld [vmem:[%s0 + $0x50] sm:$0xff]
    %v85 = vld [vmem:[%s0 + $0x58] sm:$0xff]
    %v86 = vld [vmem:[%s0 + $0x60] sm:$0xff]
    %v87 = vld [vmem:[%s0 + $0x68] sm:$0xff]
    %v88 = vld [vmem:[%s0 + $0x78] sm:$0xff]
    %v89 = vld [vmem:[%s0 + $0x80] sm:$0xff]
    %v90 = vld [vmem:[%s0 + $0x88] sm:$0xff]
    %v91 = vld [vmem:[%s0 + $0x90] sm:$0xff]
    %v92 = vld [vmem:[%s0 + $0xa0] sm:$0xff]
    %v93 = vld [vmem:[%s0 + $0xa8] sm:$0xff]
    %v94 = vld [vmem:[%s0 + $0xb0] sm:$0xff]
    %v95 = vld [vmem:[%s0 + $0xb8] sm:$0xff]
    %v96 = vld [vmem:[%s0 + $0xc8] sm:$0xff]
    %v97 = vld [vmem:[%s0 + $0xd0] sm:$0xff]
    %v98 = vld [vmem:[%s0 + $0xd8] sm:$0xff]
    %v99 = vld [vmem:[%s0 + $0xe0] sm:$0xff]
    %v100 = vld [vmem:[%s0 + $0xf0] sm:$0xff]
    %v101 = vld [vmem:[%s0 + $0xf8] sm:$0xff]
    %v102 = vld [vmem:[%s0 + $0x100] sm:$0xff]
    %v103 = vld [vmem:[%s0 + $0x108] sm:$0xff]
    %v104 = vld [vmem:[%s0 + $0x118] sm:$0xff]
    %v105 = vld [vmem:[%s0 + $0x120] sm:$0xff]
    %v106 = vld [vmem:[%s0 + $0x128] sm:$0xff]
    %v107 = vld [vmem:[%s0 + $0x130] sm:$0xff]
    %v108 = vpack.c.bf16 %v77, %v76
    %v109 = vpack.c.bf16 %v79, %v78
    %v110 = vpack.c.bf16 %v81, %v80
    %v111 = vpack.c.bf16 %v83, %v82
    %v112 = vpack.c.bf16 %v85, %v84
    %v113 = vpack.c.bf16 %v87, %v86
    %v114 = vpack.c.bf16 %v89, %v88
    %v115 = vpack.c.bf16 %v91, %v90
    %v116 = vpack.c.bf16 %v93, %v92
    %v117 = vpack.c.bf16 %v95, %v94
    %v118 = vpack.c.bf16 %v97, %v96
    %v119 = vpack.c.bf16 %v99, %v98
    %v120 = vpack.c.bf16 %v101, %v100
    %v121 = vpack.c.bf16 %v103, %v102
    %v122 = vpack.c.bf16 %v105, %v104
    %v123 = vpack.c.bf16 %v107, %v106
    %v124 = vld [vmem:[%s1] sm:$0xff]
    %v125 = vld [vmem:[%s1 + $0x8] sm:$0xff]
    %v126 = vld [vmem:[%s1 + $0x10] sm:$0xff]
    %v127 = vld [vmem:[%s1 + $0x18] sm:$0xff]
    %v128 = vld [vmem:[%s1 + $0x20] sm:$0xff]
    %v129 = vld [vmem:[%s1 + $0x28] sm:$0xff]
    %v130 = vld [vmem:[%s1 + $0x30] sm:$0xff]
    %v131 = vld [vmem:[%s1 + $0x38] sm:$0xff]
    %v132 = vld [vmem:[%s1 + $0x40] sm:$0xff]
    %v133 = vld [vmem:[%s1 + $0x48] sm:$0xff]
    %v134 = vld [vmem:[%s1 + $0x50] sm:$0xff]
    %v135 = vld [vmem:[%s1 + $0x58] sm:$0xff]
    %v136 = vld [vmem:[%s1 + $0x60] sm:$0xff]
    %v137 = vld [vmem:[%s1 + $0x68] sm:$0xff]
    %v138 = vld [vmem:[%s1 + $0x70] sm:$0xff]
    %v139 = vld [vmem:[%s1 + $0x78] sm:$0xff]
    %v140 = vld [vmem:[%s0 + $0x1] sm:$0xff]
    %v141 = vld [vmem:[%s0 + $0x9] sm:$0xff]
    %v142 = vld [vmem:[%s0 + $0x11] sm:$0xff]
    %v143 = vld [vmem:[%s0 + $0x19] sm:$0xff]
    %v144 = vld [vmem:[%s0 + $0x29] sm:$0xff]
    %v145 = vld [vmem:[%s0 + $0x31] sm:$0xff]
    %v146 = vld [vmem:[%s0 + $0x39] sm:$0xff]
    %v147 = vld [vmem:[%s0 + $0x41] sm:$0xff]
    %v148 = vld [vmem:[%s0 + $0x51] sm:$0xff]
    %v149 = vld [vmem:[%s0 + $0x59] sm:$0xff]
    %v150 = vld [vmem:[%s0 + $0x61] sm:$0xff]
    %v151 = vld [vmem:[%s0 + $0x69] sm:$0xff]
    %v152 = vld [vmem:[%s0 + $0x79] sm:$0xff]
    %v153 = vld [vmem:[%s0 + $0x81] sm:$0xff]
    %v154 = vld [vmem:[%s0 + $0x89] sm:$0xff]
    %v155 = vld [vmem:[%s0 + $0x91] sm:$0xff]
    %v156 = vld [vmem:[%s0 + $0xa1] sm:$0xff]
    %v157 = vld [vmem:[%s0 + $0xa9] sm:$0xff]
    %v158 = vld [vmem:[%s0 + $0xb1] sm:$0xff]
    %v159 = vld [vmem:[%s0 + $0xb9] sm:$0xff]
    %v160 = vld [vmem:[%s0 + $0xc9] sm:$0xff]
    %v161 = vld [vmem:[%s0 + $0xd1] sm:$0xff]
    %v162 = vld [vmem:[%s0 + $0xd9] sm:$0xff]
    %v163 = vld [vmem:[%s0 + $0xe1] sm:$0xff]
    %v164 = vld [vmem:[%s0 + $0xf1] sm:$0xff]
    %v165 = vld [vmem:[%s0 + $0xf9] sm:$0xff]
    %v166 = vld [vmem:[%s0 + $0x101] sm:$0xff]
    %v167 = vld [vmem:[%s0 + $0x109] sm:$0xff]
    %v168 = vld [vmem:[%s0 + $0x119] sm:$0xff]
    %v169 = vld [vmem:[%s0 + $0x121] sm:$0xff]
    %v170 = vld [vmem:[%s0 + $0x129] sm:$0xff]
    %v171 = vld [vmem:[%s0 + $0x131] sm:$0xff]
    %v172 = vpack.c.bf16 %v141, %v140
    %v173 = vpack.c.bf16 %v143, %v142
    %v174 = vpack.c.bf16 %v145, %v144
    %v175 = vpack.c.bf16 %v147, %v146
    %v176 = vpack.c.bf16 %v149, %v148
    %v177 = vpack.c.bf16 %v151, %v150
    %v178 = vpack.c.bf16 %v153, %v152
    %v179 = vpack.c.bf16 %v155, %v154
    %v180 = vpack.c.bf16 %v157, %v156
    %v181 = vpack.c.bf16 %v159, %v158
    %v182 = vpack.c.bf16 %v161, %v160
    %v183 = vpack.c.bf16 %v163, %v162
    %v184 = vpack.c.bf16 %v165, %v164
    %v185 = vpack.c.bf16 %v167, %v166
    %v186 = vpack.c.bf16 %v169, %v168
    %v187 = vpack.c.bf16 %v171, %v170
    %s188 = scalar_lea.vmem %s1, 128
    %v189 = vld [vmem:[%s188] sm:$0xff]
    %v190 = vld [vmem:[%s188 + $0x8] sm:$0xff]
    %v191 = vld [vmem:[%s188 + $0x10] sm:$0xff]
    %v192 = vld [vmem:[%s188 + $0x18] sm:$0xff]
    %v193 = vld [vmem:[%s188 + $0x20] sm:$0xff]
    %v194 = vld [vmem:[%s188 + $0x28] sm:$0xff]
    %v195 = vld [vmem:[%s188 + $0x30] sm:$0xff]
    %v196 = vld [vmem:[%s188 + $0x38] sm:$0xff]
    %v197 = vld [vmem:[%s188 + $0x40] sm:$0xff]
    %v198 = vld [vmem:[%s188 + $0x48] sm:$0xff]
    %v199 = vld [vmem:[%s188 + $0x50] sm:$0xff]
    %v200 = vld [vmem:[%s188 + $0x58] sm:$0xff]
    %v201 = vld [vmem:[%s188 + $0x60] sm:$0xff]
    %v202 = vld [vmem:[%s188 + $0x68] sm:$0xff]
    %v203 = vld [vmem:[%s188 + $0x70] sm:$0xff]
    %v204 = vld [vmem:[%s188 + $0x78] sm:$0xff]
    %v221 = vunpack.c.l.b16 %v189
    %v222 = vunpack.c.h.b16 %v189
    %v223 = vunpack.c.l.b16 %v190
    %v224 = vunpack.c.h.b16 %v190
    %v225 = vunpack.c.l.b16 %v191
    %v226 = vunpack.c.h.b16 %v191
    %v227 = vunpack.c.l.b16 %v192
    %v228 = vunpack.c.h.b16 %v192
    %v229 = vunpack.c.l.b16 %v193
    %v230 = vunpack.c.h.b16 %v193
    %v231 = vunpack.c.l.b16 %v194
    %v232 = vunpack.c.h.b16 %v194
    %v233 = vunpack.c.l.b16 %v195
    %v234 = vunpack.c.h.b16 %v195
    %v235 = vunpack.c.l.b16 %v196
    %v236 = vunpack.c.h.b16 %v196
    %v237 = vunpack.c.l.b16 %v197
    %v238 = vunpack.c.h.b16 %v197
    %v239 = vunpack.c.l.b16 %v198
    %v240 = vunpack.c.h.b16 %v198
    %v241 = vunpack.c.l.b16 %v199
    %v242 = vunpack.c.h.b16 %v199
    %v243 = vunpack.c.l.b16 %v200
    %v244 = vunpack.c.h.b16 %v200
    %v245 = vunpack.c.l.b16 %v201
    %v246 = vunpack.c.h.b16 %v201
    %v247 = vunpack.c.l.b16 %v202
    %v248 = vunpack.c.h.b16 %v202
    %v249 = vunpack.c.l.b16 %v203
    %v250 = vunpack.c.h.b16 %v203
    %v251 = vunpack.c.l.b16 %v204
    %v252 = vunpack.c.h.b16 %v204
    %v253 = vpack.c.b16 %v223, %v221
    %v254 = vpack.c.b16 %v224, %v222
    %v255 = vpack.c.b16 %v227, %v225
    %v256 = vpack.c.b16 %v228, %v226
    %v257 = vpack.c.b16 %v231, %v229
    %v258 = vpack.c.b16 %v232, %v230
    %v259 = vpack.c.b16 %v235, %v233
    %v260 = vpack.c.b16 %v236, %v234
    %v261 = vpack.c.b16 %v239, %v237
    %v262 = vpack.c.b16 %v240, %v238
    %v263 = vpack.c.b16 %v243, %v241
    %v264 = vpack.c.b16 %v244, %v242
    %v265 = vpack.c.b16 %v247, %v245
    %v266 = vpack.c.b16 %v248, %v246
    %v267 = vpack.c.b16 %v251, %v249
    %v268 = vpack.c.b16 %v252, %v250
    %285 = vmatprep.subr.bf16.mxu0 %v268
    %286 = vmatpush1.bf16.msra.mxu0 %v267
    %287 = vmatprep.subr.bf16.mxu0 %v266
    %288 = vmatpush1.bf16.msra.mxu0 %v265
    %289 = vmatprep.subr.bf16.mxu0 %v264
    %290 = vmatpush1.bf16.msra.mxu0 %v263
    %291 = vmatprep.subr.bf16.mxu0 %v262
    %292 = vmatpush1.bf16.msra.mxu0 %v261
    %293 = vmatprep.subr.bf16.mxu0 %v260
    %294 = vmatpush1.bf16.msra.mxu0 %v259
    %295 = vmatprep.subr.bf16.mxu0 %v258
    %296 = vmatpush1.bf16.msra.mxu0 %v257
    %297 = vmatprep.subr.bf16.mxu0 %v256
    %298 = vmatpush1.bf16.msra.mxu0 %v255
    %299 = vmatprep.subr.bf16.mxu0 %v254
    %300 = vmatpush1.bf16.msra.mxu0 %v253
    %301 = vmatprep.subr.bf16.mxu0 0
    %302 = vmatpush2.bf16.msra.mxu0 0
    %303 = vmatprep.subr.bf16.mxu0 0
    %304 = vmatpush2.bf16.msra.mxu0 0
    %305 = vmatprep.subr.bf16.mxu0 0
    %306 = vmatpush2.bf16.msra.mxu0 0
    %307 = vmatprep.subr.bf16.mxu0 0
    %308 = vmatpush2.bf16.msra.mxu0 0
    %309 = vmatprep.subr.bf16.mxu0 0
    %310 = vmatpush2.bf16.msra.mxu0 0
    %311 = vmatprep.subr.bf16.mxu0 0
    %312 = vmatpush2.bf16.msra.mxu0 0
    %313 = vmatprep.subr.bf16.mxu0 0
    %314 = vmatpush2.bf16.msra.mxu0 0
    %315 = vmatprep.subr.bf16.mxu0 0
    %316 = vmatpush2.bf16.msra.mxu0 0
    %317 = vmatprep.mubr.bf16.mxu0 0
    %318 = vmatmul.mubr.bf16.gmra.mxu0 %v172
    %v319 = vpop.f32.mrf.mxu0
    %v320 = vadd.f32 0.0, %v319
    %v321 = vpop.f32.mrf.mxu0
    %v322 = vadd.f32 0.0, %v321
    %v323 = vpop.f32.mrf.mxu0
    %v324 = vadd.f32 0.0, %v323
    %v325 = vpop.f32.mrf.mxu0
    %v326 = vadd.f32 0.0, %v325
    %327 = vmatprep.mubr.bf16.mxu0 0
    %328 = vmatmul.mubr.bf16.gmra.mxu0 %v173
    %v329 = vpop.f32.mrf.mxu0
    %v330 = vadd.f32 0.0, %v329
    %v331 = vpop.f32.mrf.mxu0
    %v332 = vadd.f32 0.0, %v331
    %v333 = vpop.f32.mrf.mxu0
    %v334 = vadd.f32 0.0, %v333
    %v335 = vpop.f32.mrf.mxu0
    %v336 = vadd.f32 0.0, %v335
    %337 = vmatprep.mubr.bf16.mxu0 0
    %338 = vmatmul.mubr.bf16.gmra.mxu0 %v174
    %v339 = vpop.f32.mrf.mxu0
    %v340 = vadd.f32 0.0, %v339
    %v341 = vpop.f32.mrf.mxu0
    %v342 = vadd.f32 0.0, %v341
    %v343 = vpop.f32.mrf.mxu0
    %v344 = vadd.f32 0.0, %v343
    %v345 = vpop.f32.mrf.mxu0
    %v346 = vadd.f32 0.0, %v345
    %347 = vmatprep.mubr.bf16.mxu0 0
    %348 = vmatmul.mubr.bf16.gmra.mxu0 %v175
    %v349 = vpop.f32.mrf.mxu0
    %v350 = vadd.f32 0.0, %v349
    %v351 = vpop.f32.mrf.mxu0
    %v352 = vadd.f32 0.0, %v351
    %v353 = vpop.f32.mrf.mxu0
    %v354 = vadd.f32 0.0, %v353
    %v355 = vpop.f32.mrf.mxu0
    %v356 = vadd.f32 0.0, %v355
    %357 = vmatprep.mubr.bf16.mxu0 0
    %358 = vmatmul.mubr.bf16.gmra.mxu0 %v176
    %v359 = vpop.f32.mrf.mxu0
    %v360 = vadd.f32 0.0, %v359
    %v361 = vpop.f32.mrf.mxu0
    %v362 = vadd.f32 0.0, %v361
    %v363 = vpop.f32.mrf.mxu0
    %v364 = vadd.f32 0.0, %v363
    %v365 = vpop.f32.mrf.mxu0
    %v366 = vadd.f32 0.0, %v365
    %367 = vmatprep.mubr.bf16.mxu0 0
    %368 = vmatmul.mubr.bf16.gmra.mxu0 %v177
    %v369 = vpop.f32.mrf.mxu0
    %v370 = vadd.f32 0.0, %v369
    %v371 = vpop.f32.mrf.mxu0
    %v372 = vadd.f32 0.0, %v371
    %v373 = vpop.f32.mrf.mxu0
    %v374 = vadd.f32 0.0, %v373
    %v375 = vpop.f32.mrf.mxu0
    %v376 = vadd.f32 0.0, %v375
    %377 = vmatprep.mubr.bf16.mxu0 0
    %378 = vmatmul.mubr.bf16.gmra.mxu0 %v178
    %v379 = vpop.f32.mrf.mxu0
    %v380 = vadd.f32 0.0, %v379
    %v381 = vpop.f32.mrf.mxu0
    %v382 = vadd.f32 0.0, %v381
    %v383 = vpop.f32.mrf.mxu0
    %v384 = vadd.f32 0.0, %v383
    %v385 = vpop.f32.mrf.mxu0
    %v386 = vadd.f32 0.0, %v385
    %387 = vmatprep.mubr.bf16.mxu0 0
    %388 = vmatmul.mubr.bf16.gmra.mxu0 %v179
    %v389 = vpop.f32.mrf.mxu0
    %v390 = vadd.f32 0.0, %v389
    %v391 = vpop.f32.mrf.mxu0
    %v392 = vadd.f32 0.0, %v391
    %v393 = vpop.f32.mrf.mxu0
    %v394 = vadd.f32 0.0, %v393
    %v395 = vpop.f32.mrf.mxu0
    %v396 = vadd.f32 0.0, %v395
    %397 = vmatprep.mubr.bf16.mxu0 0
    %398 = vmatmul.mubr.bf16.gmra.mxu0 %v180
    %v399 = vpop.f32.mrf.mxu0
    %v400 = vadd.f32 0.0, %v399
    %v401 = vpop.f32.mrf.mxu0
    %v402 = vadd.f32 0.0, %v401
    %v403 = vpop.f32.mrf.mxu0
    %v404 = vadd.f32 0.0, %v403
    %v405 = vpop.f32.mrf.mxu0
    %v406 = vadd.f32 0.0, %v405
    %407 = vmatprep.mubr.bf16.mxu0 0
    %408 = vmatmul.mubr.bf16.gmra.mxu0 %v181
    %v409 = vpop.f32.mrf.mxu0
    %v410 = vadd.f32 0.0, %v409
    %v411 = vpop.f32.mrf.mxu0
    %v412 = vadd.f32 0.0, %v411
    %v413 = vpop.f32.mrf.mxu0
    %v414 = vadd.f32 0.0, %v413
    %v415 = vpop.f32.mrf.mxu0
    %v416 = vadd.f32 0.0, %v415
    %417 = vmatprep.mubr.bf16.mxu0 0
    %418 = vmatmul.mubr.bf16.gmra.mxu0 %v182
    %v419 = vpop.f32.mrf.mxu0
    %v420 = vadd.f32 0.0, %v419
    %v421 = vpop.f32.mrf.mxu0
    %v422 = vadd.f32 0.0, %v421
    %v423 = vpop.f32.mrf.mxu0
    %v424 = vadd.f32 0.0, %v423
    %v425 = vpop.f32.mrf.mxu0
    %v426 = vadd.f32 0.0, %v425
    %427 = vmatprep.mubr.bf16.mxu0 0
    %428 = vmatmul.mubr.bf16.gmra.mxu0 %v183
    %v429 = vpop.f32.mrf.mxu0
    %v430 = vadd.f32 0.0, %v429
    %v431 = vpop.f32.mrf.mxu0
    %v432 = vadd.f32 0.0, %v431
    %v433 = vpop.f32.mrf.mxu0
    %v434 = vadd.f32 0.0, %v433
    %v435 = vpop.f32.mrf.mxu0
    %v436 = vadd.f32 0.0, %v435
    %437 = vmatprep.mubr.bf16.mxu0 0
    %438 = vmatmul.mubr.bf16.gmra.mxu0 %v184
    %v439 = vpop.f32.mrf.mxu0
    %v440 = vadd.f32 0.0, %v439
    %v441 = vpop.f32.mrf.mxu0
    %v442 = vadd.f32 0.0, %v441
    %v443 = vpop.f32.mrf.mxu0
    %v444 = vadd.f32 0.0, %v443
    %v445 = vpop.f32.mrf.mxu0
    %v446 = vadd.f32 0.0, %v445
    %447 = vmatprep.mubr.bf16.mxu0 0
    %448 = vmatmul.mubr.bf16.gmra.mxu0 %v185
    %v449 = vpop.f32.mrf.mxu0
    %v450 = vadd.f32 0.0, %v449
    %v451 = vpop.f32.mrf.mxu0
    %v452 = vadd.f32 0.0, %v451
    %v453 = vpop.f32.mrf.mxu0
    %v454 = vadd.f32 0.0, %v453
    %v455 = vpop.f32.mrf.mxu0
    %v456 = vadd.f32 0.0, %v455
    %457 = vmatprep.mubr.bf16.mxu0 0
    %458 = vmatmul.mubr.bf16.gmra.mxu0 %v186
    %v459 = vpop.f32.mrf.mxu0
    %v460 = vadd.f32 0.0, %v459
    %v461 = vpop.f32.mrf.mxu0
    %v462 = vadd.f32 0.0, %v461
    %v463 = vpop.f32.mrf.mxu0
    %v464 = vadd.f32 0.0, %v463
    %v465 = vpop.f32.mrf.mxu0
    %v466 = vadd.f32 0.0, %v465
    %467 = vmatprep.mubr.bf16.mxu0 0
    %468 = vmatmul.mubr.bf16.gmra.mxu0 %v187
    %v469 = vpop.f32.mrf.mxu0
    %v470 = vadd.f32 0.0, %v469
    %v471 = vpop.f32.mrf.mxu0
    %v472 = vadd.f32 0.0, %v471
    %v473 = vpop.f32.mrf.mxu0
    %v474 = vadd.f32 0.0, %v473
    %v475 = vpop.f32.mrf.mxu0
    %v476 = vadd.f32 0.0, %v475
    %477 = vdwg.mxu0
    %v494 = vunpack.c.l.b16 %v124
    %v495 = vunpack.c.h.b16 %v124
    %v496 = vunpack.c.l.b16 %v125
    %v497 = vunpack.c.h.b16 %v125
    %v498 = vunpack.c.l.b16 %v126
    %v499 = vunpack.c.h.b16 %v126
    %v500 = vunpack.c.l.b16 %v127
    %v501 = vunpack.c.h.b16 %v127
    %v502 = vunpack.c.l.b16 %v128
    %v503 = vunpack.c.h.b16 %v128
    %v504 = vunpack.c.l.b16 %v129
    %v505 = vunpack.c.h.b16 %v129
    %v506 = vunpack.c.l.b16 %v130
    %v507 = vunpack.c.h.b16 %v130
    %v508 = vunpack.c.l.b16 %v131
    %v509 = vunpack.c.h.b16 %v131
    %v510 = vunpack.c.l.b16 %v132
    %v511 = vunpack.c.h.b16 %v132
    %v512 = vunpack.c.l.b16 %v133
    %v513 = vunpack.c.h.b16 %v133
    %v514 = vunpack.c.l.b16 %v134
    %v515 = vunpack.c.h.b16 %v134
    %v516 = vunpack.c.l.b16 %v135
    %v517 = vunpack.c.h.b16 %v135
    %v518 = vunpack.c.l.b16 %v136
    %v519 = vunpack.c.h.b16 %v136
    %v520 = vunpack.c.l.b16 %v137
    %v521 = vunpack.c.h.b16 %v137
    %v522 = vunpack.c.l.b16 %v138
    %v523 = vunpack.c.h.b16 %v138
    %v524 = vunpack.c.l.b16 %v139
    %v525 = vunpack.c.h.b16 %v139
    %v526 = vpack.c.b16 %v496, %v494
    %v527 = vpack.c.b16 %v497, %v495
    %v528 = vpack.c.b16 %v500, %v498
    %v529 = vpack.c.b16 %v501, %v499
    %v530 = vpack.c.b16 %v504, %v502
    %v531 = vpack.c.b16 %v505, %v503
    %v532 = vpack.c.b16 %v508, %v506
    %v533 = vpack.c.b16 %v509, %v507
    %v534 = vpack.c.b16 %v512, %v510
    %v535 = vpack.c.b16 %v513, %v511
    %v536 = vpack.c.b16 %v516, %v514
    %v537 = vpack.c.b16 %v517, %v515
    %v538 = vpack.c.b16 %v520, %v518
    %v539 = vpack.c.b16 %v521, %v519
    %v540 = vpack.c.b16 %v524, %v522
    %v541 = vpack.c.b16 %v525, %v523
    %558 = vmatprep.subr.bf16.mxu0 %v541
    %559 = vmatpush1.bf16.msra.mxu0 %v540
    %560 = vmatprep.subr.bf16.mxu0 %v539
    %561 = vmatpush1.bf16.msra.mxu0 %v538
    %562 = vmatprep.subr.bf16.mxu0 %v537
    %563 = vmatpush1.bf16.msra.mxu0 %v536
    %564 = vmatprep.subr.bf16.mxu0 %v535
    %565 = vmatpush1.bf16.msra.mxu0 %v534
    %566 = vmatprep.subr.bf16.mxu0 %v533
    %567 = vmatpush1.bf16.msra.mxu0 %v532
    %568 = vmatprep.subr.bf16.mxu0 %v531
    %569 = vmatpush1.bf16.msra.mxu0 %v530
    %570 = vmatprep.subr.bf16.mxu0 %v529
    %571 = vmatpush1.bf16.msra.mxu0 %v528
    %572 = vmatprep.subr.bf16.mxu0 %v527
    %573 = vmatpush1.bf16.msra.mxu0 %v526
    %574 = vmatprep.subr.bf16.mxu0 0
    %575 = vmatpush2.bf16.msra.mxu0 0
    %576 = vmatprep.subr.bf16.mxu0 0
    %577 = vmatpush2.bf16.msra.mxu0 0
    %578 = vmatprep.subr.bf16.mxu0 0
    %579 = vmatpush2.bf16.msra.mxu0 0
    %580 = vmatprep.subr.bf16.mxu0 0
    %581 = vmatpush2.bf16.msra.mxu0 0
    %582 = vmatprep.subr.bf16.mxu0 0
    %583 = vmatpush2.bf16.msra.mxu0 0
    %584 = vmatprep.subr.bf16.mxu0 0
    %585 = vmatpush2.bf16.msra.mxu0 0
    %586 = vmatprep.subr.bf16.mxu0 0
    %587 = vmatpush2.bf16.msra.mxu0 0
    %588 = vmatprep.subr.bf16.mxu0 0
    %589 = vmatpush2.bf16.msra.mxu0 0
    %590 = vmatprep.mubr.bf16.mxu0 0
    %591 = vmatmul.mubr.bf16.gmra.mxu0 %v108
    %v592 = vpop.f32.mrf.mxu0
    %v593 = vadd.f32 %v320, %v592
    %v594 = vpop.f32.mrf.mxu0
    %v595 = vadd.f32 %v322, %v594
    %v596 = vpop.f32.mrf.mxu0
    %v597 = vadd.f32 %v324, %v596
    %v598 = vpop.f32.mrf.mxu0
    %v599 = vadd.f32 %v326, %v598
    %600 = vmatprep.mubr.bf16.mxu0 0
    %601 = vmatmul.mubr.bf16.gmra.mxu0 %v109
    %v602 = vpop.f32.mrf.mxu0
    %v603 = vadd.f32 %v330, %v602
    %v604 = vpop.f32.mrf.mxu0
    %v605 = vadd.f32 %v332, %v604
    %v606 = vpop.f32.mrf.mxu0
    %v607 = vadd.f32 %v334, %v606
    %v608 = vpop.f32.mrf.mxu0
    %v609 = vadd.f32 %v336, %v608
    %610 = vmatprep.mubr.bf16.mxu0 0
    %611 = vmatmul.mubr.bf16.gmra.mxu0 %v110
    %v612 = vpop.f32.mrf.mxu0
    %v613 = vadd.f32 %v340, %v612
    %v614 = vpop.f32.mrf.mxu0
    %v615 = vadd.f32 %v342, %v614
    %v616 = vpop.f32.mrf.mxu0
    %v617 = vadd.f32 %v344, %v616
    %v618 = vpop.f32.mrf.mxu0
    %v619 = vadd.f32 %v346, %v618
    %620 = vmatprep.mubr.bf16.mxu0 0
    %621 = vmatmul.mubr.bf16.gmra.mxu0 %v111
    %v622 = vpop.f32.mrf.mxu0
    %v623 = vadd.f32 %v350, %v622
    %v624 = vpop.f32.mrf.mxu0
    %v625 = vadd.f32 %v352, %v624
    %v626 = vpop.f32.mrf.mxu0
    %v627 = vadd.f32 %v354, %v626
    %v628 = vpop.f32.mrf.mxu0
    %v629 = vadd.f32 %v356, %v628
    %630 = vmatprep.mubr.bf16.mxu0 0
    %631 = vmatmul.mubr.bf16.gmra.mxu0 %v112
    %v632 = vpop.f32.mrf.mxu0
    %v633 = vadd.f32 %v360, %v632
    %v634 = vpop.f32.mrf.mxu0
    %v635 = vadd.f32 %v362, %v634
    %v636 = vpop.f32.mrf.mxu0
    %v637 = vadd.f32 %v364, %v636
    %v638 = vpop.f32.mrf.mxu0
    %v639 = vadd.f32 %v366, %v638
    %640 = vmatprep.mubr.bf16.mxu0 0
    %641 = vmatmul.mubr.bf16.gmra.mxu0 %v113
    %v642 = vpop.f32.mrf.mxu0
    %v643 = vadd.f32 %v370, %v642
    %v644 = vpop.f32.mrf.mxu0
    %v645 = vadd.f32 %v372, %v644
    %v646 = vpop.f32.mrf.mxu0
    %v647 = vadd.f32 %v374, %v646
    %v648 = vpop.f32.mrf.mxu0
    %v649 = vadd.f32 %v376, %v648
    %650 = vmatprep.mubr.bf16.mxu0 0
    %651 = vmatmul.mubr.bf16.gmra.mxu0 %v114
    %v652 = vpop.f32.mrf.mxu0
    %v653 = vadd.f32 %v380, %v652
    %v654 = vpop.f32.mrf.mxu0
    %v655 = vadd.f32 %v382, %v654
    %v656 = vpop.f32.mrf.mxu0
    %v657 = vadd.f32 %v384, %v656
    %v658 = vpop.f32.mrf.mxu0
    %v659 = vadd.f32 %v386, %v658
    %660 = vmatprep.mubr.bf16.mxu0 0
    %661 = vmatmul.mubr.bf16.gmra.mxu0 %v115
    %v662 = vpop.f32.mrf.mxu0
    %v663 = vadd.f32 %v390, %v662
    %v664 = vpop.f32.mrf.mxu0
    %v665 = vadd.f32 %v392, %v664
    %v666 = vpop.f32.mrf.mxu0
    %v667 = vadd.f32 %v394, %v666
    %v668 = vpop.f32.mrf.mxu0
    %v669 = vadd.f32 %v396, %v668
    %670 = vmatprep.mubr.bf16.mxu0 0
    %671 = vmatmul.mubr.bf16.gmra.mxu0 %v116
    %v672 = vpop.f32.mrf.mxu0
    %v673 = vadd.f32 %v400, %v672
    %v674 = vpop.f32.mrf.mxu0
    %v675 = vadd.f32 %v402, %v674
    %v676 = vpop.f32.mrf.mxu0
    %v677 = vadd.f32 %v404, %v676
    %v678 = vpop.f32.mrf.mxu0
    %v679 = vadd.f32 %v406, %v678
    %680 = vmatprep.mubr.bf16.mxu0 0
    %681 = vmatmul.mubr.bf16.gmra.mxu0 %v117
    %v682 = vpop.f32.mrf.mxu0
    %v683 = vadd.f32 %v410, %v682
    %v684 = vpop.f32.mrf.mxu0
    %v685 = vadd.f32 %v412, %v684
    %v686 = vpop.f32.mrf.mxu0
    %v687 = vadd.f32 %v414, %v686
    %v688 = vpop.f32.mrf.mxu0
    %v689 = vadd.f32 %v416, %v688
    %690 = vmatprep.mubr.bf16.mxu0 0
    %691 = vmatmul.mubr.bf16.gmra.mxu0 %v118
    %v692 = vpop.f32.mrf.mxu0
    %v693 = vadd.f32 %v420, %v692
    %v694 = vpop.f32.mrf.mxu0
    %v695 = vadd.f32 %v422, %v694
    %v696 = vpop.f32.mrf.mxu0
    %v697 = vadd.f32 %v424, %v696
    %v698 = vpop.f32.mrf.mxu0
    %v699 = vadd.f32 %v426, %v698
    %700 = vmatprep.mubr.bf16.mxu0 0
    %701 = vmatmul.mubr.bf16.gmra.mxu0 %v119
    %v702 = vpop.f32.mrf.mxu0
    %v703 = vadd.f32 %v430, %v702
    %v704 = vpop.f32.mrf.mxu0
    %v705 = vadd.f32 %v432, %v704
    %v706 = vpop.f32.mrf.mxu0
    %v707 = vadd.f32 %v434, %v706
    %v708 = vpop.f32.mrf.mxu0
    %v709 = vadd.f32 %v436, %v708
    %710 = vmatprep.mubr.bf16.mxu0 0
    %711 = vmatmul.mubr.bf16.gmra.mxu0 %v120
    %v712 = vpop.f32.mrf.mxu0
    %v713 = vadd.f32 %v440, %v712
    %v714 = vpop.f32.mrf.mxu0
    %v715 = vadd.f32 %v442, %v714
    %v716 = vpop.f32.mrf.mxu0
    %v717 = vadd.f32 %v444, %v716
    %v718 = vpop.f32.mrf.mxu0
    %v719 = vadd.f32 %v446, %v718
    %720 = vmatprep.mubr.bf16.mxu0 0
    %721 = vmatmul.mubr.bf16.gmra.mxu0 %v121
    %v722 = vpop.f32.mrf.mxu0
    %v723 = vadd.f32 %v450, %v722
    %v724 = vpop.f32.mrf.mxu0
    %v725 = vadd.f32 %v452, %v724
    %v726 = vpop.f32.mrf.mxu0
    %v727 = vadd.f32 %v454, %v726
    %v728 = vpop.f32.mrf.mxu0
    %v729 = vadd.f32 %v456, %v728
    %730 = vmatprep.mubr.bf16.mxu0 0
    %731 = vmatmul.mubr.bf16.gmra.mxu0 %v122
    %v732 = vpop.f32.mrf.mxu0
    %v733 = vadd.f32 %v460, %v732
    %v734 = vpop.f32.mrf.mxu0
    %v735 = vadd.f32 %v462, %v734
    %v736 = vpop.f32.mrf.mxu0
    %v737 = vadd.f32 %v464, %v736
    %v738 = vpop.f32.mrf.mxu0
    %v739 = vadd.f32 %v466, %v738
    %740 = vmatprep.mubr.bf16.mxu0 0
    %741 = vmatmul.mubr.bf16.gmra.mxu0 %v123
    %v742 = vpop.f32.mrf.mxu0
    %v743 = vadd.f32 %v470, %v742
    %v744 = vpop.f32.mrf.mxu0
    %v745 = vadd.f32 %v472, %v744
    %v746 = vpop.f32.mrf.mxu0
    %v747 = vadd.f32 %v474, %v746
    %v748 = vpop.f32.mrf.mxu0
    %v749 = vadd.f32 %v476, %v748
    %750 = vdwg.mxu0
    %v751 = vld [vmem:[%s0 + $0x2] sm:$0xff]
    %v752 = vld [vmem:[%s0 + $0xa] sm:$0xff]
    %v753 = vld [vmem:[%s0 + $0x12] sm:$0xff]
    %v754 = vld [vmem:[%s0 + $0x1a] sm:$0xff]
    %v755 = vld [vmem:[%s0 + $0x2a] sm:$0xff]
    %v756 = vld [vmem:[%s0 + $0x32] sm:$0xff]
    %v757 = vld [vmem:[%s0 + $0x3a] sm:$0xff]
    %v758 = vld [vmem:[%s0 + $0x42] sm:$0xff]
    %v759 = vld [vmem:[%s0 + $0x52] sm:$0xff]
    %v760 = vld [vmem:[%s0 + $0x5a] sm:$0xff]
    %v761 = vld [vmem:[%s0 + $0x62] sm:$0xff]
    %v762 = vld [vmem:[%s0 + $0x6a] sm:$0xff]
    %v763 = vld [vmem:[%s0 + $0x7a] sm:$0xff]
    %v764 = vld [vmem:[%s0 + $0x82] sm:$0xff]
    %v765 = vld [vmem:[%s0 + $0x8a] sm:$0xff]
    %v766 = vld [vmem:[%s0 + $0x92] sm:$0xff]
    %v767 = vld [vmem:[%s0 + $0xa2] sm:$0xff]
    %v768 = vld [vmem:[%s0 + $0xaa] sm:$0xff]
    %v769 = vld [vmem:[%s0 + $0xb2] sm:$0xff]
    %v770 = vld [vmem:[%s0 + $0xba] sm:$0xff]
    %v771 = vld [vmem:[%s0 + $0xca] sm:$0xff]
    %v772 = vld [vmem:[%s0 + $0xd2] sm:$0xff]
    %v773 = vld [vmem:[%s0 + $0xda] sm:$0xff]
    %v774 = vld [vmem:[%s0 + $0xe2] sm:$0xff]
    %v775 = vld [vmem:[%s0 + $0xf2] sm:$0xff]
    %v776 = vld [vmem:[%s0 + $0xfa] sm:$0xff]
    %v777 = vld [vmem:[%s0 + $0x102] sm:$0xff]
    %v778 = vld [vmem:[%s0 + $0x10a] sm:$0xff]
    %v779 = vld [vmem:[%s0 + $0x11a] sm:$0xff]
    %v780 = vld [vmem:[%s0 + $0x122] sm:$0xff]
    %v781 = vld [vmem:[%s0 + $0x12a] sm:$0xff]
    %v782 = vld [vmem:[%s0 + $0x132] sm:$0xff]
    %v783 = vpack.c.bf16 %v752, %v751
    %v784 = vpack.c.bf16 %v754, %v753
    %v785 = vpack.c.bf16 %v756, %v755
    %v786 = vpack.c.bf16 %v758, %v757
    %v787 = vpack.c.bf16 %v760, %v759
    %v788 = vpack.c.bf16 %v762, %v761
    %v789 = vpack.c.bf16 %v764, %v763
    %v790 = vpack.c.bf16 %v766, %v765
    %v791 = vpack.c.bf16 %v768, %v767
    %v792 = vpack.c.bf16 %v770, %v769
    %v793 = vpack.c.bf16 %v772, %v771
    %v794 = vpack.c.bf16 %v774, %v773
    %v795 = vpack.c.bf16 %v776, %v775
    %v796 = vpack.c.bf16 %v778, %v777
    %v797 = vpack.c.bf16 %v780, %v779
    %v798 = vpack.c.bf16 %v782, %v781
    %s799 = scalar_lea.vmem %s1, 256
    %v800 = vld [vmem:[%s799] sm:$0xff]
    %v801 = vld [vmem:[%s799 + $0x8] sm:$0xff]
    %v802 = vld [vmem:[%s799 + $0x10] sm:$0xff]
    %v803 = vld [vmem:[%s799 + $0x18] sm:$0xff]
    %v804 = vld [vmem:[%s799 + $0x20] sm:$0xff]
    %v805 = vld [vmem:[%s799 + $0x28] sm:$0xff]
    %v806 = vld [vmem:[%s799 + $0x30] sm:$0xff]
    %v807 = vld [vmem:[%s799 + $0x38] sm:$0xff]
    %v808 = vld [vmem:[%s799 + $0x40] sm:$0xff]
    %v809 = vld [vmem:[%s799 + $0x48] sm:$0xff]
    %v810 = vld [vmem:[%s799 + $0x50] sm:$0xff]
    %v811 = vld [vmem:[%s799 + $0x58] sm:$0xff]
    %v812 = vld [vmem:[%s799 + $0x60] sm:$0xff]
    %v813 = vld [vmem:[%s799 + $0x68] sm:$0xff]
    %v814 = vld [vmem:[%s799 + $0x70] sm:$0xff]
    %v815 = vld [vmem:[%s799 + $0x78] sm:$0xff]
    %v832 = vunpack.c.l.b16 %v800
    %v833 = vunpack.c.h.b16 %v800
    %v834 = vunpack.c.l.b16 %v801
    %v835 = vunpack.c.h.b16 %v801
    %v836 = vunpack.c.l.b16 %v802
    %v837 = vunpack.c.h.b16 %v802
    %v838 = vunpack.c.l.b16 %v803
    %v839 = vunpack.c.h.b16 %v803
    %v840 = vunpack.c.l.b16 %v804
    %v841 = vunpack.c.h.b16 %v804
    %v842 = vunpack.c.l.b16 %v805
    %v843 = vunpack.c.h.b16 %v805
    %v844 = vunpack.c.l.b16 %v806
    %v845 = vunpack.c.h.b16 %v806
    %v846 = vunpack.c.l.b16 %v807
    %v847 = vunpack.c.h.b16 %v807
    %v848 = vunpack.c.l.b16 %v808
    %v849 = vunpack.c.h.b16 %v808
    %v850 = vunpack.c.l.b16 %v809
    %v851 = vunpack.c.h.b16 %v809
    %v852 = vunpack.c.l.b16 %v810
    %v853 = vunpack.c.h.b16 %v810
    %v854 = vunpack.c.l.b16 %v811
    %v855 = vunpack.c.h.b16 %v811
    %v856 = vunpack.c.l.b16 %v812
    %v857 = vunpack.c.h.b16 %v812
    %v858 = vunpack.c.l.b16 %v813
    %v859 = vunpack.c.h.b16 %v813
    %v860 = vunpack.c.l.b16 %v814
    %v861 = vunpack.c.h.b16 %v814
    %v862 = vunpack.c.l.b16 %v815
    %v863 = vunpack.c.h.b16 %v815
    %v864 = vpack.c.b16 %v834, %v832
    %v865 = vpack.c.b16 %v835, %v833
    %v866 = vpack.c.b16 %v838, %v836
    %v867 = vpack.c.b16 %v839, %v837
    %v868 = vpack.c.b16 %v842, %v840
    %v869 = vpack.c.b16 %v843, %v841
    %v870 = vpack.c.b16 %v846, %v844
    %v871 = vpack.c.b16 %v847, %v845
    %v872 = vpack.c.b16 %v850, %v848
    %v873 = vpack.c.b16 %v851, %v849
    %v874 = vpack.c.b16 %v854, %v852
    %v875 = vpack.c.b16 %v855, %v853
    %v876 = vpack.c.b16 %v858, %v856
    %v877 = vpack.c.b16 %v859, %v857
    %v878 = vpack.c.b16 %v862, %v860
    %v879 = vpack.c.b16 %v863, %v861
    %896 = vmatprep.subr.bf16.mxu0 %v879
    %897 = vmatpush1.bf16.msra.mxu0 %v878
    %898 = vmatprep.subr.bf16.mxu0 %v877
    %899 = vmatpush1.bf16.msra.mxu0 %v876
    %900 = vmatprep.subr.bf16.mxu0 %v875
    %901 = vmatpush1.bf16.msra.mxu0 %v874
    %902 = vmatprep.subr.bf16.mxu0 %v873
    %903 = vmatpush1.bf16.msra.mxu0 %v872
    %904 = vmatprep.subr.bf16.mxu0 %v871
    %905 = vmatpush1.bf16.msra.mxu0 %v870
    %906 = vmatprep.subr.bf16.mxu0 %v869
    %907 = vmatpush1.bf16.msra.mxu0 %v868
    %908 = vmatprep.subr.bf16.mxu0 %v867
    %909 = vmatpush1.bf16.msra.mxu0 %v866
    %910 = vmatprep.subr.bf16.mxu0 %v865
    %911 = vmatpush1.bf16.msra.mxu0 %v864
    %912 = vmatprep.subr.bf16.mxu0 0
    %913 = vmatpush2.bf16.msra.mxu0 0
    %914 = vmatprep.subr.bf16.mxu0 0
    %915 = vmatpush2.bf16.msra.mxu0 0
    %916 = vmatprep.subr.bf16.mxu0 0
    %917 = vmatpush2.bf16.msra.mxu0 0
    %918 = vmatprep.subr.bf16.mxu0 0
    %919 = vmatpush2.bf16.msra.mxu0 0
    %920 = vmatprep.subr.bf16.mxu0 0
    %921 = vmatpush2.bf16.msra.mxu0 0
    %922 = vmatprep.subr.bf16.mxu0 0
    %923 = vmatpush2.bf16.msra.mxu0 0
    %924 = vmatprep.subr.bf16.mxu0 0
    %925 = vmatpush2.bf16.msra.mxu0 0
    %926 = vmatprep.subr.bf16.mxu0 0
    %927 = vmatpush2.bf16.msra.mxu0 0
    %928 = vmatprep.mubr.bf16.mxu0 0
    %929 = vmatmul.mubr.bf16.gmra.mxu0 %v783
    %v930 = vpop.f32.mrf.mxu0
    %v931 = vadd.f32 0.0, %v930
    %v932 = vpop.f32.mrf.mxu0
    %v933 = vadd.f32 0.0, %v932
    %v934 = vpop.f32.mrf.mxu0
    %v935 = vadd.f32 0.0, %v934
    %v936 = vpop.f32.mrf.mxu0
    %v937 = vadd.f32 0.0, %v936
    %938 = vmatprep.mubr.bf16.mxu0 0
    %939 = vmatmul.mubr.bf16.gmra.mxu0 %v784
    %v940 = vpop.f32.mrf.mxu0
    %v941 = vadd.f32 0.0, %v940
    %v942 = vpop.f32.mrf.mxu0
    %v943 = vadd.f32 0.0, %v942
    %v944 = vpop.f32.mrf.mxu0
    %v945 = vadd.f32 0.0, %v944
    %v946 = vpop.f32.mrf.mxu0
    %v947 = vadd.f32 0.0, %v946
    %948 = vmatprep.mubr.bf16.mxu0 0
    %949 = vmatmul.mubr.bf16.gmra.mxu0 %v785
    %v950 = vpop.f32.mrf.mxu0
    %v951 = vadd.f32 0.0, %v950
    %v952 = vpop.f32.mrf.mxu0
    %v953 = vadd.f32 0.0, %v952
    %v954 = vpop.f32.mrf.mxu0
    %v955 = vadd.f32 0.0, %v954
    %v956 = vpop.f32.mrf.mxu0
    %v957 = vadd.f32 0.0, %v956
    %958 = vmatprep.mubr.bf16.mxu0 0
    %959 = vmatmul.mubr.bf16.gmra.mxu0 %v786
    %v960 = vpop.f32.mrf.mxu0
    %v961 = vadd.f32 0.0, %v960
    %v962 = vpop.f32.mrf.mxu0
    %v963 = vadd.f32 0.0, %v962
    %v964 = vpop.f32.mrf.mxu0
    %v965 = vadd.f32 0.0, %v964
    %v966 = vpop.f32.mrf.mxu0
    %v967 = vadd.f32 0.0, %v966
    %968 = vmatprep.mubr.bf16.mxu0 0
    %969 = vmatmul.mubr.bf16.gmra.mxu0 %v787
    %v970 = vpop.f32.mrf.mxu0
    %v971 = vadd.f32 0.0, %v970
    %v972 = vpop.f32.mrf.mxu0
    %v973 = vadd.f32 0.0, %v972
    %v974 = vpop.f32.mrf.mxu0
    %v975 = vadd.f32 0.0, %v974
    %v976 = vpop.f32.mrf.mxu0
    %v977 = vadd.f32 0.0, %v976
    %978 = vmatprep.mubr.bf16.mxu0 0
    %979 = vmatmul.mubr.bf16.gmra.mxu0 %v788
    %v980 = vpop.f32.mrf.mxu0
    %v981 = vadd.f32 0.0, %v980
    %v982 = vpop.f32.mrf.mxu0
    %v983 = vadd.f32 0.0, %v982
    %v984 = vpop.f32.mrf.mxu0
    %v985 = vadd.f32 0.0, %v984
    %v986 = vpop.f32.mrf.mxu0
    %v987 = vadd.f32 0.0, %v986
    %988 = vmatprep.mubr.bf16.mxu0 0
    %989 = vmatmul.mubr.bf16.gmra.mxu0 %v789
    %v990 = vpop.f32.mrf.mxu0
    %v991 = vadd.f32 0.0, %v990
    %v992 = vpop.f32.mrf.mxu0
    %v993 = vadd.f32 0.0, %v992
    %v994 = vpop.f32.mrf.mxu0
    %v995 = vadd.f32 0.0, %v994
    %v996 = vpop.f32.mrf.mxu0
    %v997 = vadd.f32 0.0, %v996
    %998 = vmatprep.mubr.bf16.mxu0 0
    %999 = vmatmul.mubr.bf16.gmra.mxu0 %v790
    %v1000 = vpop.f32.mrf.mxu0
    %v1001 = vadd.f32 0.0, %v1000
    %v1002 = vpop.f32.mrf.mxu0
    %v1003 = vadd.f32 0.0, %v1002
    %v1004 = vpop.f32.mrf.mxu0
    %v1005 = vadd.f32 0.0, %v1004
    %v1006 = vpop.f32.mrf.mxu0
    %v1007 = vadd.f32 0.0, %v1006
    %1008 = vmatprep.mubr.bf16.mxu0 0
    %1009 = vmatmul.mubr.bf16.gmra.mxu0 %v791
    %v1010 = vpop.f32.mrf.mxu0
    %v1011 = vadd.f32 0.0, %v1010
    %v1012 = vpop.f32.mrf.mxu0
    %v1013 = vadd.f32 0.0, %v1012
    %v1014 = vpop.f32.mrf.mxu0
    %v1015 = vadd.f32 0.0, %v1014
    %v1016 = vpop.f32.mrf.mxu0
    %v1017 = vadd.f32 0.0, %v1016
    %1018 = vmatprep.mubr.bf16.mxu0 0
    %1019 = vmatmul.mubr.bf16.gmra.mxu0 %v792
    %v1020 = vpop.f32.mrf.mxu0
    %v1021 = vadd.f32 0.0, %v1020
    %v1022 = vpop.f32.mrf.mxu0
    %v1023 = vadd.f32 0.0, %v1022
    %v1024 = vpop.f32.mrf.mxu0
    %v1025 = vadd.f32 0.0, %v1024
    %v1026 = vpop.f32.mrf.mxu0
    %v1027 = vadd.f32 0.0, %v1026
    %1028 = vmatprep.mubr.bf16.mxu0 0
    %1029 = vmatmul.mubr.bf16.gmra.mxu0 %v793
    %v1030 = vpop.f32.mrf.mxu0
    %v1031 = vadd.f32 0.0, %v1030
    %v1032 = vpop.f32.mrf.mxu0
    %v1033 = vadd.f32 0.0, %v1032
    %v1034 = vpop.f32.mrf.mxu0
    %v1035 = vadd.f32 0.0, %v1034
    %v1036 = vpop.f32.mrf.mxu0
    %v1037 = vadd.f32 0.0, %v1036
    %1038 = vmatprep.mubr.bf16.mxu0 0
    %1039 = vmatmul.mubr.bf16.gmra.mxu0 %v794
    %v1040 = vpop.f32.mrf.mxu0
    %v1041 = vadd.f32 0.0, %v1040
    %v1042 = vpop.f32.mrf.mxu0
    %v1043 = vadd.f32 0.0, %v1042
    %v1044 = vpop.f32.mrf.mxu0
    %v1045 = vadd.f32 0.0, %v1044
    %v1046 = vpop.f32.mrf.mxu0
    %v1047 = vadd.f32 0.0, %v1046
    %1048 = vmatprep.mubr.bf16.mxu0 0
    %1049 = vmatmul.mubr.bf16.gmra.mxu0 %v795
    %v1050 = vpop.f32.mrf.mxu0
    %v1051 = vadd.f32 0.0, %v1050
    %v1052 = vpop.f32.mrf.mxu0
    %v1053 = vadd.f32 0.0, %v1052
    %v1054 = vpop.f32.mrf.mxu0
    %v1055 = vadd.f32 0.0, %v1054
    %v1056 = vpop.f32.mrf.mxu0
    %v1057 = vadd.f32 0.0, %v1056
    %1058 = vmatprep.mubr.bf16.mxu0 0
    %1059 = vmatmul.mubr.bf16.gmra.mxu0 %v796
    %v1060 = vpop.f32.mrf.mxu0
    %v1061 = vadd.f32 0.0, %v1060
    %v1062 = vpop.f32.mrf.mxu0
    %v1063 = vadd.f32 0.0, %v1062
    %v1064 = vpop.f32.mrf.mxu0
    %v1065 = vadd.f32 0.0, %v1064
    %v1066 = vpop.f32.mrf.mxu0
    %v1067 = vadd.f32 0.0, %v1066
    %1068 = vmatprep.mubr.bf16.mxu0 0
    %1069 = vmatmul.mubr.bf16.gmra.mxu0 %v797
    %v1070 = vpop.f32.mrf.mxu0
    %v1071 = vadd.f32 0.0, %v1070
    %v1072 = vpop.f32.mrf.mxu0
    %v1073 = vadd.f32 0.0, %v1072
    %v1074 = vpop.f32.mrf.mxu0
    %v1075 = vadd.f32 0.0, %v1074
    %v1076 = vpop.f32.mrf.mxu0
    %v1077 = vadd.f32 0.0, %v1076
    %1078 = vmatprep.mubr.bf16.mxu0 0
    %1079 = vmatmul.mubr.bf16.gmra.mxu0 %v798
    %v1080 = vpop.f32.mrf.mxu0
    %v1081 = vadd.f32 0.0, %v1080
    %v1082 = vpop.f32.mrf.mxu0
    %v1083 = vadd.f32 0.0, %v1082
    %v1084 = vpop.f32.mrf.mxu0
    %v1085 = vadd.f32 0.0, %v1084
    %v1086 = vpop.f32.mrf.mxu0
    %v1087 = vadd.f32 0.0, %v1086
    %1088 = vdwg.mxu0
    %v1089 = vadd.f32 %v593, %v931
    %v1090 = vadd.f32 %v595, %v933
    %v1091 = vadd.f32 %v597, %v935
    %v1092 = vadd.f32 %v599, %v937
    %v1093 = vadd.f32 %v603, %v941
    %v1094 = vadd.f32 %v605, %v943
    %v1095 = vadd.f32 %v607, %v945
    %v1096 = vadd.f32 %v609, %v947
    %v1097 = vadd.f32 %v613, %v951
    %v1098 = vadd.f32 %v615, %v953
    %v1099 = vadd.f32 %v617, %v955
    %v1100 = vadd.f32 %v619, %v957
    %v1101 = vadd.f32 %v623, %v961
    %v1102 = vadd.f32 %v625, %v963
    %v1103 = vadd.f32 %v627, %v965
    %v1104 = vadd.f32 %v629, %v967
    %v1105 = vadd.f32 %v633, %v971
    %v1106 = vadd.f32 %v635, %v973
    %v1107 = vadd.f32 %v637, %v975
    %v1108 = vadd.f32 %v639, %v977
    %v1109 = vadd.f32 %v643, %v981
    %v1110 = vadd.f32 %v645, %v983
    %v1111 = vadd.f32 %v647, %v985
    %v1112 = vadd.f32 %v649, %v987
    %v1113 = vadd.f32 %v653, %v991
    %v1114 = vadd.f32 %v655, %v993
    %v1115 = vadd.f32 %v657, %v995
    %v1116 = vadd.f32 %v659, %v997
    %v1117 = vadd.f32 %v663, %v1001
    %v1118 = vadd.f32 %v665, %v1003
    %v1119 = vadd.f32 %v667, %v1005
    %v1120 = vadd.f32 %v669, %v1007
    %v1121 = vadd.f32 %v673, %v1011
    %v1122 = vadd.f32 %v675, %v1013
    %v1123 = vadd.f32 %v677, %v1015
    %v1124 = vadd.f32 %v679, %v1017
    %v1125 = vadd.f32 %v683, %v1021
    %v1126 = vadd.f32 %v685, %v1023
    %v1127 = vadd.f32 %v687, %v1025
    %v1128 = vadd.f32 %v689, %v1027
    %v1129 = vadd.f32 %v693, %v1031
    %v1130 = vadd.f32 %v695, %v1033
    %v1131 = vadd.f32 %v697, %v1035
    %v1132 = vadd.f32 %v699, %v1037
    %v1133 = vadd.f32 %v703, %v1041
    %v1134 = vadd.f32 %v705, %v1043
    %v1135 = vadd.f32 %v707, %v1045
    %v1136 = vadd.f32 %v709, %v1047
    %v1137 = vadd.f32 %v713, %v1051
    %v1138 = vadd.f32 %v715, %v1053
    %v1139 = vadd.f32 %v717, %v1055
    %v1140 = vadd.f32 %v719, %v1057
    %v1141 = vadd.f32 %v723, %v1061
    %v1142 = vadd.f32 %v725, %v1063
    %v1143 = vadd.f32 %v727, %v1065
    %v1144 = vadd.f32 %v729, %v1067
    %v1145 = vadd.f32 %v733, %v1071
    %v1146 = vadd.f32 %v735, %v1073
    %v1147 = vadd.f32 %v737, %v1075
    %v1148 = vadd.f32 %v739, %v1077
    %v1149 = vadd.f32 %v743, %v1081
    %v1150 = vadd.f32 %v745, %v1083
    %v1151 = vadd.f32 %v747, %v1085
    %v1152 = vadd.f32 %v749, %v1087
    %v1153 = vld [vmem:[%s0 + $0x3] sm:$0xff]
    %v1154 = vld [vmem:[%s0 + $0xb] sm:$0xff]
    %v1155 = vld [vmem:[%s0 + $0x13] sm:$0xff]
    %v1156 = vld [vmem:[%s0 + $0x1b] sm:$0xff]
    %v1157 = vld [vmem:[%s0 + $0x2b] sm:$0xff]
    %v1158 = vld [vmem:[%s0 + $0x33] sm:$0xff]
    %v1159 = vld [vmem:[%s0 + $0x3b] sm:$0xff]
    %v1160 = vld [vmem:[%s0 + $0x43] sm:$0xff]
    %v1161 = vld [vmem:[%s0 + $0x53] sm:$0xff]
    %v1162 = vld [vmem:[%s0 + $0x5b] sm:$0xff]
    %v1163 = vld [vmem:[%s0 + $0x63] sm:$0xff]
    %v1164 = vld [vmem:[%s0 + $0x6b] sm:$0xff]
    %v1165 = vld [vmem:[%s0 + $0x7b] sm:$0xff]
    %v1166 = vld [vmem:[%s0 + $0x83] sm:$0xff]
    %v1167 = vld [vmem:[%s0 + $0x8b] sm:$0xff]
    %v1168 = vld [vmem:[%s0 + $0x93] sm:$0xff]
    %v1169 = vld [vmem:[%s0 + $0xa3] sm:$0xff]
    %v1170 = vld [vmem:[%s0 + $0xab] sm:$0xff]
    %v1171 = vld [vmem:[%s0 + $0xb3] sm:$0xff]
    %v1172 = vld [vmem:[%s0 + $0xbb] sm:$0xff]
    %v1173 = vld [vmem:[%s0 + $0xcb] sm:$0xff]
    %v1174 = vld [vmem:[%s0 + $0xd3] sm:$0xff]
    %v1175 = vld [vmem:[%s0 + $0xdb] sm:$0xff]
    %v1176 = vld [vmem:[%s0 + $0xe3] sm:$0xff]
    %v1177 = vld [vmem:[%s0 + $0xf3] sm:$0xff]
    %v1178 = vld [vmem:[%s0 + $0xfb] sm:$0xff]
    %v1179 = vld [vmem:[%s0 + $0x103] sm:$0xff]
    %v1180 = vld [vmem:[%s0 + $0x10b] sm:$0xff]
    %v1181 = vld [vmem:[%s0 + $0x11b] sm:$0xff]
    %v1182 = vld [vmem:[%s0 + $0x123] sm:$0xff]
    %v1183 = vld [vmem:[%s0 + $0x12b] sm:$0xff]
    %v1184 = vld [vmem:[%s0 + $0x133] sm:$0xff]
    %v1185 = vpack.c.bf16 %v1154, %v1153
    %v1186 = vpack.c.bf16 %v1156, %v1155
    %v1187 = vpack.c.bf16 %v1158, %v1157
    %v1188 = vpack.c.bf16 %v1160, %v1159
    %v1189 = vpack.c.bf16 %v1162, %v1161
    %v1190 = vpack.c.bf16 %v1164, %v1163
    %v1191 = vpack.c.bf16 %v1166, %v1165
    %v1192 = vpack.c.bf16 %v1168, %v1167
    %v1193 = vpack.c.bf16 %v1170, %v1169
    %v1194 = vpack.c.bf16 %v1172, %v1171
    %v1195 = vpack.c.bf16 %v1174, %v1173
    %v1196 = vpack.c.bf16 %v1176, %v1175
    %v1197 = vpack.c.bf16 %v1178, %v1177
    %v1198 = vpack.c.bf16 %v1180, %v1179
    %v1199 = vpack.c.bf16 %v1182, %v1181
    %v1200 = vpack.c.bf16 %v1184, %v1183
    %s1201 = scalar_lea.vmem %s1, 384
    %v1202 = vld [vmem:[%s1201] sm:$0xff]
    %v1203 = vld [vmem:[%s1201 + $0x8] sm:$0xff]
    %v1204 = vld [vmem:[%s1201 + $0x10] sm:$0xff]
    %v1205 = vld [vmem:[%s1201 + $0x18] sm:$0xff]
    %v1206 = vld [vmem:[%s1201 + $0x20] sm:$0xff]
    %v1207 = vld [vmem:[%s1201 + $0x28] sm:$0xff]
    %v1208 = vld [vmem:[%s1201 + $0x30] sm:$0xff]
    %v1209 = vld [vmem:[%s1201 + $0x38] sm:$0xff]
    %v1210 = vld [vmem:[%s1201 + $0x40] sm:$0xff]
    %v1211 = vld [vmem:[%s1201 + $0x48] sm:$0xff]
    %v1212 = vld [vmem:[%s1201 + $0x50] sm:$0xff]
    %v1213 = vld [vmem:[%s1201 + $0x58] sm:$0xff]
    %v1214 = vld [vmem:[%s1201 + $0x60] sm:$0xff]
    %v1215 = vld [vmem:[%s1201 + $0x68] sm:$0xff]
    %v1216 = vld [vmem:[%s1201 + $0x70] sm:$0xff]
    %v1217 = vld [vmem:[%s1201 + $0x78] sm:$0xff]
    %v1234 = vunpack.c.l.b16 %v1202
    %v1235 = vunpack.c.h.b16 %v1202
    %v1236 = vunpack.c.l.b16 %v1203
    %v1237 = vunpack.c.h.b16 %v1203
    %v1238 = vunpack.c.l.b16 %v1204
    %v1239 = vunpack.c.h.b16 %v1204
    %v1240 = vunpack.c.l.b16 %v1205
    %v1241 = vunpack.c.h.b16 %v1205
    %v1242 = vunpack.c.l.b16 %v1206
    %v1243 = vunpack.c.h.b16 %v1206
    %v1244 = vunpack.c.l.b16 %v1207
    %v1245 = vunpack.c.h.b16 %v1207
    %v1246 = vunpack.c.l.b16 %v1208
    %v1247 = vunpack.c.h.b16 %v1208
    %v1248 = vunpack.c.l.b16 %v1209
    %v1249 = vunpack.c.h.b16 %v1209
    %v1250 = vunpack.c.l.b16 %v1210
    %v1251 = vunpack.c.h.b16 %v1210
    %v1252 = vunpack.c.l.b16 %v1211
    %v1253 = vunpack.c.h.b16 %v1211
    %v1254 = vunpack.c.l.b16 %v1212
    %v1255 = vunpack.c.h.b16 %v1212
    %v1256 = vunpack.c.l.b16 %v1213
    %v1257 = vunpack.c.h.b16 %v1213
    %v1258 = vunpack.c.l.b16 %v1214
    %v1259 = vunpack.c.h.b16 %v1214
    %v1260 = vunpack.c.l.b16 %v1215
    %v1261 = vunpack.c.h.b16 %v1215
    %v1262 = vunpack.c.l.b16 %v1216
    %v1263 = vunpack.c.h.b16 %v1216
    %v1264 = vunpack.c.l.b16 %v1217
    %v1265 = vunpack.c.h.b16 %v1217
    %v1266 = vpack.c.b16 %v1236, %v1234
    %v1267 = vpack.c.b16 %v1237, %v1235
    %v1268 = vpack.c.b16 %v1240, %v1238
    %v1269 = vpack.c.b16 %v1241, %v1239
    %v1270 = vpack.c.b16 %v1244, %v1242
    %v1271 = vpack.c.b16 %v1245, %v1243
    %v1272 = vpack.c.b16 %v1248, %v1246
    %v1273 = vpack.c.b16 %v1249, %v1247
    %v1274 = vpack.c.b16 %v1252, %v1250
    %v1275 = vpack.c.b16 %v1253, %v1251
    %v1276 = vpack.c.b16 %v1256, %v1254
    %v1277 = vpack.c.b16 %v1257, %v1255
    %v1278 = vpack.c.b16 %v1260, %v1258
    %v1279 = vpack.c.b16 %v1261, %v1259
    %v1280 = vpack.c.b16 %v1264, %v1262
    %v1281 = vpack.c.b16 %v1265, %v1263
    %1298 = vmatprep.subr.bf16.mxu0 %v1281
    %1299 = vmatpush1.bf16.msra.mxu0 %v1280
    %1300 = vmatprep.subr.bf16.mxu0 %v1279
    %1301 = vmatpush1.bf16.msra.mxu0 %v1278
    %1302 = vmatprep.subr.bf16.mxu0 %v1277
    %1303 = vmatpush1.bf16.msra.mxu0 %v1276
    %1304 = vmatprep.subr.bf16.mxu0 %v1275
    %1305 = vmatpush1.bf16.msra.mxu0 %v1274
    %1306 = vmatprep.subr.bf16.mxu0 %v1273
    %1307 = vmatpush1.bf16.msra.mxu0 %v1272
    %1308 = vmatprep.subr.bf16.mxu0 %v1271
    %1309 = vmatpush1.bf16.msra.mxu0 %v1270
    %1310 = vmatprep.subr.bf16.mxu0 %v1269
    %1311 = vmatpush1.bf16.msra.mxu0 %v1268
    %1312 = vmatprep.subr.bf16.mxu0 %v1267
    %1313 = vmatpush1.bf16.msra.mxu0 %v1266
    %1314 = vmatprep.subr.bf16.mxu0 0
    %1315 = vmatpush2.bf16.msra.mxu0 0
    %1316 = vmatprep.subr.bf16.mxu0 0
    %1317 = vmatpush2.bf16.msra.mxu0 0
    %1318 = vmatprep.subr.bf16.mxu0 0
    %1319 = vmatpush2.bf16.msra.mxu0 0
    %1320 = vmatprep.subr.bf16.mxu0 0
    %1321 = vmatpush2.bf16.msra.mxu0 0
    %1322 = vmatprep.subr.bf16.mxu0 0
    %1323 = vmatpush2.bf16.msra.mxu0 0
    %1324 = vmatprep.subr.bf16.mxu0 0
    %1325 = vmatpush2.bf16.msra.mxu0 0
    %1326 = vmatprep.subr.bf16.mxu0 0
    %1327 = vmatpush2.bf16.msra.mxu0 0
    %1328 = vmatprep.subr.bf16.mxu0 0
    %1329 = vmatpush2.bf16.msra.mxu0 0
    %1330 = vmatprep.mubr.bf16.mxu0 0
    %1331 = vmatmul.mubr.bf16.gmra.mxu0 %v1185
    %v1332 = vpop.f32.mrf.mxu0
    %v1333 = vadd.f32 0.0, %v1332
    %v1334 = vpop.f32.mrf.mxu0
    %v1335 = vadd.f32 0.0, %v1334
    %v1336 = vpop.f32.mrf.mxu0
    %v1337 = vadd.f32 0.0, %v1336
    %v1338 = vpop.f32.mrf.mxu0
    %v1339 = vadd.f32 0.0, %v1338
    %1340 = vmatprep.mubr.bf16.mxu0 0
    %1341 = vmatmul.mubr.bf16.gmra.mxu0 %v1186
    %v1342 = vpop.f32.mrf.mxu0
    %v1343 = vadd.f32 0.0, %v1342
    %v1344 = vpop.f32.mrf.mxu0
    %v1345 = vadd.f32 0.0, %v1344
    %v1346 = vpop.f32.mrf.mxu0
    %v1347 = vadd.f32 0.0, %v1346
    %v1348 = vpop.f32.mrf.mxu0
    %v1349 = vadd.f32 0.0, %v1348
    %1350 = vmatprep.mubr.bf16.mxu0 0
    %1351 = vmatmul.mubr.bf16.gmra.mxu0 %v1187
    %v1352 = vpop.f32.mrf.mxu0
    %v1353 = vadd.f32 0.0, %v1352
    %v1354 = vpop.f32.mrf.mxu0
    %v1355 = vadd.f32 0.0, %v1354
    %v1356 = vpop.f32.mrf.mxu0
    %v1357 = vadd.f32 0.0, %v1356
    %v1358 = vpop.f32.mrf.mxu0
    %v1359 = vadd.f32 0.0, %v1358
    %1360 = vmatprep.mubr.bf16.mxu0 0
    %1361 = vmatmul.mubr.bf16.gmra.mxu0 %v1188
    %v1362 = vpop.f32.mrf.mxu0
    %v1363 = vadd.f32 0.0, %v1362
    %v1364 = vpop.f32.mrf.mxu0
    %v1365 = vadd.f32 0.0, %v1364
    %v1366 = vpop.f32.mrf.mxu0
    %v1367 = vadd.f32 0.0, %v1366
    %v1368 = vpop.f32.mrf.mxu0
    %v1369 = vadd.f32 0.0, %v1368
    %1370 = vmatprep.mubr.bf16.mxu0 0
    %1371 = vmatmul.mubr.bf16.gmra.mxu0 %v1189
    %v1372 = vpop.f32.mrf.mxu0
    %v1373 = vadd.f32 0.0, %v1372
    %v1374 = vpop.f32.mrf.mxu0
    %v1375 = vadd.f32 0.0, %v1374
    %v1376 = vpop.f32.mrf.mxu0
    %v1377 = vadd.f32 0.0, %v1376
    %v1378 = vpop.f32.mrf.mxu0
    %v1379 = vadd.f32 0.0, %v1378
    %1380 = vmatprep.mubr.bf16.mxu0 0
    %1381 = vmatmul.mubr.bf16.gmra.mxu0 %v1190
    %v1382 = vpop.f32.mrf.mxu0
    %v1383 = vadd.f32 0.0, %v1382
    %v1384 = vpop.f32.mrf.mxu0
    %v1385 = vadd.f32 0.0, %v1384
    %v1386 = vpop.f32.mrf.mxu0
    %v1387 = vadd.f32 0.0, %v1386
    %v1388 = vpop.f32.mrf.mxu0
    %v1389 = vadd.f32 0.0, %v1388
    %1390 = vmatprep.mubr.bf16.mxu0 0
    %1391 = vmatmul.mubr.bf16.gmra.mxu0 %v1191
    %v1392 = vpop.f32.mrf.mxu0
    %v1393 = vadd.f32 0.0, %v1392
    %v1394 = vpop.f32.mrf.mxu0
    %v1395 = vadd.f32 0.0, %v1394
    %v1396 = vpop.f32.mrf.mxu0
    %v1397 = vadd.f32 0.0, %v1396
    %v1398 = vpop.f32.mrf.mxu0
    %v1399 = vadd.f32 0.0, %v1398
    %1400 = vmatprep.mubr.bf16.mxu0 0
    %1401 = vmatmul.mubr.bf16.gmra.mxu0 %v1192
    %v1402 = vpop.f32.mrf.mxu0
    %v1403 = vadd.f32 0.0, %v1402
    %v1404 = vpop.f32.mrf.mxu0
    %v1405 = vadd.f32 0.0, %v1404
    %v1406 = vpop.f32.mrf.mxu0
    %v1407 = vadd.f32 0.0, %v1406
    %v1408 = vpop.f32.mrf.mxu0
    %v1409 = vadd.f32 0.0, %v1408
    %1410 = vmatprep.mubr.bf16.mxu0 0
    %1411 = vmatmul.mubr.bf16.gmra.mxu0 %v1193
    %v1412 = vpop.f32.mrf.mxu0
    %v1413 = vadd.f32 0.0, %v1412
    %v1414 = vpop.f32.mrf.mxu0
    %v1415 = vadd.f32 0.0, %v1414
    %v1416 = vpop.f32.mrf.mxu0
    %v1417 = vadd.f32 0.0, %v1416
    %v1418 = vpop.f32.mrf.mxu0
    %v1419 = vadd.f32 0.0, %v1418
    %1420 = vmatprep.mubr.bf16.mxu0 0
    %1421 = vmatmul.mubr.bf16.gmra.mxu0 %v1194
    %v1422 = vpop.f32.mrf.mxu0
    %v1423 = vadd.f32 0.0, %v1422
    %v1424 = vpop.f32.mrf.mxu0
    %v1425 = vadd.f32 0.0, %v1424
    %v1426 = vpop.f32.mrf.mxu0
    %v1427 = vadd.f32 0.0, %v1426
    %v1428 = vpop.f32.mrf.mxu0
    %v1429 = vadd.f32 0.0, %v1428
    %1430 = vmatprep.mubr.bf16.mxu0 0
    %1431 = vmatmul.mubr.bf16.gmra.mxu0 %v1195
    %v1432 = vpop.f32.mrf.mxu0
    %v1433 = vadd.f32 0.0, %v1432
    %v1434 = vpop.f32.mrf.mxu0
    %v1435 = vadd.f32 0.0, %v1434
    %v1436 = vpop.f32.mrf.mxu0
    %v1437 = vadd.f32 0.0, %v1436
    %v1438 = vpop.f32.mrf.mxu0
    %v1439 = vadd.f32 0.0, %v1438
    %1440 = vmatprep.mubr.bf16.mxu0 0
    %1441 = vmatmul.mubr.bf16.gmra.mxu0 %v1196
    %v1442 = vpop.f32.mrf.mxu0
    %v1443 = vadd.f32 0.0, %v1442
    %v1444 = vpop.f32.mrf.mxu0
    %v1445 = vadd.f32 0.0, %v1444
    %v1446 = vpop.f32.mrf.mxu0
    %v1447 = vadd.f32 0.0, %v1446
    %v1448 = vpop.f32.mrf.mxu0
    %v1449 = vadd.f32 0.0, %v1448
    %1450 = vmatprep.mubr.bf16.mxu0 0
    %1451 = vmatmul.mubr.bf16.gmra.mxu0 %v1197
    %v1452 = vpop.f32.mrf.mxu0
    %v1453 = vadd.f32 0.0, %v1452
    %v1454 = vpop.f32.mrf.mxu0
    %v1455 = vadd.f32 0.0, %v1454
    %v1456 = vpop.f32.mrf.mxu0
    %v1457 = vadd.f32 0.0, %v1456
    %v1458 = vpop.f32.mrf.mxu0
    %v1459 = vadd.f32 0.0, %v1458
    %1460 = vmatprep.mubr.bf16.mxu0 0
    %1461 = vmatmul.mubr.bf16.gmra.mxu0 %v1198
    %v1462 = vpop.f32.mrf.mxu0
    %v1463 = vadd.f32 0.0, %v1462
    %v1464 = vpop.f32.mrf.mxu0
    %v1465 = vadd.f32 0.0, %v1464
    %v1466 = vpop.f32.mrf.mxu0
    %v1467 = vadd.f32 0.0, %v1466
    %v1468 = vpop.f32.mrf.mxu0
    %v1469 = vadd.f32 0.0, %v1468
    %1470 = vmatprep.mubr.bf16.mxu0 0
    %1471 = vmatmul.mubr.bf16.gmra.mxu0 %v1199
    %v1472 = vpop.f32.mrf.mxu0
    %v1473 = vadd.f32 0.0, %v1472
    %v1474 = vpop.f32.mrf.mxu0
    %v1475 = vadd.f32 0.0, %v1474
    %v1476 = vpop.f32.mrf.mxu0
    %v1477 = vadd.f32 0.0, %v1476
    %v1478 = vpop.f32.mrf.mxu0
    %v1479 = vadd.f32 0.0, %v1478
    %1480 = vmatprep.mubr.bf16.mxu0 0
    %1481 = vmatmul.mubr.bf16.gmra.mxu0 %v1200
    %v1482 = vpop.f32.mrf.mxu0
    %v1483 = vadd.f32 0.0, %v1482
    %v1484 = vpop.f32.mrf.mxu0
    %v1485 = vadd.f32 0.0, %v1484
    %v1486 = vpop.f32.mrf.mxu0
    %v1487 = vadd.f32 0.0, %v1486
    %v1488 = vpop.f32.mrf.mxu0
    %v1489 = vadd.f32 0.0, %v1488
    %1490 = vdwg.mxu0
    %v1491 = vadd.f32 %v1089, %v1333
    %v1492 = vadd.f32 %v1090, %v1335
    %v1493 = vadd.f32 %v1091, %v1337
    %v1494 = vadd.f32 %v1092, %v1339
    %v1495 = vadd.f32 %v1093, %v1343
    %v1496 = vadd.f32 %v1094, %v1345
    %v1497 = vadd.f32 %v1095, %v1347
    %v1498 = vadd.f32 %v1096, %v1349
    %v1499 = vadd.f32 %v1097, %v1353
    %v1500 = vadd.f32 %v1098, %v1355
    %v1501 = vadd.f32 %v1099, %v1357
    %v1502 = vadd.f32 %v1100, %v1359
    %v1503 = vadd.f32 %v1101, %v1363
    %v1504 = vadd.f32 %v1102, %v1365
    %v1505 = vadd.f32 %v1103, %v1367
    %v1506 = vadd.f32 %v1104, %v1369
    %v1507 = vadd.f32 %v1105, %v1373
    %v1508 = vadd.f32 %v1106, %v1375
    %v1509 = vadd.f32 %v1107, %v1377
    %v1510 = vadd.f32 %v1108, %v1379
    %v1511 = vadd.f32 %v1109, %v1383
    %v1512 = vadd.f32 %v1110, %v1385
    %v1513 = vadd.f32 %v1111, %v1387
    %v1514 = vadd.f32 %v1112, %v1389
    %v1515 = vadd.f32 %v1113, %v1393
    %v1516 = vadd.f32 %v1114, %v1395
    %v1517 = vadd.f32 %v1115, %v1397
    %v1518 = vadd.f32 %v1116, %v1399
    %v1519 = vadd.f32 %v1117, %v1403
    %v1520 = vadd.f32 %v1118, %v1405
    %v1521 = vadd.f32 %v1119, %v1407
    %v1522 = vadd.f32 %v1120, %v1409
    %v1523 = vadd.f32 %v1121, %v1413
    %v1524 = vadd.f32 %v1122, %v1415
    %v1525 = vadd.f32 %v1123, %v1417
    %v1526 = vadd.f32 %v1124, %v1419
    %v1527 = vadd.f32 %v1125, %v1423
    %v1528 = vadd.f32 %v1126, %v1425
    %v1529 = vadd.f32 %v1127, %v1427
    %v1530 = vadd.f32 %v1128, %v1429
    %v1531 = vadd.f32 %v1129, %v1433
    %v1532 = vadd.f32 %v1130, %v1435
    %v1533 = vadd.f32 %v1131, %v1437
    %v1534 = vadd.f32 %v1132, %v1439
    %v1535 = vadd.f32 %v1133, %v1443
    %v1536 = vadd.f32 %v1134, %v1445
    %v1537 = vadd.f32 %v1135, %v1447
    %v1538 = vadd.f32 %v1136, %v1449
    %v1539 = vadd.f32 %v1137, %v1453
    %v1540 = vadd.f32 %v1138, %v1455
    %v1541 = vadd.f32 %v1139, %v1457
    %v1542 = vadd.f32 %v1140, %v1459
    %v1543 = vadd.f32 %v1141, %v1463
    %v1544 = vadd.f32 %v1142, %v1465
    %v1545 = vadd.f32 %v1143, %v1467
    %v1546 = vadd.f32 %v1144, %v1469
    %v1547 = vadd.f32 %v1145, %v1473
    %v1548 = vadd.f32 %v1146, %v1475
    %v1549 = vadd.f32 %v1147, %v1477
    %v1550 = vadd.f32 %v1148, %v1479
    %v1551 = vadd.f32 %v1149, %v1483
    %v1552 = vadd.f32 %v1150, %v1485
    %v1553 = vadd.f32 %v1151, %v1487
    %v1554 = vadd.f32 %v1152, %v1489
    %v1555 = vld [vmem:[%s0 + $0x4] sm:$0xff]
    %v1556 = vld [vmem:[%s0 + $0xc] sm:$0xff]
    %v1557 = vld [vmem:[%s0 + $0x14] sm:$0xff]
    %v1558 = vld [vmem:[%s0 + $0x1c] sm:$0xff]
    %v1559 = vld [vmem:[%s0 + $0x2c] sm:$0xff]
    %v1560 = vld [vmem:[%s0 + $0x34] sm:$0xff]
    %v1561 = vld [vmem:[%s0 + $0x3c] sm:$0xff]
    %v1562 = vld [vmem:[%s0 + $0x44] sm:$0xff]
    %v1563 = vld [vmem:[%s0 + $0x54] sm:$0xff]
    %v1564 = vld [vmem:[%s0 + $0x5c] sm:$0xff]
    %v1565 = vld [vmem:[%s0 + $0x64] sm:$0xff]
    %v1566 = vld [vmem:[%s0 + $0x6c] sm:$0xff]
    %v1567 = vld [vmem:[%s0 + $0x7c] sm:$0xff]
    %v1568 = vld [vmem:[%s0 + $0x84] sm:$0xff]
    %v1569 = vld [vmem:[%s0 + $0x8c] sm:$0xff]
    %v1570 = vld [vmem:[%s0 + $0x94] sm:$0xff]
    %v1571 = vld [vmem:[%s0 + $0xa4] sm:$0xff]
    %v1572 = vld [vmem:[%s0 + $0xac] sm:$0xff]
    %v1573 = vld [vmem:[%s0 + $0xb4] sm:$0xff]
    %v1574 = vld [vmem:[%s0 + $0xbc] sm:$0xff]
    %v1575 = vld [vmem:[%s0 + $0xcc] sm:$0xff]
    %v1576 = vld [vmem:[%s0 + $0xd4] sm:$0xff]
    %v1577 = vld [vmem:[%s0 + $0xdc] sm:$0xff]
    %v1578 = vld [vmem:[%s0 + $0xe4] sm:$0xff]
    %v1579 = vld [vmem:[%s0 + $0xf4] sm:$0xff]
    %v1580 = vld [vmem:[%s0 + $0xfc] sm:$0xff]
    %v1581 = vld [vmem:[%s0 + $0x104] sm:$0xff]
    %v1582 = vld [vmem:[%s0 + $0x10c] sm:$0xff]
    %v1583 = vld [vmem:[%s0 + $0x11c] sm:$0xff]
    %v1584 = vld [vmem:[%s0 + $0x124] sm:$0xff]
    %v1585 = vld [vmem:[%s0 + $0x12c] sm:$0xff]
    %v1586 = vld [vmem:[%s0 + $0x134] sm:$0xff]
    %v1587 = vpack.c.bf16 %v1556, %v1555
    %v1588 = vpack.c.bf16 %v1558, %v1557
    %v1589 = vpack.c.bf16 %v1560, %v1559
    %v1590 = vpack.c.bf16 %v1562, %v1561
    %v1591 = vpack.c.bf16 %v1564, %v1563
    %v1592 = vpack.c.bf16 %v1566, %v1565
    %v1593 = vpack.c.bf16 %v1568, %v1567
    %v1594 = vpack.c.bf16 %v1570, %v1569
    %v1595 = vpack.c.bf16 %v1572, %v1571
    %v1596 = vpack.c.bf16 %v1574, %v1573
    %v1597 = vpack.c.bf16 %v1576, %v1575
    %v1598 = vpack.c.bf16 %v1578, %v1577
    %v1599 = vpack.c.bf16 %v1580, %v1579
    %v1600 = vpack.c.bf16 %v1582, %v1581
    %v1601 = vpack.c.bf16 %v1584, %v1583
    %v1602 = vpack.c.bf16 %v1586, %v1585
    %s1603 = scalar_lea.vmem %s1, 512
    %v1604 = vld [vmem:[%s1603] sm:$0xff]
    %v1605 = vld [vmem:[%s1603 + $0x8] sm:$0xff]
    %v1606 = vld [vmem:[%s1603 + $0x10] sm:$0xff]
    %v1607 = vld [vmem:[%s1603 + $0x18] sm:$0xff]
    %v1608 = vld [vmem:[%s1603 + $0x20] sm:$0xff]
    %v1609 = vld [vmem:[%s1603 + $0x28] sm:$0xff]
    %v1610 = vld [vmem:[%s1603 + $0x30] sm:$0xff]
    %v1611 = vld [vmem:[%s1603 + $0x38] sm:$0xff]
    %v1612 = vld [vmem:[%s1603 + $0x40] sm:$0xff]
    %v1613 = vld [vmem:[%s1603 + $0x48] sm:$0xff]
    %v1614 = vld [vmem:[%s1603 + $0x50] sm:$0xff]
    %v1615 = vld [vmem:[%s1603 + $0x58] sm:$0xff]
    %v1616 = vld [vmem:[%s1603 + $0x60] sm:$0xff]
    %v1617 = vld [vmem:[%s1603 + $0x68] sm:$0xff]
    %v1618 = vld [vmem:[%s1603 + $0x70] sm:$0xff]
    %v1619 = vld [vmem:[%s1603 + $0x78] sm:$0xff]
    %v1636 = vunpack.c.l.b16 %v1604
    %v1637 = vunpack.c.h.b16 %v1604
    %v1638 = vunpack.c.l.b16 %v1605
    %v1639 = vunpack.c.h.b16 %v1605
    %v1640 = vunpack.c.l.b16 %v1606
    %v1641 = vunpack.c.h.b16 %v1606
    %v1642 = vunpack.c.l.b16 %v1607
    %v1643 = vunpack.c.h.b16 %v1607
    %v1644 = vunpack.c.l.b16 %v1608
    %v1645 = vunpack.c.h.b16 %v1608
    %v1646 = vunpack.c.l.b16 %v1609
    %v1647 = vunpack.c.h.b16 %v1609
    %v1648 = vunpack.c.l.b16 %v1610
    %v1649 = vunpack.c.h.b16 %v1610
    %v1650 = vunpack.c.l.b16 %v1611
    %v1651 = vunpack.c.h.b16 %v1611
    %v1652 = vunpack.c.l.b16 %v1612
    %v1653 = vunpack.c.h.b16 %v1612
    %v1654 = vunpack.c.l.b16 %v1613
    %v1655 = vunpack.c.h.b16 %v1613
    %v1656 = vunpack.c.l.b16 %v1614
    %v1657 = vunpack.c.h.b16 %v1614
    %v1658 = vunpack.c.l.b16 %v1615
    %v1659 = vunpack.c.h.b16 %v1615
    %v1660 = vunpack.c.l.b16 %v1616
    %v1661 = vunpack.c.h.b16 %v1616
    %v1662 = vunpack.c.l.b16 %v1617
    %v1663 = vunpack.c.h.b16 %v1617
    %v1664 = vunpack.c.l.b16 %v1618
    %v1665 = vunpack.c.h.b16 %v1618
    %v1666 = vunpack.c.l.b16 %v1619
    %v1667 = vunpack.c.h.b16 %v1619
    %v1668 = vpack.c.b16 %v1638, %v1636
    %v1669 = vpack.c.b16 %v1639, %v1637
    %v1670 = vpack.c.b16 %v1642, %v1640
    %v1671 = vpack.c.b16 %v1643, %v1641
    %v1672 = vpack.c.b16 %v1646, %v1644
    %v1673 = vpack.c.b16 %v1647, %v1645
    %v1674 = vpack.c.b16 %v1650, %v1648
    %v1675 = vpack.c.b16 %v1651, %v1649
    %v1676 = vpack.c.b16 %v1654, %v1652
    %v1677 = vpack.c.b16 %v1655, %v1653
    %v1678 = vpack.c.b16 %v1658, %v1656
    %v1679 = vpack.c.b16 %v1659, %v1657
    %v1680 = vpack.c.b16 %v1662, %v1660
    %v1681 = vpack.c.b16 %v1663, %v1661
    %v1682 = vpack.c.b16 %v1666, %v1664
    %v1683 = vpack.c.b16 %v1667, %v1665
    %1700 = vmatprep.subr.bf16.mxu0 %v1683
    %1701 = vmatpush1.bf16.msra.mxu0 %v1682
    %1702 = vmatprep.subr.bf16.mxu0 %v1681
    %1703 = vmatpush1.bf16.msra.mxu0 %v1680
    %1704 = vmatprep.subr.bf16.mxu0 %v1679
    %1705 = vmatpush1.bf16.msra.mxu0 %v1678
    %1706 = vmatprep.subr.bf16.mxu0 %v1677
    %1707 = vmatpush1.bf16.msra.mxu0 %v1676
    %1708 = vmatprep.subr.bf16.mxu0 %v1675
    %1709 = vmatpush1.bf16.msra.mxu0 %v1674
    %1710 = vmatprep.subr.bf16.mxu0 %v1673
    %1711 = vmatpush1.bf16.msra.mxu0 %v1672
    %1712 = vmatprep.subr.bf16.mxu0 %v1671
    %1713 = vmatpush1.bf16.msra.mxu0 %v1670
    %1714 = vmatprep.subr.bf16.mxu0 %v1669
    %1715 = vmatpush1.bf16.msra.mxu0 %v1668
    %1716 = vmatprep.subr.bf16.mxu0 0
    %1717 = vmatpush2.bf16.msra.mxu0 0
    %1718 = vmatprep.subr.bf16.mxu0 0
    %1719 = vmatpush2.bf16.msra.mxu0 0
    %1720 = vmatprep.subr.bf16.mxu0 0
    %1721 = vmatpush2.bf16.msra.mxu0 0
    %1722 = vmatprep.subr.bf16.mxu0 0
    %1723 = vmatpush2.bf16.msra.mxu0 0
    %1724 = vmatprep.subr.bf16.mxu0 0
    %1725 = vmatpush2.bf16.msra.mxu0 0
    %1726 = vmatprep.subr.bf16.mxu0 0
    %1727 = vmatpush2.bf16.msra.mxu0 0
    %1728 = vmatprep.subr.bf16.mxu0 0
    %1729 = vmatpush2.bf16.msra.mxu0 0
    %1730 = vmatprep.subr.bf16.mxu0 0
    %1731 = vmatpush2.bf16.msra.mxu0 0
    %1732 = vmatprep.mubr.bf16.mxu0 0
    %1733 = vmatmul.mubr.bf16.gmra.mxu0 %v1587
    %v1734 = vpop.f32.mrf.mxu0
    %v1735 = vadd.f32 0.0, %v1734
    %v1736 = vpop.f32.mrf.mxu0
    %v1737 = vadd.f32 0.0, %v1736
    %v1738 = vpop.f32.mrf.mxu0
    %v1739 = vadd.f32 0.0, %v1738
    %v1740 = vpop.f32.mrf.mxu0
    %v1741 = vadd.f32 0.0, %v1740
    %1742 = vmatprep.mubr.bf16.mxu0 0
    %1743 = vmatmul.mubr.bf16.gmra.mxu0 %v1588
    %v1744 = vpop.f32.mrf.mxu0
    %v1745 = vadd.f32 0.0, %v1744
    %v1746 = vpop.f32.mrf.mxu0
    %v1747 = vadd.f32 0.0, %v1746
    %v1748 = vpop.f32.mrf.mxu0
    %v1749 = vadd.f32 0.0, %v1748
    %v1750 = vpop.f32.mrf.mxu0
    %v1751 = vadd.f32 0.0, %v1750
    %1752 = vmatprep.mubr.bf16.mxu0 0
    %1753 = vmatmul.mubr.bf16.gmra.mxu0 %v1589
    %v1754 = vpop.f32.mrf.mxu0
    %v1755 = vadd.f32 0.0, %v1754
    %v1756 = vpop.f32.mrf.mxu0
    %v1757 = vadd.f32 0.0, %v1756
    %v1758 = vpop.f32.mrf.mxu0
    %v1759 = vadd.f32 0.0, %v1758
    %v1760 = vpop.f32.mrf.mxu0
    %v1761 = vadd.f32 0.0, %v1760
    %1762 = vmatprep.mubr.bf16.mxu0 0
    %1763 = vmatmul.mubr.bf16.gmra.mxu0 %v1590
    %v1764 = vpop.f32.mrf.mxu0
    %v1765 = vadd.f32 0.0, %v1764
    %v1766 = vpop.f32.mrf.mxu0
    %v1767 = vadd.f32 0.0, %v1766
    %v1768 = vpop.f32.mrf.mxu0
    %v1769 = vadd.f32 0.0, %v1768
    %v1770 = vpop.f32.mrf.mxu0
    %v1771 = vadd.f32 0.0, %v1770
    %1772 = vmatprep.mubr.bf16.mxu0 0
    %1773 = vmatmul.mubr.bf16.gmra.mxu0 %v1591
    %v1774 = vpop.f32.mrf.mxu0
    %v1775 = vadd.f32 0.0, %v1774
    %v1776 = vpop.f32.mrf.mxu0
    %v1777 = vadd.f32 0.0, %v1776
    %v1778 = vpop.f32.mrf.mxu0
    %v1779 = vadd.f32 0.0, %v1778
    %v1780 = vpop.f32.mrf.mxu0
    %v1781 = vadd.f32 0.0, %v1780
    %1782 = vmatprep.mubr.bf16.mxu0 0
    %1783 = vmatmul.mubr.bf16.gmra.mxu0 %v1592
    %v1784 = vpop.f32.mrf.mxu0
    %v1785 = vadd.f32 0.0, %v1784
    %v1786 = vpop.f32.mrf.mxu0
    %v1787 = vadd.f32 0.0, %v1786
    %v1788 = vpop.f32.mrf.mxu0
    %v1789 = vadd.f32 0.0, %v1788
    %v1790 = vpop.f32.mrf.mxu0
    %v1791 = vadd.f32 0.0, %v1790
    %1792 = vmatprep.mubr.bf16.mxu0 0
    %1793 = vmatmul.mubr.bf16.gmra.mxu0 %v1593
    %v1794 = vpop.f32.mrf.mxu0
    %v1795 = vadd.f32 0.0, %v1794
    %v1796 = vpop.f32.mrf.mxu0
    %v1797 = vadd.f32 0.0, %v1796
    %v1798 = vpop.f32.mrf.mxu0
    %v1799 = vadd.f32 0.0, %v1798
    %v1800 = vpop.f32.mrf.mxu0
    %v1801 = vadd.f32 0.0, %v1800
    %1802 = vmatprep.mubr.bf16.mxu0 0
    %1803 = vmatmul.mubr.bf16.gmra.mxu0 %v1594
    %v1804 = vpop.f32.mrf.mxu0
    %v1805 = vadd.f32 0.0, %v1804
    %v1806 = vpop.f32.mrf.mxu0
    %v1807 = vadd.f32 0.0, %v1806
    %v1808 = vpop.f32.mrf.mxu0
    %v1809 = vadd.f32 0.0, %v1808
    %v1810 = vpop.f32.mrf.mxu0
    %v1811 = vadd.f32 0.0, %v1810
    %1812 = vmatprep.mubr.bf16.mxu0 0
    %1813 = vmatmul.mubr.bf16.gmra.mxu0 %v1595
    %v1814 = vpop.f32.mrf.mxu0
    %v1815 = vadd.f32 0.0, %v1814
    %v1816 = vpop.f32.mrf.mxu0
    %v1817 = vadd.f32 0.0, %v1816
    %v1818 = vpop.f32.mrf.mxu0
    %v1819 = vadd.f32 0.0, %v1818
    %v1820 = vpop.f32.mrf.mxu0
    %v1821 = vadd.f32 0.0, %v1820
    %1822 = vmatprep.mubr.bf16.mxu0 0
    %1823 = vmatmul.mubr.bf16.gmra.mxu0 %v1596
    %v1824 = vpop.f32.mrf.mxu0
    %v1825 = vadd.f32 0.0, %v1824
    %v1826 = vpop.f32.mrf.mxu0
    %v1827 = vadd.f32 0.0, %v1826
    %v1828 = vpop.f32.mrf.mxu0
    %v1829 = vadd.f32 0.0, %v1828
    %v1830 = vpop.f32.mrf.mxu0
    %v1831 = vadd.f32 0.0, %v1830
    %1832 = vmatprep.mubr.bf16.mxu0 0
    %1833 = vmatmul.mubr.bf16.gmra.mxu0 %v1597
    %v1834 = vpop.f32.mrf.mxu0
    %v1835 = vadd.f32 0.0, %v1834
    %v1836 = vpop.f32.mrf.mxu0
    %v1837 = vadd.f32 0.0, %v1836
    %v1838 = vpop.f32.mrf.mxu0
    %v1839 = vadd.f32 0.0, %v1838
    %v1840 = vpop.f32.mrf.mxu0
    %v1841 = vadd.f32 0.0, %v1840
    %1842 = vmatprep.mubr.bf16.mxu0 0
    %1843 = vmatmul.mubr.bf16.gmra.mxu0 %v1598
    %v1844 = vpop.f32.mrf.mxu0
    %v1845 = vadd.f32 0.0, %v1844
    %v1846 = vpop.f32.mrf.mxu0
    %v1847 = vadd.f32 0.0, %v1846
    %v1848 = vpop.f32.mrf.mxu0
    %v1849 = vadd.f32 0.0, %v1848
    %v1850 = vpop.f32.mrf.mxu0
    %v1851 = vadd.f32 0.0, %v1850
    %1852 = vmatprep.mubr.bf16.mxu0 0
    %1853 = vmatmul.mubr.bf16.gmra.mxu0 %v1599
    %v1854 = vpop.f32.mrf.mxu0
    %v1855 = vadd.f32 0.0, %v1854
    %v1856 = vpop.f32.mrf.mxu0
    %v1857 = vadd.f32 0.0, %v1856
    %v1858 = vpop.f32.mrf.mxu0
    %v1859 = vadd.f32 0.0, %v1858
    %v1860 = vpop.f32.mrf.mxu0
    %v1861 = vadd.f32 0.0, %v1860
    %1862 = vmatprep.mubr.bf16.mxu0 0
    %1863 = vmatmul.mubr.bf16.gmra.mxu0 %v1600
    %v1864 = vpop.f32.mrf.mxu0
    %v1865 = vadd.f32 0.0, %v1864
    %v1866 = vpop.f32.mrf.mxu0
    %v1867 = vadd.f32 0.0, %v1866
    %v1868 = vpop.f32.mrf.mxu0
    %v1869 = vadd.f32 0.0, %v1868
    %v1870 = vpop.f32.mrf.mxu0
    %v1871 = vadd.f32 0.0, %v1870
    %1872 = vmatprep.mubr.bf16.mxu0 0
    %1873 = vmatmul.mubr.bf16.gmra.mxu0 %v1601
    %v1874 = vpop.f32.mrf.mxu0
    %v1875 = vadd.f32 0.0, %v1874
    %v1876 = vpop.f32.mrf.mxu0
    %v1877 = vadd.f32 0.0, %v1876
    %v1878 = vpop.f32.mrf.mxu0
    %v1879 = vadd.f32 0.0, %v1878
    %v1880 = vpop.f32.mrf.mxu0
    %v1881 = vadd.f32 0.0, %v1880
    %1882 = vmatprep.mubr.bf16.mxu0 0
    %1883 = vmatmul.mubr.bf16.gmra.mxu0 %v1602
    %v1884 = vpop.f32.mrf.mxu0
    %v1885 = vadd.f32 0.0, %v1884
    %v1886 = vpop.f32.mrf.mxu0
    %v1887 = vadd.f32 0.0, %v1886
    %v1888 = vpop.f32.mrf.mxu0
    %v1889 = vadd.f32 0.0, %v1888
    %v1890 = vpop.f32.mrf.mxu0
    %v1891 = vadd.f32 0.0, %v1890
    %1892 = vdwg.mxu0
    %v1893 = vadd.f32 %v1491, %v1735
    %v1894 = vadd.f32 %v1492, %v1737
    %v1895 = vadd.f32 %v1493, %v1739
    %v1896 = vadd.f32 %v1494, %v1741
    %v1897 = vadd.f32 %v1495, %v1745
    %v1898 = vadd.f32 %v1496, %v1747
    %v1899 = vadd.f32 %v1497, %v1749
    %v1900 = vadd.f32 %v1498, %v1751
    %v1901 = vadd.f32 %v1499, %v1755
    %v1902 = vadd.f32 %v1500, %v1757
    %v1903 = vadd.f32 %v1501, %v1759
    %v1904 = vadd.f32 %v1502, %v1761
    %v1905 = vadd.f32 %v1503, %v1765
    %v1906 = vadd.f32 %v1504, %v1767
    %v1907 = vadd.f32 %v1505, %v1769
    %v1908 = vadd.f32 %v1506, %v1771
    %v1909 = vadd.f32 %v1507, %v1775
    %v1910 = vadd.f32 %v1508, %v1777
    %v1911 = vadd.f32 %v1509, %v1779
    %v1912 = vadd.f32 %v1510, %v1781
    %v1913 = vadd.f32 %v1511, %v1785
    %v1914 = vadd.f32 %v1512, %v1787
    %v1915 = vadd.f32 %v1513, %v1789
    %v1916 = vadd.f32 %v1514, %v1791
    %v1917 = vadd.f32 %v1515, %v1795
    %v1918 = vadd.f32 %v1516, %v1797
    %v1919 = vadd.f32 %v1517, %v1799
    %v1920 = vadd.f32 %v1518, %v1801
    %v1921 = vadd.f32 %v1519, %v1805
    %v1922 = vadd.f32 %v1520, %v1807
    %v1923 = vadd.f32 %v1521, %v1809
    %v1924 = vadd.f32 %v1522, %v1811
    %v1925 = vadd.f32 %v1523, %v1815
    %v1926 = vadd.f32 %v1524, %v1817
    %v1927 = vadd.f32 %v1525, %v1819
    %v1928 = vadd.f32 %v1526, %v1821
    %v1929 = vadd.f32 %v1527, %v1825
    %v1930 = vadd.f32 %v1528, %v1827
    %v1931 = vadd.f32 %v1529, %v1829
    %v1932 = vadd.f32 %v1530, %v1831
    %v1933 = vadd.f32 %v1531, %v1835
    %v1934 = vadd.f32 %v1532, %v1837
    %v1935 = vadd.f32 %v1533, %v1839
    %v1936 = vadd.f32 %v1534, %v1841
    %v1937 = vadd.f32 %v1535, %v1845
    %v1938 = vadd.f32 %v1536, %v1847
    %v1939 = vadd.f32 %v1537, %v1849
    %v1940 = vadd.f32 %v1538, %v1851
    %v1941 = vadd.f32 %v1539, %v1855
    %v1942 = vadd.f32 %v1540, %v1857
    %v1943 = vadd.f32 %v1541, %v1859
    %v1944 = vadd.f32 %v1542, %v1861
    %v1945 = vadd.f32 %v1543, %v1865
    %v1946 = vadd.f32 %v1544, %v1867
    %v1947 = vadd.f32 %v1545, %v1869
    %v1948 = vadd.f32 %v1546, %v1871
    %v1949 = vadd.f32 %v1547, %v1875
    %v1950 = vadd.f32 %v1548, %v1877
    %v1951 = vadd.f32 %v1549, %v1879
    %v1952 = vadd.f32 %v1550, %v1881
    %v1953 = vadd.f32 %v1551, %v1885
    %v1954 = vadd.f32 %v1552, %v1887
    %v1955 = vadd.f32 %v1553, %v1889
    %v1956 = vadd.f32 %v1554, %v1891
    %v1957 = vmax.f32 %v1893, %v1894
    %v1958 = vmax.f32 %v1895, %v1896
    %v1959 = vmax.f32 %v1897, %v1898
    %v1960 = vmax.f32 %v1899, %v1900
    %v1961 = vmax.f32 %v1901, %v1902
    %v1962 = vmax.f32 %v1903, %v1904
    %v1963 = vmax.f32 %v1905, %v1906
    %v1964 = vmax.f32 %v1907, %v1908
    %v1965 = vmax.f32 %v1909, %v1910
    %v1966 = vmax.f32 %v1911, %v1912
    %v1967 = vmax.f32 %v1913, %v1914
    %v1968 = vmax.f32 %v1915, %v1916
    %v1969 = vmax.f32 %v1917, %v1918
    %v1970 = vmax.f32 %v1919, %v1920
    %v1971 = vmax.f32 %v1921, %v1922
    %v1972 = vmax.f32 %v1923, %v1924
    %v1973 = vmax.f32 %v1925, %v1926
    %v1974 = vmax.f32 %v1927, %v1928
    %v1975 = vmax.f32 %v1929, %v1930
    %v1976 = vmax.f32 %v1931, %v1932
    %v1977 = vmax.f32 %v1933, %v1934
    %v1978 = vmax.f32 %v1935, %v1936
    %v1979 = vmax.f32 %v1937, %v1938
    %v1980 = vmax.f32 %v1939, %v1940
    %v1981 = vmax.f32 %v1941, %v1942
    %v1982 = vmax.f32 %v1943, %v1944
    %v1983 = vmax.f32 %v1945, %v1946
    %v1984 = vmax.f32 %v1947, %v1948
    %v1985 = vmax.f32 %v1949, %v1950
    %v1986 = vmax.f32 %v1951, %v1952
    %v1987 = vmax.f32 %v1953, %v1954
    %v1988 = vmax.f32 %v1955, %v1956
    %1989 = vst [vmem:[#allocation2] sm:$0xff] %v1957
    %1990 = vst [vmem:[#allocation2 + $0x8] sm:$0xff] %v1958
    %1991 = vst [vmem:[#allocation2 + $0x10] sm:$0xff] %v1959
    %1992 = vst [vmem:[#allocation2 + $0x18] sm:$0xff] %v1960
    %1993 = vst [vmem:[#allocation2 + $0x20] sm:$0xff] %v1961
    %1994 = vst [vmem:[#allocation2 + $0x28] sm:$0xff] %v1962
    %1995 = vst [vmem:[#allocation2 + $0x30] sm:$0xff] %v1963
    %1996 = vst [vmem:[#allocation2 + $0x38] sm:$0xff] %v1964
    %1997 = vst [vmem:[#allocation2 + $0x40] sm:$0xff] %v1965
    %1998 = vst [vmem:[#allocation2 + $0x48] sm:$0xff] %v1966
    %1999 = vst [vmem:[#allocation2 + $0x50] sm:$0xff] %v1967
    %2000 = vst [vmem:[#allocation2 + $0x58] sm:$0xff] %v1968
    %2001 = vst [vmem:[#allocation2 + $0x60] sm:$0xff] %v1969
    %2002 = vst [vmem:[#allocation2 + $0x68] sm:$0xff] %v1970
    %2003 = vst [vmem:[#allocation2 + $0x70] sm:$0xff] %v1971
    %2004 = vst [vmem:[#allocation2 + $0x78] sm:$0xff] %v1972
    %2005 = vst [vmem:[#allocation2 + $0x80] sm:$0xff] %v1973
    %2006 = vst [vmem:[#allocation2 + $0x88] sm:$0xff] %v1974
    %2007 = vst [vmem:[#allocation2 + $0x90] sm:$0xff] %v1975
    %2008 = vst [vmem:[#allocation2 + $0x98] sm:$0xff] %v1976
    %2009 = vst [vmem:[#allocation2 + $0xa0] sm:$0xff] %v1977
    %2010 = vst [vmem:[#allocation2 + $0xa8] sm:$0xff] %v1978
    %2011 = vst [vmem:[#allocation2 + $0xb0] sm:$0xff] %v1979
    %2012 = vst [vmem:[#allocation2 + $0xb8] sm:$0xff] %v1980
    %2013 = vst [vmem:[#allocation2 + $0xc0] sm:$0xff] %v1981
    %2014 = vst [vmem:[#allocation2 + $0xc8] sm:$0xff] %v1982
    %2015 = vst [vmem:[#allocation2 + $0xd0] sm:$0xff] %v1983
    %2016 = vst [vmem:[#allocation2 + $0xd8] sm:$0xff] %v1984
    %2017 = vst [vmem:[#allocation2 + $0xe0] sm:$0xff] %v1985
    %2018 = vst [vmem:[#allocation2 + $0xe8] sm:$0xff] %v1986
    %2019 = vst [vmem:[#allocation2 + $0xf0] sm:$0xff] %v1987
    %2020 = vst [vmem:[#allocation2 + $0xf8] sm:$0xff] %v1988
    %v2021 = vld [vmem:[#allocation2] ss:$2 sm:$0xff]
    %s2022 = scalar_lea.vmem [#allocation2], 16
    %v2023 = vld [vmem:[%s2022] ss:$2 sm:$0xff]
    %s2024 = scalar_lea.vmem [#allocation2], 32
    %v2025 = vld [vmem:[%s2024] ss:$2 sm:$0xff]
    %s2026 = scalar_lea.vmem [#allocation2], 48
    %v2027 = vld [vmem:[%s2026] ss:$2 sm:$0xff]
    %s2028 = scalar_lea.vmem [#allocation2], 64
    %v2029 = vld [vmem:[%s2028] ss:$2 sm:$0xff]
    %s2030 = scalar_lea.vmem [#allocation2], 80
    %v2031 = vld [vmem:[%s2030] ss:$2 sm:$0xff]
    %s2032 = scalar_lea.vmem [#allocation2], 96
    %v2033 = vld [vmem:[%s2032] ss:$2 sm:$0xff]
    %s2034 = scalar_lea.vmem [#allocation2], 112
    %v2035 = vld [vmem:[%s2034] ss:$2 sm:$0xff]
    %s2036 = scalar_lea.vmem [#allocation2], 128
    %v2037 = vld [vmem:[%s2036] ss:$2 sm:$0xff]
    %s2038 = scalar_lea.vmem [#allocation2], 144
    %v2039 = vld [vmem:[%s2038] ss:$2 sm:$0xff]
    %s2040 = scalar_lea.vmem [#allocation2], 160
    %v2041 = vld [vmem:[%s2040] ss:$2 sm:$0xff]
    %s2042 = scalar_lea.vmem [#allocation2], 176
    %v2043 = vld [vmem:[%s2042] ss:$2 sm:$0xff]
    %s2044 = scalar_lea.vmem [#allocation2], 192
    %v2045 = vld [vmem:[%s2044] ss:$2 sm:$0xff]
    %s2046 = scalar_lea.vmem [#allocation2], 208
    %v2047 = vld [vmem:[%s2046] ss:$2 sm:$0xff]
    %s2048 = scalar_lea.vmem [#allocation2], 224
    %v2049 = vld [vmem:[%s2048] ss:$2 sm:$0xff]
    %s2050 = scalar_lea.vmem [#allocation2], 240
    %v2051 = vld [vmem:[%s2050] ss:$2 sm:$0xff]
    %s2052 = scalar_lea.vmem [#allocation2], 1
    %v2053 = vld [vmem:[%s2052] ss:$2 sm:$0xff]
    %s2054 = scalar_lea.vmem [#allocation2], 17
    %v2055 = vld [vmem:[%s2054] ss:$2 sm:$0xff]
    %s2056 = scalar_lea.vmem [#allocation2], 33
    %v2057 = vld [vmem:[%s2056] ss:$2 sm:$0xff]
    %s2058 = scalar_lea.vmem [#allocation2], 49
    %v2059 = vld [vmem:[%s2058] ss:$2 sm:$0xff]
    %s2060 = scalar_lea.vmem [#allocation2], 65
    %v2061 = vld [vmem:[%s2060] ss:$2 sm:$0xff]
    %s2062 = scalar_lea.vmem [#allocation2], 81
    %v2063 = vld [vmem:[%s2062] ss:$2 sm:$0xff]
    %s2064 = scalar_lea.vmem [#allocation2], 97
    %v2065 = vld [vmem:[%s2064] ss:$2 sm:$0xff]
    %s2066 = scalar_lea.vmem [#allocation2], 113
    %v2067 = vld [vmem:[%s2066] ss:$2 sm:$0xff]
    %s2068 = scalar_lea.vmem [#allocation2], 129
    %v2069 = vld [vmem:[%s2068] ss:$2 sm:$0xff]
    %s2070 = scalar_lea.vmem [#allocation2], 145
    %v2071 = vld [vmem:[%s2070] ss:$2 sm:$0xff]
    %s2072 = scalar_lea.vmem [#allocation2], 161
    %v2073 = vld [vmem:[%s2072] ss:$2 sm:$0xff]
    %s2074 = scalar_lea.vmem [#allocation2], 177
    %v2075 = vld [vmem:[%s2074] ss:$2 sm:$0xff]
    %s2076 = scalar_lea.vmem [#allocation2], 193
    %v2077 = vld [vmem:[%s2076] ss:$2 sm:$0xff]
    %s2078 = scalar_lea.vmem [#allocation2], 209
    %v2079 = vld [vmem:[%s2078] ss:$2 sm:$0xff]
    %s2080 = scalar_lea.vmem [#allocation2], 225
    %v2081 = vld [vmem:[%s2080] ss:$2 sm:$0xff]
    %s2082 = scalar_lea.vmem [#allocation2], 241
    %v2083 = vld [vmem:[%s2082] ss:$2 sm:$0xff]
    %v2084 = vmax.f32 %v2021, %v2053
    %v2085 = vmax.f32 %v2023, %v2055
    %v2086 = vmax.f32 %v2025, %v2057
    %v2087 = vmax.f32 %v2027, %v2059
    %v2088 = vmax.f32 %v2029, %v2061
    %v2089 = vmax.f32 %v2031, %v2063
    %v2090 = vmax.f32 %v2033, %v2065
    %v2091 = vmax.f32 %v2035, %v2067
    %v2092 = vmax.f32 %v2037, %v2069
    %v2093 = vmax.f32 %v2039, %v2071
    %v2094 = vmax.f32 %v2041, %v2073
    %v2095 = vmax.f32 %v2043, %v2075
    %v2096 = vmax.f32 %v2045, %v2077
    %v2097 = vmax.f32 %v2047, %v2079
    %v2098 = vmax.f32 %v2049, %v2081
    %v2099 = vmax.f32 %v2051, %v2083
    %v2100 = vld [vmem:[%s2] sm:$0x1]
    %v2102 = vlaneseq
    %v2103 = vshrl.u32 %v2102, 7
    %v2104 = vsub.s32 0, %v2103
    %v2105 = vrot.slane %v2100, %v2104
    %v2107 = vadd.f32 %v2084, %v2105
    %v2108 = vadd.f32 %v2085, %v2105
    %v2109 = vadd.f32 %v2086, %v2105
    %v2110 = vadd.f32 %v2087, %v2105
    %v2111 = vadd.f32 %v2088, %v2105
    %v2112 = vadd.f32 %v2089, %v2105
    %v2113 = vadd.f32 %v2090, %v2105
    %v2114 = vadd.f32 %v2091, %v2105
    %v2115 = vadd.f32 %v2092, %v2105
    %v2116 = vadd.f32 %v2093, %v2105
    %v2117 = vadd.f32 %v2094, %v2105
    %v2118 = vadd.f32 %v2095, %v2105
    %v2119 = vadd.f32 %v2096, %v2105
    %v2120 = vadd.f32 %v2097, %v2105
    %v2121 = vadd.f32 %v2098, %v2105
    %v2122 = vadd.f32 %v2099, %v2105
    %v2123 = vmax.f32 %v2107, 0.0
    %v2124 = vmax.f32 %v2108, 0.0
    %v2125 = vmax.f32 %v2109, 0.0
    %v2126 = vmax.f32 %v2110, 0.0
    %v2127 = vmax.f32 %v2111, 0.0
    %v2128 = vmax.f32 %v2112, 0.0
    %v2129 = vmax.f32 %v2113, 0.0
    %v2130 = vmax.f32 %v2114, 0.0
    %v2131 = vmax.f32 %v2115, 0.0
    %v2132 = vmax.f32 %v2116, 0.0
    %v2133 = vmax.f32 %v2117, 0.0
    %v2134 = vmax.f32 %v2118, 0.0
    %v2135 = vmax.f32 %v2119, 0.0
    %v2136 = vmax.f32 %v2120, 0.0
    %v2137 = vmax.f32 %v2121, 0.0
    %v2138 = vmax.f32 %v2122, 0.0
    %2139 = vst [vmem:[#allocation3] sm:$0xff] %v2123
    %2140 = vst [vmem:[#allocation3 + $0x8] sm:$0xff] %v2124
    %2141 = vst [vmem:[#allocation3 + $0x18] sm:$0xff] %v2125
    %2142 = vst [vmem:[#allocation3 + $0x20] sm:$0xff] %v2126
    %2143 = vst [vmem:[#allocation3 + $0x30] sm:$0xff] %v2127
    %2144 = vst [vmem:[#allocation3 + $0x38] sm:$0xff] %v2128
    %2145 = vst [vmem:[#allocation3 + $0x48] sm:$0xff] %v2129
    %2146 = vst [vmem:[#allocation3 + $0x50] sm:$0xff] %v2130
    %2147 = vst [vmem:[#allocation3 + $0x60] sm:$0xff] %v2131
    %2148 = vst [vmem:[#allocation3 + $0x68] sm:$0xff] %v2132
    %2149 = vst [vmem:[#allocation3 + $0x78] sm:$0xff] %v2133
    %2150 = vst [vmem:[#allocation3 + $0x80] sm:$0xff] %v2134
    %2151 = vst [vmem:[#allocation3 + $0x90] sm:$0xff] %v2135
    %2152 = vst [vmem:[#allocation3 + $0x98] sm:$0xff] %v2136
    %2153 = vst [vmem:[#allocation3 + $0xa8] sm:$0xff] %v2137
    %2154 = vst [vmem:[#allocation3 + $0xb0] sm:$0xff] %v2138
    %2155 = vst [vmem:[#allocation3 + $0x10] sm:$0xff] 0.0
    %2156 = vst [vmem:[#allocation3 + $0x28] sm:$0xff] 0.0
    %2157 = vst [vmem:[#allocation3 + $0x40] sm:$0xff] 0.0
    %2158 = vst [vmem:[#allocation3 + $0x58] sm:$0xff] 0.0
    %2159 = vst [vmem:[#allocation3 + $0x70] sm:$0xff] 0.0
    %2160 = vst [vmem:[#allocation3 + $0x88] sm:$0xff] 0.0
    %2161 = vst [vmem:[#allocation3 + $0xa0] sm:$0xff] 0.0
    %2162 = vst [vmem:[#allocation3 + $0xb8] sm:$0xff] 0.0
    %v2163 = vld [vmem:[#allocation3] sm:$0xff]
    %v2164 = vld [vmem:[#allocation3 + $0x8] sm:$0xff]
    %v2165 = vld [vmem:[#allocation3 + $0x18] sm:$0xff]
    %v2166 = vld [vmem:[#allocation3 + $0x20] sm:$0xff]
    %v2167 = vld [vmem:[#allocation3 + $0x30] sm:$0xff]
    %v2168 = vld [vmem:[#allocation3 + $0x38] sm:$0xff]
    %v2169 = vld [vmem:[#allocation3 + $0x48] sm:$0xff]
    %v2170 = vld [vmem:[#allocation3 + $0x50] sm:$0xff]
    %v2171 = vld [vmem:[#allocation3 + $0x60] sm:$0xff]
    %v2172 = vld [vmem:[#allocation3 + $0x68] sm:$0xff]
    %v2173 = vld [vmem:[#allocation3 + $0x78] sm:$0xff]
    %v2174 = vld [vmem:[#allocation3 + $0x80] sm:$0xff]
    %v2175 = vld [vmem:[#allocation3 + $0x90] sm:$0xff]
    %v2176 = vld [vmem:[#allocation3 + $0x98] sm:$0xff]
    %v2177 = vld [vmem:[#allocation3 + $0xa8] sm:$0xff]
    %v2178 = vld [vmem:[#allocation3 + $0xb0] sm:$0xff]
    %v2179 = vpack.c.bf16 %v2164, %v2163
    %v2180 = vpack.c.bf16 %v2166, %v2165
    %v2181 = vpack.c.bf16 %v2168, %v2167
    %v2182 = vpack.c.bf16 %v2170, %v2169
    %v2183 = vpack.c.bf16 %v2172, %v2171
    %v2184 = vpack.c.bf16 %v2174, %v2173
    %v2185 = vpack.c.bf16 %v2176, %v2175
    %v2186 = vpack.c.bf16 %v2178, %v2177
    %v2187 = vld [vmem:[%s3] sm:$0xff]
    %v2188 = vld [vmem:[%s3 + $0x8] sm:$0xff]
    %v2189 = vld [vmem:[%s3 + $0x10] sm:$0xff]
    %v2190 = vld [vmem:[%s3 + $0x18] sm:$0xff]
    %v2191 = vld [vmem:[%s3 + $0x20] sm:$0xff]
    %v2192 = vld [vmem:[%s3 + $0x28] sm:$0xff]
    %v2193 = vld [vmem:[%s3 + $0x30] sm:$0xff]
    %v2194 = vld [vmem:[%s3 + $0x38] sm:$0xff]
    %v2195 = vld [vmem:[%s3 + $0x40] sm:$0xff]
    %v2196 = vld [vmem:[%s3 + $0x48] sm:$0xff]
    %v2197 = vld [vmem:[%s3 + $0x50] sm:$0xff]
    %v2198 = vld [vmem:[%s3 + $0x58] sm:$0xff]
    %v2199 = vld [vmem:[%s3 + $0x60] sm:$0xff]
    %v2200 = vld [vmem:[%s3 + $0x68] sm:$0xff]
    %v2201 = vld [vmem:[%s3 + $0x70] sm:$0xff]
    %v2202 = vld [vmem:[%s3 + $0x78] sm:$0xff]
    %v2203 = vld [vmem:[#allocation3 + $0x1] sm:$0xff]
    %v2204 = vld [vmem:[#allocation3 + $0x9] sm:$0xff]
    %v2205 = vld [vmem:[#allocation3 + $0x19] sm:$0xff]
    %v2206 = vld [vmem:[#allocation3 + $0x21] sm:$0xff]
    %v2207 = vld [vmem:[#allocation3 + $0x31] sm:$0xff]
    %v2208 = vld [vmem:[#allocation3 + $0x39] sm:$0xff]
    %v2209 = vld [vmem:[#allocation3 + $0x49] sm:$0xff]
    %v2210 = vld [vmem:[#allocation3 + $0x51] sm:$0xff]
    %v2211 = vld [vmem:[#allocation3 + $0x61] sm:$0xff]
    %v2212 = vld [vmem:[#allocation3 + $0x69] sm:$0xff]
    %v2213 = vld [vmem:[#allocation3 + $0x79] sm:$0xff]
    %v2214 = vld [vmem:[#allocation3 + $0x81] sm:$0xff]
    %v2215 = vld [vmem:[#allocation3 + $0x91] sm:$0xff]
    %v2216 = vld [vmem:[#allocation3 + $0x99] sm:$0xff]
    %v2217 = vld [vmem:[#allocation3 + $0xa9] sm:$0xff]
    %v2218 = vld [vmem:[#allocation3 + $0xb1] sm:$0xff]
    %v2219 = vpack.c.bf16 %v2204, %v2203
    %v2220 = vpack.c.bf16 %v2206, %v2205
    %v2221 = vpack.c.bf16 %v2208, %v2207
    %v2222 = vpack.c.bf16 %v2210, %v2209
    %v2223 = vpack.c.bf16 %v2212, %v2211
    %v2224 = vpack.c.bf16 %v2214, %v2213
    %v2225 = vpack.c.bf16 %v2216, %v2215
    %v2226 = vpack.c.bf16 %v2218, %v2217
    %s2227 = scalar_lea.vmem %s3, 128
    %v2228 = vld [vmem:[%s2227] sm:$0xff]
    %v2229 = vld [vmem:[%s2227 + $0x8] sm:$0xff]
    %v2230 = vld [vmem:[%s2227 + $0x10] sm:$0xff]
    %v2231 = vld [vmem:[%s2227 + $0x18] sm:$0xff]
    %v2232 = vld [vmem:[%s2227 + $0x20] sm:$0xff]
    %v2233 = vld [vmem:[%s2227 + $0x28] sm:$0xff]
    %v2234 = vld [vmem:[%s2227 + $0x30] sm:$0xff]
    %v2235 = vld [vmem:[%s2227 + $0x38] sm:$0xff]
    %v2236 = vld [vmem:[%s2227 + $0x40] sm:$0xff]
    %v2237 = vld [vmem:[%s2227 + $0x48] sm:$0xff]
    %v2238 = vld [vmem:[%s2227 + $0x50] sm:$0xff]
    %v2239 = vld [vmem:[%s2227 + $0x58] sm:$0xff]
    %v2240 = vld [vmem:[%s2227 + $0x60] sm:$0xff]
    %v2241 = vld [vmem:[%s2227 + $0x68] sm:$0xff]
    %v2242 = vld [vmem:[%s2227 + $0x70] sm:$0xff]
    %v2243 = vld [vmem:[%s2227 + $0x78] sm:$0xff]
    %v2260 = vunpack.c.l.b16 %v2228
    %v2261 = vunpack.c.h.b16 %v2228
    %v2262 = vunpack.c.l.b16 %v2229
    %v2263 = vunpack.c.h.b16 %v2229
    %v2264 = vunpack.c.l.b16 %v2230
    %v2265 = vunpack.c.h.b16 %v2230
    %v2266 = vunpack.c.l.b16 %v2231
    %v2267 = vunpack.c.h.b16 %v2231
    %v2268 = vunpack.c.l.b16 %v2232
    %v2269 = vunpack.c.h.b16 %v2232
    %v2270 = vunpack.c.l.b16 %v2233
    %v2271 = vunpack.c.h.b16 %v2233
    %v2272 = vunpack.c.l.b16 %v2234
    %v2273 = vunpack.c.h.b16 %v2234
    %v2274 = vunpack.c.l.b16 %v2235
    %v2275 = vunpack.c.h.b16 %v2235
    %v2276 = vunpack.c.l.b16 %v2236
    %v2277 = vunpack.c.h.b16 %v2236
    %v2278 = vunpack.c.l.b16 %v2237
    %v2279 = vunpack.c.h.b16 %v2237
    %v2280 = vunpack.c.l.b16 %v2238
    %v2281 = vunpack.c.h.b16 %v2238
    %v2282 = vunpack.c.l.b16 %v2239
    %v2283 = vunpack.c.h.b16 %v2239
    %v2284 = vunpack.c.l.b16 %v2240
    %v2285 = vunpack.c.h.b16 %v2240
    %v2286 = vunpack.c.l.b16 %v2241
    %v2287 = vunpack.c.h.b16 %v2241
    %v2288 = vunpack.c.l.b16 %v2242
    %v2289 = vunpack.c.h.b16 %v2242
    %v2290 = vunpack.c.l.b16 %v2243
    %v2291 = vunpack.c.h.b16 %v2243
    %v2292 = vpack.c.b16 %v2262, %v2260
    %v2293 = vpack.c.b16 %v2263, %v2261
    %v2294 = vpack.c.b16 %v2266, %v2264
    %v2295 = vpack.c.b16 %v2267, %v2265
    %v2296 = vpack.c.b16 %v2270, %v2268
    %v2297 = vpack.c.b16 %v2271, %v2269
    %v2298 = vpack.c.b16 %v2274, %v2272
    %v2299 = vpack.c.b16 %v2275, %v2273
    %v2300 = vpack.c.b16 %v2278, %v2276
    %v2301 = vpack.c.b16 %v2279, %v2277
    %v2302 = vpack.c.b16 %v2282, %v2280
    %v2303 = vpack.c.b16 %v2283, %v2281
    %v2304 = vpack.c.b16 %v2286, %v2284
    %v2305 = vpack.c.b16 %v2287, %v2285
    %v2306 = vpack.c.b16 %v2290, %v2288
    %v2307 = vpack.c.b16 %v2291, %v2289
    %2324 = vmatprep.subr.bf16.mxu0 %v2307
    %2325 = vmatpush1.bf16.msra.mxu0 %v2306
    %2326 = vmatprep.subr.bf16.mxu0 %v2305
    %2327 = vmatpush1.bf16.msra.mxu0 %v2304
    %2328 = vmatprep.subr.bf16.mxu0 %v2303
    %2329 = vmatpush1.bf16.msra.mxu0 %v2302
    %2330 = vmatprep.subr.bf16.mxu0 %v2301
    %2331 = vmatpush1.bf16.msra.mxu0 %v2300
    %2332 = vmatprep.subr.bf16.mxu0 %v2299
    %2333 = vmatpush1.bf16.msra.mxu0 %v2298
    %2334 = vmatprep.subr.bf16.mxu0 %v2297
    %2335 = vmatpush1.bf16.msra.mxu0 %v2296
    %2336 = vmatprep.subr.bf16.mxu0 %v2295
    %2337 = vmatpush1.bf16.msra.mxu0 %v2294
    %2338 = vmatprep.subr.bf16.mxu0 %v2293
    %2339 = vmatpush1.bf16.msra.mxu0 %v2292
    %2340 = vmatprep.subr.bf16.mxu0 0
    %2341 = vmatpush2.bf16.msra.mxu0 0
    %2342 = vmatprep.subr.bf16.mxu0 0
    %2343 = vmatpush2.bf16.msra.mxu0 0
    %2344 = vmatprep.subr.bf16.mxu0 0
    %2345 = vmatpush2.bf16.msra.mxu0 0
    %2346 = vmatprep.subr.bf16.mxu0 0
    %2347 = vmatpush2.bf16.msra.mxu0 0
    %2348 = vmatprep.subr.bf16.mxu0 0
    %2349 = vmatpush2.bf16.msra.mxu0 0
    %2350 = vmatprep.subr.bf16.mxu0 0
    %2351 = vmatpush2.bf16.msra.mxu0 0
    %2352 = vmatprep.subr.bf16.mxu0 0
    %2353 = vmatpush2.bf16.msra.mxu0 0
    %2354 = vmatprep.subr.bf16.mxu0 0
    %2355 = vmatpush2.bf16.msra.mxu0 0
    %2356 = vmatprep.mubr.bf16.mxu0 0
    %2357 = vmatmul.mubr.bf16.gmra.mxu0 %v2219
    %v2358 = vpop.f32.mrf.mxu0
    %v2359 = vadd.f32 0.0, %v2358
    %v2360 = vpop.f32.mrf.mxu0
    %v2361 = vadd.f32 0.0, %v2360
    %v2362 = vpop.f32.mrf.mxu0
    %v2363 = vadd.f32 0.0, %v2362
    %v2364 = vpop.f32.mrf.mxu0
    %v2365 = vadd.f32 0.0, %v2364
    %2366 = vmatprep.mubr.bf16.mxu0 0
    %2367 = vmatmul.mubr.bf16.gmra.mxu0 %v2220
    %v2368 = vpop.f32.mrf.mxu0
    %v2369 = vadd.f32 0.0, %v2368
    %v2370 = vpop.f32.mrf.mxu0
    %v2371 = vadd.f32 0.0, %v2370
    %v2372 = vpop.f32.mrf.mxu0
    %v2373 = vadd.f32 0.0, %v2372
    %v2374 = vpop.f32.mrf.mxu0
    %v2375 = vadd.f32 0.0, %v2374
    %2376 = vmatprep.mubr.bf16.mxu0 0
    %2377 = vmatmul.mubr.bf16.gmra.mxu0 %v2221
    %v2378 = vpop.f32.mrf.mxu0
    %v2379 = vadd.f32 0.0, %v2378
    %v2380 = vpop.f32.mrf.mxu0
    %v2381 = vadd.f32 0.0, %v2380
    %v2382 = vpop.f32.mrf.mxu0
    %v2383 = vadd.f32 0.0, %v2382
    %v2384 = vpop.f32.mrf.mxu0
    %v2385 = vadd.f32 0.0, %v2384
    %2386 = vmatprep.mubr.bf16.mxu0 0
    %2387 = vmatmul.mubr.bf16.gmra.mxu0 %v2222
    %v2388 = vpop.f32.mrf.mxu0
    %v2389 = vadd.f32 0.0, %v2388
    %v2390 = vpop.f32.mrf.mxu0
    %v2391 = vadd.f32 0.0, %v2390
    %v2392 = vpop.f32.mrf.mxu0
    %v2393 = vadd.f32 0.0, %v2392
    %v2394 = vpop.f32.mrf.mxu0
    %v2395 = vadd.f32 0.0, %v2394
    %2396 = vmatprep.mubr.bf16.mxu0 0
    %2397 = vmatmul.mubr.bf16.gmra.mxu0 %v2223
    %v2398 = vpop.f32.mrf.mxu0
    %v2399 = vadd.f32 0.0, %v2398
    %v2400 = vpop.f32.mrf.mxu0
    %v2401 = vadd.f32 0.0, %v2400
    %v2402 = vpop.f32.mrf.mxu0
    %v2403 = vadd.f32 0.0, %v2402
    %v2404 = vpop.f32.mrf.mxu0
    %v2405 = vadd.f32 0.0, %v2404
    %2406 = vmatprep.mubr.bf16.mxu0 0
    %2407 = vmatmul.mubr.bf16.gmra.mxu0 %v2224
    %v2408 = vpop.f32.mrf.mxu0
    %v2409 = vadd.f32 0.0, %v2408
    %v2410 = vpop.f32.mrf.mxu0
    %v2411 = vadd.f32 0.0, %v2410
    %v2412 = vpop.f32.mrf.mxu0
    %v2413 = vadd.f32 0.0, %v2412
    %v2414 = vpop.f32.mrf.mxu0
    %v2415 = vadd.f32 0.0, %v2414
    %2416 = vmatprep.mubr.bf16.mxu0 0
    %2417 = vmatmul.mubr.bf16.gmra.mxu0 %v2225
    %v2418 = vpop.f32.mrf.mxu0
    %v2419 = vadd.f32 0.0, %v2418
    %v2420 = vpop.f32.mrf.mxu0
    %v2421 = vadd.f32 0.0, %v2420
    %v2422 = vpop.f32.mrf.mxu0
    %v2423 = vadd.f32 0.0, %v2422
    %v2424 = vpop.f32.mrf.mxu0
    %v2425 = vadd.f32 0.0, %v2424
    %2426 = vmatprep.mubr.bf16.mxu0 0
    %2427 = vmatmul.mubr.bf16.gmra.mxu0 %v2226
    %v2428 = vpop.f32.mrf.mxu0
    %v2429 = vadd.f32 0.0, %v2428
    %v2430 = vpop.f32.mrf.mxu0
    %v2431 = vadd.f32 0.0, %v2430
    %v2432 = vpop.f32.mrf.mxu0
    %v2433 = vadd.f32 0.0, %v2432
    %v2434 = vpop.f32.mrf.mxu0
    %v2435 = vadd.f32 0.0, %v2434
    %2436 = vdwg.mxu0
    %v2453 = vunpack.c.l.b16 %v2187
    %v2454 = vunpack.c.h.b16 %v2187
    %v2455 = vunpack.c.l.b16 %v2188
    %v2456 = vunpack.c.h.b16 %v2188
    %v2457 = vunpack.c.l.b16 %v2189
    %v2458 = vunpack.c.h.b16 %v2189
    %v2459 = vunpack.c.l.b16 %v2190
    %v2460 = vunpack.c.h.b16 %v2190
    %v2461 = vunpack.c.l.b16 %v2191
    %v2462 = vunpack.c.h.b16 %v2191
    %v2463 = vunpack.c.l.b16 %v2192
    %v2464 = vunpack.c.h.b16 %v2192
    %v2465 = vunpack.c.l.b16 %v2193
    %v2466 = vunpack.c.h.b16 %v2193
    %v2467 = vunpack.c.l.b16 %v2194
    %v2468 = vunpack.c.h.b16 %v2194
    %v2469 = vunpack.c.l.b16 %v2195
    %v2470 = vunpack.c.h.b16 %v2195
    %v2471 = vunpack.c.l.b16 %v2196
    %v2472 = vunpack.c.h.b16 %v2196
    %v2473 = vunpack.c.l.b16 %v2197
    %v2474 = vunpack.c.h.b16 %v2197
    %v2475 = vunpack.c.l.b16 %v2198
    %v2476 = vunpack.c.h.b16 %v2198
    %v2477 = vunpack.c.l.b16 %v2199
    %v2478 = vunpack.c.h.b16 %v2199
    %v2479 = vunpack.c.l.b16 %v2200
    %v2480 = vunpack.c.h.b16 %v2200
    %v2481 = vunpack.c.l.b16 %v2201
    %v2482 = vunpack.c.h.b16 %v2201
    %v2483 = vunpack.c.l.b16 %v2202
    %v2484 = vunpack.c.h.b16 %v2202
    %v2485 = vpack.c.b16 %v2455, %v2453
    %v2486 = vpack.c.b16 %v2456, %v2454
    %v2487 = vpack.c.b16 %v2459, %v2457
    %v2488 = vpack.c.b16 %v2460, %v2458
    %v2489 = vpack.c.b16 %v2463, %v2461
    %v2490 = vpack.c.b16 %v2464, %v2462
    %v2491 = vpack.c.b16 %v2467, %v2465
    %v2492 = vpack.c.b16 %v2468, %v2466
    %v2493 = vpack.c.b16 %v2471, %v2469
    %v2494 = vpack.c.b16 %v2472, %v2470
    %v2495 = vpack.c.b16 %v2475, %v2473
    %v2496 = vpack.c.b16 %v2476, %v2474
    %v2497 = vpack.c.b16 %v2479, %v2477
    %v2498 = vpack.c.b16 %v2480, %v2478
    %v2499 = vpack.c.b16 %v2483, %v2481
    %v2500 = vpack.c.b16 %v2484, %v2482
    %2517 = vmatprep.subr.bf16.mxu0 %v2500
    %2518 = vmatpush1.bf16.msra.mxu0 %v2499
    %2519 = vmatprep.subr.bf16.mxu0 %v2498
    %2520 = vmatpush1.bf16.msra.mxu0 %v2497
    %2521 = vmatprep.subr.bf16.mxu0 %v2496
    %2522 = vmatpush1.bf16.msra.mxu0 %v2495
    %2523 = vmatprep.subr.bf16.mxu0 %v2494
    %2524 = vmatpush1.bf16.msra.mxu0 %v2493
    %2525 = vmatprep.subr.bf16.mxu0 %v2492
    %2526 = vmatpush1.bf16.msra.mxu0 %v2491
    %2527 = vmatprep.subr.bf16.mxu0 %v2490
    %2528 = vmatpush1.bf16.msra.mxu0 %v2489
    %2529 = vmatprep.subr.bf16.mxu0 %v2488
    %2530 = vmatpush1.bf16.msra.mxu0 %v2487
    %2531 = vmatprep.subr.bf16.mxu0 %v2486
    %2532 = vmatpush1.bf16.msra.mxu0 %v2485
    %2533 = vmatprep.subr.bf16.mxu0 0
    %2534 = vmatpush2.bf16.msra.mxu0 0
    %2535 = vmatprep.subr.bf16.mxu0 0
    %2536 = vmatpush2.bf16.msra.mxu0 0
    %2537 = vmatprep.subr.bf16.mxu0 0
    %2538 = vmatpush2.bf16.msra.mxu0 0
    %2539 = vmatprep.subr.bf16.mxu0 0
    %2540 = vmatpush2.bf16.msra.mxu0 0
    %2541 = vmatprep.subr.bf16.mxu0 0
    %2542 = vmatpush2.bf16.msra.mxu0 0
    %2543 = vmatprep.subr.bf16.mxu0 0
    %2544 = vmatpush2.bf16.msra.mxu0 0
    %2545 = vmatprep.subr.bf16.mxu0 0
    %2546 = vmatpush2.bf16.msra.mxu0 0
    %2547 = vmatprep.subr.bf16.mxu0 0
    %2548 = vmatpush2.bf16.msra.mxu0 0
    %2549 = vmatprep.mubr.bf16.mxu0 0
    %2550 = vmatmul.mubr.bf16.gmra.mxu0 %v2179
    %v2551 = vpop.f32.mrf.mxu0
    %v2552 = vadd.f32 %v2359, %v2551
    %v2553 = vpop.f32.mrf.mxu0
    %v2554 = vadd.f32 %v2361, %v2553
    %v2555 = vpop.f32.mrf.mxu0
    %v2556 = vadd.f32 %v2363, %v2555
    %v2557 = vpop.f32.mrf.mxu0
    %v2558 = vadd.f32 %v2365, %v2557
    %2559 = vmatprep.mubr.bf16.mxu0 0
    %2560 = vmatmul.mubr.bf16.gmra.mxu0 %v2180
    %v2561 = vpop.f32.mrf.mxu0
    %v2562 = vadd.f32 %v2369, %v2561
    %v2563 = vpop.f32.mrf.mxu0
    %v2564 = vadd.f32 %v2371, %v2563
    %v2565 = vpop.f32.mrf.mxu0
    %v2566 = vadd.f32 %v2373, %v2565
    %v2567 = vpop.f32.mrf.mxu0
    %v2568 = vadd.f32 %v2375, %v2567
    %2569 = vmatprep.mubr.bf16.mxu0 0
    %2570 = vmatmul.mubr.bf16.gmra.mxu0 %v2181
    %v2571 = vpop.f32.mrf.mxu0
    %v2572 = vadd.f32 %v2379, %v2571
    %v2573 = vpop.f32.mrf.mxu0
    %v2574 = vadd.f32 %v2381, %v2573
    %v2575 = vpop.f32.mrf.mxu0
    %v2576 = vadd.f32 %v2383, %v2575
    %v2577 = vpop.f32.mrf.mxu0
    %v2578 = vadd.f32 %v2385, %v2577
    %2579 = vmatprep.mubr.bf16.mxu0 0
    %2580 = vmatmul.mubr.bf16.gmra.mxu0 %v2182
    %v2581 = vpop.f32.mrf.mxu0
    %v2582 = vadd.f32 %v2389, %v2581
    %v2583 = vpop.f32.mrf.mxu0
    %v2584 = vadd.f32 %v2391, %v2583
    %v2585 = vpop.f32.mrf.mxu0
    %v2586 = vadd.f32 %v2393, %v2585
    %v2587 = vpop.f32.mrf.mxu0
    %v2588 = vadd.f32 %v2395, %v2587
    %2589 = vmatprep.mubr.bf16.mxu0 0
    %2590 = vmatmul.mubr.bf16.gmra.mxu0 %v2183
    %v2591 = vpop.f32.mrf.mxu0
    %v2592 = vadd.f32 %v2399, %v2591
    %v2593 = vpop.f32.mrf.mxu0
    %v2594 = vadd.f32 %v2401, %v2593
    %v2595 = vpop.f32.mrf.mxu0
    %v2596 = vadd.f32 %v2403, %v2595
    %v2597 = vpop.f32.mrf.mxu0
    %v2598 = vadd.f32 %v2405, %v2597
    %2599 = vmatprep.mubr.bf16.mxu0 0
    %2600 = vmatmul.mubr.bf16.gmra.mxu0 %v2184
    %v2601 = vpop.f32.mrf.mxu0
    %v2602 = vadd.f32 %v2409, %v2601
    %v2603 = vpop.f32.mrf.mxu0
    %v2604 = vadd.f32 %v2411, %v2603
    %v2605 = vpop.f32.mrf.mxu0
    %v2606 = vadd.f32 %v2413, %v2605
    %v2607 = vpop.f32.mrf.mxu0
    %v2608 = vadd.f32 %v2415, %v2607
    %2609 = vmatprep.mubr.bf16.mxu0 0
    %2610 = vmatmul.mubr.bf16.gmra.mxu0 %v2185
    %v2611 = vpop.f32.mrf.mxu0
    %v2612 = vadd.f32 %v2419, %v2611
    %v2613 = vpop.f32.mrf.mxu0
    %v2614 = vadd.f32 %v2421, %v2613
    %v2615 = vpop.f32.mrf.mxu0
    %v2616 = vadd.f32 %v2423, %v2615
    %v2617 = vpop.f32.mrf.mxu0
    %v2618 = vadd.f32 %v2425, %v2617
    %2619 = vmatprep.mubr.bf16.mxu0 0
    %2620 = vmatmul.mubr.bf16.gmra.mxu0 %v2186
    %v2621 = vpop.f32.mrf.mxu0
    %v2622 = vadd.f32 %v2429, %v2621
    %v2623 = vpop.f32.mrf.mxu0
    %v2624 = vadd.f32 %v2431, %v2623
    %v2625 = vpop.f32.mrf.mxu0
    %v2626 = vadd.f32 %v2433, %v2625
    %v2627 = vpop.f32.mrf.mxu0
    %v2628 = vadd.f32 %v2435, %v2627
    %2629 = vdwg.mxu0
    %v2630 = vld [vmem:[#allocation3 + $0x2] sm:$0xff]
    %v2631 = vld [vmem:[#allocation3 + $0xa] sm:$0xff]
    %v2632 = vld [vmem:[#allocation3 + $0x1a] sm:$0xff]
    %v2633 = vld [vmem:[#allocation3 + $0x22] sm:$0xff]
    %v2634 = vld [vmem:[#allocation3 + $0x32] sm:$0xff]
    %v2635 = vld [vmem:[#allocation3 + $0x3a] sm:$0xff]
    %v2636 = vld [vmem:[#allocation3 + $0x4a] sm:$0xff]
    %v2637 = vld [vmem:[#allocation3 + $0x52] sm:$0xff]
    %v2638 = vld [vmem:[#allocation3 + $0x62] sm:$0xff]
    %v2639 = vld [vmem:[#allocation3 + $0x6a] sm:$0xff]
    %v2640 = vld [vmem:[#allocation3 + $0x7a] sm:$0xff]
    %v2641 = vld [vmem:[#allocation3 + $0x82] sm:$0xff]
    %v2642 = vld [vmem:[#allocation3 + $0x92] sm:$0xff]
    %v2643 = vld [vmem:[#allocation3 + $0x9a] sm:$0xff]
    %v2644 = vld [vmem:[#allocation3 + $0xaa] sm:$0xff]
    %v2645 = vld [vmem:[#allocation3 + $0xb2] sm:$0xff]
    %v2646 = vpack.c.bf16 %v2631, %v2630
    %v2647 = vpack.c.bf16 %v2633, %v2632
    %v2648 = vpack.c.bf16 %v2635, %v2634
    %v2649 = vpack.c.bf16 %v2637, %v2636
    %v2650 = vpack.c.bf16 %v2639, %v2638
    %v2651 = vpack.c.bf16 %v2641, %v2640
    %v2652 = vpack.c.bf16 %v2643, %v2642
    %v2653 = vpack.c.bf16 %v2645, %v2644
    %s2654 = scalar_lea.vmem %s3, 256
    %v2655 = vld [vmem:[%s2654] sm:$0xff]
    %v2656 = vld [vmem:[%s2654 + $0x8] sm:$0xff]
    %v2657 = vld [vmem:[%s2654 + $0x10] sm:$0xff]
    %v2658 = vld [vmem:[%s2654 + $0x18] sm:$0xff]
    %v2659 = vld [vmem:[%s2654 + $0x20] sm:$0xff]
    %v2660 = vld [vmem:[%s2654 + $0x28] sm:$0xff]
    %v2661 = vld [vmem:[%s2654 + $0x30] sm:$0xff]
    %v2662 = vld [vmem:[%s2654 + $0x38] sm:$0xff]
    %v2663 = vld [vmem:[%s2654 + $0x40] sm:$0xff]
    %v2664 = vld [vmem:[%s2654 + $0x48] sm:$0xff]
    %v2665 = vld [vmem:[%s2654 + $0x50] sm:$0xff]
    %v2666 = vld [vmem:[%s2654 + $0x58] sm:$0xff]
    %v2667 = vld [vmem:[%s2654 + $0x60] sm:$0xff]
    %v2668 = vld [vmem:[%s2654 + $0x68] sm:$0xff]
    %v2669 = vld [vmem:[%s2654 + $0x70] sm:$0xff]
    %v2670 = vld [vmem:[%s2654 + $0x78] sm:$0xff]
    %v2687 = vunpack.c.l.b16 %v2655
    %v2688 = vunpack.c.h.b16 %v2655
    %v2689 = vunpack.c.l.b16 %v2656
    %v2690 = vunpack.c.h.b16 %v2656
    %v2691 = vunpack.c.l.b16 %v2657
    %v2692 = vunpack.c.h.b16 %v2657
    %v2693 = vunpack.c.l.b16 %v2658
    %v2694 = vunpack.c.h.b16 %v2658
    %v2695 = vunpack.c.l.b16 %v2659
    %v2696 = vunpack.c.h.b16 %v2659
    %v2697 = vunpack.c.l.b16 %v2660
    %v2698 = vunpack.c.h.b16 %v2660
    %v2699 = vunpack.c.l.b16 %v2661
    %v2700 = vunpack.c.h.b16 %v2661
    %v2701 = vunpack.c.l.b16 %v2662
    %v2702 = vunpack.c.h.b16 %v2662
    %v2703 = vunpack.c.l.b16 %v2663
    %v2704 = vunpack.c.h.b16 %v2663
    %v2705 = vunpack.c.l.b16 %v2664
    %v2706 = vunpack.c.h.b16 %v2664
    %v2707 = vunpack.c.l.b16 %v2665
    %v2708 = vunpack.c.h.b16 %v2665
    %v2709 = vunpack.c.l.b16 %v2666
    %v2710 = vunpack.c.h.b16 %v2666
    %v2711 = vunpack.c.l.b16 %v2667
    %v2712 = vunpack.c.h.b16 %v2667
    %v2713 = vunpack.c.l.b16 %v2668
    %v2714 = vunpack.c.h.b16 %v2668
    %v2715 = vunpack.c.l.b16 %v2669
    %v2716 = vunpack.c.h.b16 %v2669
    %v2717 = vunpack.c.l.b16 %v2670
    %v2718 = vunpack.c.h.b16 %v2670
    %v2719 = vpack.c.b16 %v2689, %v2687
    %v2720 = vpack.c.b16 %v2690, %v2688
    %v2721 = vpack.c.b16 %v2693, %v2691
    %v2722 = vpack.c.b16 %v2694, %v2692
    %v2723 = vpack.c.b16 %v2697, %v2695
    %v2724 = vpack.c.b16 %v2698, %v2696
    %v2725 = vpack.c.b16 %v2701, %v2699
    %v2726 = vpack.c.b16 %v2702, %v2700
    %v2727 = vpack.c.b16 %v2705, %v2703
    %v2728 = vpack.c.b16 %v2706, %v2704
    %v2729 = vpack.c.b16 %v2709, %v2707
    %v2730 = vpack.c.b16 %v2710, %v2708
    %v2731 = vpack.c.b16 %v2713, %v2711
    %v2732 = vpack.c.b16 %v2714, %v2712
    %v2733 = vpack.c.b16 %v2717, %v2715
    %v2734 = vpack.c.b16 %v2718, %v2716
    %2751 = vmatprep.subr.bf16.mxu0 %v2734
    %2752 = vmatpush1.bf16.msra.mxu0 %v2733
    %2753 = vmatprep.subr.bf16.mxu0 %v2732
    %2754 = vmatpush1.bf16.msra.mxu0 %v2731
    %2755 = vmatprep.subr.bf16.mxu0 %v2730
    %2756 = vmatpush1.bf16.msra.mxu0 %v2729
    %2757 = vmatprep.subr.bf16.mxu0 %v2728
    %2758 = vmatpush1.bf16.msra.mxu0 %v2727
    %2759 = vmatprep.subr.bf16.mxu0 %v2726
    %2760 = vmatpush1.bf16.msra.mxu0 %v2725
    %2761 = vmatprep.subr.bf16.mxu0 %v2724
    %2762 = vmatpush1.bf16.msra.mxu0 %v2723
    %2763 = vmatprep.subr.bf16.mxu0 %v2722
    %2764 = vmatpush1.bf16.msra.mxu0 %v2721
    %2765 = vmatprep.subr.bf16.mxu0 %v2720
    %2766 = vmatpush1.bf16.msra.mxu0 %v2719
    %2767 = vmatprep.subr.bf16.mxu0 0
    %2768 = vmatpush2.bf16.msra.mxu0 0
    %2769 = vmatprep.subr.bf16.mxu0 0
    %2770 = vmatpush2.bf16.msra.mxu0 0
    %2771 = vmatprep.subr.bf16.mxu0 0
    %2772 = vmatpush2.bf16.msra.mxu0 0
    %2773 = vmatprep.subr.bf16.mxu0 0
    %2774 = vmatpush2.bf16.msra.mxu0 0
    %2775 = vmatprep.subr.bf16.mxu0 0
    %2776 = vmatpush2.bf16.msra.mxu0 0
    %2777 = vmatprep.subr.bf16.mxu0 0
    %2778 = vmatpush2.bf16.msra.mxu0 0
    %2779 = vmatprep.subr.bf16.mxu0 0
    %2780 = vmatpush2.bf16.msra.mxu0 0
    %2781 = vmatprep.subr.bf16.mxu0 0
    %2782 = vmatpush2.bf16.msra.mxu0 0
    %2783 = vmatprep.mubr.bf16.mxu0 0
    %2784 = vmatmul.mubr.bf16.gmra.mxu0 %v2646
    %v2785 = vpop.f32.mrf.mxu0
    %v2786 = vadd.f32 0.0, %v2785
    %v2787 = vpop.f32.mrf.mxu0
    %v2788 = vadd.f32 0.0, %v2787
    %v2789 = vpop.f32.mrf.mxu0
    %v2790 = vadd.f32 0.0, %v2789
    %v2791 = vpop.f32.mrf.mxu0
    %v2792 = vadd.f32 0.0, %v2791
    %2793 = vmatprep.mubr.bf16.mxu0 0
    %2794 = vmatmul.mubr.bf16.gmra.mxu0 %v2647
    %v2795 = vpop.f32.mrf.mxu0
    %v2796 = vadd.f32 0.0, %v2795
    %v2797 = vpop.f32.mrf.mxu0
    %v2798 = vadd.f32 0.0, %v2797
    %v2799 = vpop.f32.mrf.mxu0
    %v2800 = vadd.f32 0.0, %v2799
    %v2801 = vpop.f32.mrf.mxu0
    %v2802 = vadd.f32 0.0, %v2801
    %2803 = vmatprep.mubr.bf16.mxu0 0
    %2804 = vmatmul.mubr.bf16.gmra.mxu0 %v2648
    %v2805 = vpop.f32.mrf.mxu0
    %v2806 = vadd.f32 0.0, %v2805
    %v2807 = vpop.f32.mrf.mxu0
    %v2808 = vadd.f32 0.0, %v2807
    %v2809 = vpop.f32.mrf.mxu0
    %v2810 = vadd.f32 0.0, %v2809
    %v2811 = vpop.f32.mrf.mxu0
    %v2812 = vadd.f32 0.0, %v2811
    %2813 = vmatprep.mubr.bf16.mxu0 0
    %2814 = vmatmul.mubr.bf16.gmra.mxu0 %v2649
    %v2815 = vpop.f32.mrf.mxu0
    %v2816 = vadd.f32 0.0, %v2815
    %v2817 = vpop.f32.mrf.mxu0
    %v2818 = vadd.f32 0.0, %v2817
    %v2819 = vpop.f32.mrf.mxu0
    %v2820 = vadd.f32 0.0, %v2819
    %v2821 = vpop.f32.mrf.mxu0
    %v2822 = vadd.f32 0.0, %v2821
    %2823 = vmatprep.mubr.bf16.mxu0 0
    %2824 = vmatmul.mubr.bf16.gmra.mxu0 %v2650
    %v2825 = vpop.f32.mrf.mxu0
    %v2826 = vadd.f32 0.0, %v2825
    %v2827 = vpop.f32.mrf.mxu0
    %v2828 = vadd.f32 0.0, %v2827
    %v2829 = vpop.f32.mrf.mxu0
    %v2830 = vadd.f32 0.0, %v2829
    %v2831 = vpop.f32.mrf.mxu0
    %v2832 = vadd.f32 0.0, %v2831
    %2833 = vmatprep.mubr.bf16.mxu0 0
    %2834 = vmatmul.mubr.bf16.gmra.mxu0 %v2651
    %v2835 = vpop.f32.mrf.mxu0
    %v2836 = vadd.f32 0.0, %v2835
    %v2837 = vpop.f32.mrf.mxu0
    %v2838 = vadd.f32 0.0, %v2837
    %v2839 = vpop.f32.mrf.mxu0
    %v2840 = vadd.f32 0.0, %v2839
    %v2841 = vpop.f32.mrf.mxu0
    %v2842 = vadd.f32 0.0, %v2841
    %2843 = vmatprep.mubr.bf16.mxu0 0
    %2844 = vmatmul.mubr.bf16.gmra.mxu0 %v2652
    %v2845 = vpop.f32.mrf.mxu0
    %v2846 = vadd.f32 0.0, %v2845
    %v2847 = vpop.f32.mrf.mxu0
    %v2848 = vadd.f32 0.0, %v2847
    %v2849 = vpop.f32.mrf.mxu0
    %v2850 = vadd.f32 0.0, %v2849
    %v2851 = vpop.f32.mrf.mxu0
    %v2852 = vadd.f32 0.0, %v2851
    %2853 = vmatprep.mubr.bf16.mxu0 0
    %2854 = vmatmul.mubr.bf16.gmra.mxu0 %v2653
    %v2855 = vpop.f32.mrf.mxu0
    %v2856 = vadd.f32 0.0, %v2855
    %v2857 = vpop.f32.mrf.mxu0
    %v2858 = vadd.f32 0.0, %v2857
    %v2859 = vpop.f32.mrf.mxu0
    %v2860 = vadd.f32 0.0, %v2859
    %v2861 = vpop.f32.mrf.mxu0
    %v2862 = vadd.f32 0.0, %v2861
    %2863 = vdwg.mxu0
    %v2864 = vadd.f32 %v2552, %v2786
    %v2865 = vadd.f32 %v2554, %v2788
    %v2866 = vadd.f32 %v2556, %v2790
    %v2867 = vadd.f32 %v2558, %v2792
    %v2868 = vadd.f32 %v2562, %v2796
    %v2869 = vadd.f32 %v2564, %v2798
    %v2870 = vadd.f32 %v2566, %v2800
    %v2871 = vadd.f32 %v2568, %v2802
    %v2872 = vadd.f32 %v2572, %v2806
    %v2873 = vadd.f32 %v2574, %v2808
    %v2874 = vadd.f32 %v2576, %v2810
    %v2875 = vadd.f32 %v2578, %v2812
    %v2876 = vadd.f32 %v2582, %v2816
    %v2877 = vadd.f32 %v2584, %v2818
    %v2878 = vadd.f32 %v2586, %v2820
    %v2879 = vadd.f32 %v2588, %v2822
    %v2880 = vadd.f32 %v2592, %v2826
    %v2881 = vadd.f32 %v2594, %v2828
    %v2882 = vadd.f32 %v2596, %v2830
    %v2883 = vadd.f32 %v2598, %v2832
    %v2884 = vadd.f32 %v2602, %v2836
    %v2885 = vadd.f32 %v2604, %v2838
    %v2886 = vadd.f32 %v2606, %v2840
    %v2887 = vadd.f32 %v2608, %v2842
    %v2888 = vadd.f32 %v2612, %v2846
    %v2889 = vadd.f32 %v2614, %v2848
    %v2890 = vadd.f32 %v2616, %v2850
    %v2891 = vadd.f32 %v2618, %v2852
    %v2892 = vadd.f32 %v2622, %v2856
    %v2893 = vadd.f32 %v2624, %v2858
    %v2894 = vadd.f32 %v2626, %v2860
    %v2895 = vadd.f32 %v2628, %v2862
    %v2896 = vld [vmem:[#allocation3 + $0x3] sm:$0xff]
    %v2897 = vld [vmem:[#allocation3 + $0xb] sm:$0xff]
    %v2898 = vld [vmem:[#allocation3 + $0x1b] sm:$0xff]
    %v2899 = vld [vmem:[#allocation3 + $0x23] sm:$0xff]
    %v2900 = vld [vmem:[#allocation3 + $0x33] sm:$0xff]
    %v2901 = vld [vmem:[#allocation3 + $0x3b] sm:$0xff]
    %v2902 = vld [vmem:[#allocation3 + $0x4b] sm:$0xff]
    %v2903 = vld [vmem:[#allocation3 + $0x53] sm:$0xff]
    %v2904 = vld [vmem:[#allocation3 + $0x63] sm:$0xff]
    %v2905 = vld [vmem:[#allocation3 + $0x6b] sm:$0xff]
    %v2906 = vld [vmem:[#allocation3 + $0x7b] sm:$0xff]
    %v2907 = vld [vmem:[#allocation3 + $0x83] sm:$0xff]
    %v2908 = vld [vmem:[#allocation3 + $0x93] sm:$0xff]
    %v2909 = vld [vmem:[#allocation3 + $0x9b] sm:$0xff]
    %v2910 = vld [vmem:[#allocation3 + $0xab] sm:$0xff]
    %v2911 = vld [vmem:[#allocation3 + $0xb3] sm:$0xff]
    %v2912 = vpack.c.bf16 %v2897, %v2896
    %v2913 = vpack.c.bf16 %v2899, %v2898
    %v2914 = vpack.c.bf16 %v2901, %v2900
    %v2915 = vpack.c.bf16 %v2903, %v2902
    %v2916 = vpack.c.bf16 %v2905, %v2904
    %v2917 = vpack.c.bf16 %v2907, %v2906
    %v2918 = vpack.c.bf16 %v2909, %v2908
    %v2919 = vpack.c.bf16 %v2911, %v2910
    %s2920 = scalar_lea.vmem %s3, 384
    %v2921 = vld [vmem:[%s2920] sm:$0xff]
    %v2922 = vld [vmem:[%s2920 + $0x8] sm:$0xff]
    %v2923 = vld [vmem:[%s2920 + $0x10] sm:$0xff]
    %v2924 = vld [vmem:[%s2920 + $0x18] sm:$0xff]
    %v2925 = vld [vmem:[%s2920 + $0x20] sm:$0xff]
    %v2926 = vld [vmem:[%s2920 + $0x28] sm:$0xff]
    %v2927 = vld [vmem:[%s2920 + $0x30] sm:$0xff]
    %v2928 = vld [vmem:[%s2920 + $0x38] sm:$0xff]
    %v2929 = vld [vmem:[%s2920 + $0x40] sm:$0xff]
    %v2930 = vld [vmem:[%s2920 + $0x48] sm:$0xff]
    %v2931 = vld [vmem:[%s2920 + $0x50] sm:$0xff]
    %v2932 = vld [vmem:[%s2920 + $0x58] sm:$0xff]
    %v2933 = vld [vmem:[%s2920 + $0x60] sm:$0xff]
    %v2934 = vld [vmem:[%s2920 + $0x68] sm:$0xff]
    %v2935 = vld [vmem:[%s2920 + $0x70] sm:$0xff]
    %v2936 = vld [vmem:[%s2920 + $0x78] sm:$0xff]
    %v2953 = vunpack.c.l.b16 %v2921
    %v2954 = vunpack.c.h.b16 %v2921
    %v2955 = vunpack.c.l.b16 %v2922
    %v2956 = vunpack.c.h.b16 %v2922
    %v2957 = vunpack.c.l.b16 %v2923
    %v2958 = vunpack.c.h.b16 %v2923
    %v2959 = vunpack.c.l.b16 %v2924
    %v2960 = vunpack.c.h.b16 %v2924
    %v2961 = vunpack.c.l.b16 %v2925
    %v2962 = vunpack.c.h.b16 %v2925
    %v2963 = vunpack.c.l.b16 %v2926
    %v2964 = vunpack.c.h.b16 %v2926
    %v2965 = vunpack.c.l.b16 %v2927
    %v2966 = vunpack.c.h.b16 %v2927
    %v2967 = vunpack.c.l.b16 %v2928
    %v2968 = vunpack.c.h.b16 %v2928
    %v2969 = vunpack.c.l.b16 %v2929
    %v2970 = vunpack.c.h.b16 %v2929
    %v2971 = vunpack.c.l.b16 %v2930
    %v2972 = vunpack.c.h.b16 %v2930
    %v2973 = vunpack.c.l.b16 %v2931
    %v2974 = vunpack.c.h.b16 %v2931
    %v2975 = vunpack.c.l.b16 %v2932
    %v2976 = vunpack.c.h.b16 %v2932
    %v2977 = vunpack.c.l.b16 %v2933
    %v2978 = vunpack.c.h.b16 %v2933
    %v2979 = vunpack.c.l.b16 %v2934
    %v2980 = vunpack.c.h.b16 %v2934
    %v2981 = vunpack.c.l.b16 %v2935
    %v2982 = vunpack.c.h.b16 %v2935
    %v2983 = vunpack.c.l.b16 %v2936
    %v2984 = vunpack.c.h.b16 %v2936
    %v2985 = vpack.c.b16 %v2955, %v2953
    %v2986 = vpack.c.b16 %v2956, %v2954
    %v2987 = vpack.c.b16 %v2959, %v2957
    %v2988 = vpack.c.b16 %v2960, %v2958
    %v2989 = vpack.c.b16 %v2963, %v2961
    %v2990 = vpack.c.b16 %v2964, %v2962
    %v2991 = vpack.c.b16 %v2967, %v2965
    %v2992 = vpack.c.b16 %v2968, %v2966
    %v2993 = vpack.c.b16 %v2971, %v2969
    %v2994 = vpack.c.b16 %v2972, %v2970
    %v2995 = vpack.c.b16 %v2975, %v2973
    %v2996 = vpack.c.b16 %v2976, %v2974
    %v2997 = vpack.c.b16 %v2979, %v2977
    %v2998 = vpack.c.b16 %v2980, %v2978
    %v2999 = vpack.c.b16 %v2983, %v2981
    %v3000 = vpack.c.b16 %v2984, %v2982
    %3017 = vmatprep.subr.bf16.mxu0 %v3000
    %3018 = vmatpush1.bf16.msra.mxu0 %v2999
    %3019 = vmatprep.subr.bf16.mxu0 %v2998
    %3020 = vmatpush1.bf16.msra.mxu0 %v2997
    %3021 = vmatprep.subr.bf16.mxu0 %v2996
    %3022 = vmatpush1.bf16.msra.mxu0 %v2995
    %3023 = vmatprep.subr.bf16.mxu0 %v2994
    %3024 = vmatpush1.bf16.msra.mxu0 %v2993
    %3025 = vmatprep.subr.bf16.mxu0 %v2992
    %3026 = vmatpush1.bf16.msra.mxu0 %v2991
    %3027 = vmatprep.subr.bf16.mxu0 %v2990
    %3028 = vmatpush1.bf16.msra.mxu0 %v2989
    %3029 = vmatprep.subr.bf16.mxu0 %v2988
    %3030 = vmatpush1.bf16.msra.mxu0 %v2987
    %3031 = vmatprep.subr.bf16.mxu0 %v2986
    %3032 = vmatpush1.bf16.msra.mxu0 %v2985
    %3033 = vmatprep.subr.bf16.mxu0 0
    %3034 = vmatpush2.bf16.msra.mxu0 0
    %3035 = vmatprep.subr.bf16.mxu0 0
    %3036 = vmatpush2.bf16.msra.mxu0 0
    %3037 = vmatprep.subr.bf16.mxu0 0
    %3038 = vmatpush2.bf16.msra.mxu0 0
    %3039 = vmatprep.subr.bf16.mxu0 0
    %3040 = vmatpush2.bf16.msra.mxu0 0
    %3041 = vmatprep.subr.bf16.mxu0 0
    %3042 = vmatpush2.bf16.msra.mxu0 0
    %3043 = vmatprep.subr.bf16.mxu0 0
    %3044 = vmatpush2.bf16.msra.mxu0 0
    %3045 = vmatprep.subr.bf16.mxu0 0
    %3046 = vmatpush2.bf16.msra.mxu0 0
    %3047 = vmatprep.subr.bf16.mxu0 0
    %3048 = vmatpush2.bf16.msra.mxu0 0
    %3049 = vmatprep.mubr.bf16.mxu0 0
    %3050 = vmatmul.mubr.bf16.gmra.mxu0 %v2912
    %v3051 = vpop.f32.mrf.mxu0
    %v3052 = vadd.f32 0.0, %v3051
    %v3053 = vpop.f32.mrf.mxu0
    %v3054 = vadd.f32 0.0, %v3053
    %v3055 = vpop.f32.mrf.mxu0
    %v3056 = vadd.f32 0.0, %v3055
    %v3057 = vpop.f32.mrf.mxu0
    %v3058 = vadd.f32 0.0, %v3057
    %3059 = vmatprep.mubr.bf16.mxu0 0
    %3060 = vmatmul.mubr.bf16.gmra.mxu0 %v2913
    %v3061 = vpop.f32.mrf.mxu0
    %v3062 = vadd.f32 0.0, %v3061
    %v3063 = vpop.f32.mrf.mxu0
    %v3064 = vadd.f32 0.0, %v3063
    %v3065 = vpop.f32.mrf.mxu0
    %v3066 = vadd.f32 0.0, %v3065
    %v3067 = vpop.f32.mrf.mxu0
    %v3068 = vadd.f32 0.0, %v3067
    %3069 = vmatprep.mubr.bf16.mxu0 0
    %3070 = vmatmul.mubr.bf16.gmra.mxu0 %v2914
    %v3071 = vpop.f32.mrf.mxu0
    %v3072 = vadd.f32 0.0, %v3071
    %v3073 = vpop.f32.mrf.mxu0
    %v3074 = vadd.f32 0.0, %v3073
    %v3075 = vpop.f32.mrf.mxu0
    %v3076 = vadd.f32 0.0, %v3075
    %v3077 = vpop.f32.mrf.mxu0
    %v3078 = vadd.f32 0.0, %v3077
    %3079 = vmatprep.mubr.bf16.mxu0 0
    %3080 = vmatmul.mubr.bf16.gmra.mxu0 %v2915
    %v3081 = vpop.f32.mrf.mxu0
    %v3082 = vadd.f32 0.0, %v3081
    %v3083 = vpop.f32.mrf.mxu0
    %v3084 = vadd.f32 0.0, %v3083
    %v3085 = vpop.f32.mrf.mxu0
    %v3086 = vadd.f32 0.0, %v3085
    %v3087 = vpop.f32.mrf.mxu0
    %v3088 = vadd.f32 0.0, %v3087
    %3089 = vmatprep.mubr.bf16.mxu0 0
    %3090 = vmatmul.mubr.bf16.gmra.mxu0 %v2916
    %v3091 = vpop.f32.mrf.mxu0
    %v3092 = vadd.f32 0.0, %v3091
    %v3093 = vpop.f32.mrf.mxu0
    %v3094 = vadd.f32 0.0, %v3093
    %v3095 = vpop.f32.mrf.mxu0
    %v3096 = vadd.f32 0.0, %v3095
    %v3097 = vpop.f32.mrf.mxu0
    %v3098 = vadd.f32 0.0, %v3097
    %3099 = vmatprep.mubr.bf16.mxu0 0
    %3100 = vmatmul.mubr.bf16.gmra.mxu0 %v2917
    %v3101 = vpop.f32.mrf.mxu0
    %v3102 = vadd.f32 0.0, %v3101
    %v3103 = vpop.f32.mrf.mxu0
    %v3104 = vadd.f32 0.0, %v3103
    %v3105 = vpop.f32.mrf.mxu0
    %v3106 = vadd.f32 0.0, %v3105
    %v3107 = vpop.f32.mrf.mxu0
    %v3108 = vadd.f32 0.0, %v3107
    %3109 = vmatprep.mubr.bf16.mxu0 0
    %3110 = vmatmul.mubr.bf16.gmra.mxu0 %v2918
    %v3111 = vpop.f32.mrf.mxu0
    %v3112 = vadd.f32 0.0, %v3111
    %v3113 = vpop.f32.mrf.mxu0
    %v3114 = vadd.f32 0.0, %v3113
    %v3115 = vpop.f32.mrf.mxu0
    %v3116 = vadd.f32 0.0, %v3115
    %v3117 = vpop.f32.mrf.mxu0
    %v3118 = vadd.f32 0.0, %v3117
    %3119 = vmatprep.mubr.bf16.mxu0 0
    %3120 = vmatmul.mubr.bf16.gmra.mxu0 %v2919
    %v3121 = vpop.f32.mrf.mxu0
    %v3122 = vadd.f32 0.0, %v3121
    %v3123 = vpop.f32.mrf.mxu0
    %v3124 = vadd.f32 0.0, %v3123
    %v3125 = vpop.f32.mrf.mxu0
    %v3126 = vadd.f32 0.0, %v3125
    %v3127 = vpop.f32.mrf.mxu0
    %v3128 = vadd.f32 0.0, %v3127
    %3129 = vdwg.mxu0
    %v3130 = vadd.f32 %v2864, %v3052
    %v3131 = vadd.f32 %v2865, %v3054
    %v3132 = vadd.f32 %v2866, %v3056
    %v3133 = vadd.f32 %v2867, %v3058
    %v3134 = vadd.f32 %v2868, %v3062
    %v3135 = vadd.f32 %v2869, %v3064
    %v3136 = vadd.f32 %v2870, %v3066
    %v3137 = vadd.f32 %v2871, %v3068
    %v3138 = vadd.f32 %v2872, %v3072
    %v3139 = vadd.f32 %v2873, %v3074
    %v3140 = vadd.f32 %v2874, %v3076
    %v3141 = vadd.f32 %v2875, %v3078
    %v3142 = vadd.f32 %v2876, %v3082
    %v3143 = vadd.f32 %v2877, %v3084
    %v3144 = vadd.f32 %v2878, %v3086
    %v3145 = vadd.f32 %v2879, %v3088
    %v3146 = vadd.f32 %v2880, %v3092
    %v3147 = vadd.f32 %v2881, %v3094
    %v3148 = vadd.f32 %v2882, %v3096
    %v3149 = vadd.f32 %v2883, %v3098
    %v3150 = vadd.f32 %v2884, %v3102
    %v3151 = vadd.f32 %v2885, %v3104
    %v3152 = vadd.f32 %v2886, %v3106
    %v3153 = vadd.f32 %v2887, %v3108
    %v3154 = vadd.f32 %v2888, %v3112
    %v3155 = vadd.f32 %v2889, %v3114
    %v3156 = vadd.f32 %v2890, %v3116
    %v3157 = vadd.f32 %v2891, %v3118
    %v3158 = vadd.f32 %v2892, %v3122
    %v3159 = vadd.f32 %v2893, %v3124
    %v3160 = vadd.f32 %v2894, %v3126
    %v3161 = vadd.f32 %v2895, %v3128
    %v3162 = vld [vmem:[#allocation3 + $0x4] sm:$0xff]
    %v3163 = vld [vmem:[#allocation3 + $0xc] sm:$0xff]
    %v3164 = vld [vmem:[#allocation3 + $0x1c] sm:$0xff]
    %v3165 = vld [vmem:[#allocation3 + $0x24] sm:$0xff]
    %v3166 = vld [vmem:[#allocation3 + $0x34] sm:$0xff]
    %v3167 = vld [vmem:[#allocation3 + $0x3c] sm:$0xff]
    %v3168 = vld [vmem:[#allocation3 + $0x4c] sm:$0xff]
    %v3169 = vld [vmem:[#allocation3 + $0x54] sm:$0xff]
    %v3170 = vld [vmem:[#allocation3 + $0x64] sm:$0xff]
    %v3171 = vld [vmem:[#allocation3 + $0x6c] sm:$0xff]
    %v3172 = vld [vmem:[#allocation3 + $0x7c] sm:$0xff]
    %v3173 = vld [vmem:[#allocation3 + $0x84] sm:$0xff]
    %v3174 = vld [vmem:[#allocation3 + $0x94] sm:$0xff]
    %v3175 = vld [vmem:[#allocation3 + $0x9c] sm:$0xff]
    %v3176 = vld [vmem:[#allocation3 + $0xac] sm:$0xff]
    %v3177 = vld [vmem:[#allocation3 + $0xb4] sm:$0xff]
    %v3178 = vpack.c.bf16 %v3163, %v3162
    %v3179 = vpack.c.bf16 %v3165, %v3164
    %v3180 = vpack.c.bf16 %v3167, %v3166
    %v3181 = vpack.c.bf16 %v3169, %v3168
    %v3182 = vpack.c.bf16 %v3171, %v3170
    %v3183 = vpack.c.bf16 %v3173, %v3172
    %v3184 = vpack.c.bf16 %v3175, %v3174
    %v3185 = vpack.c.bf16 %v3177, %v3176
    %s3186 = scalar_lea.vmem %s3, 512
    %v3187 = vld [vmem:[%s3186] sm:$0xff]
    %v3188 = vld [vmem:[%s3186 + $0x8] sm:$0xff]
    %v3189 = vld [vmem:[%s3186 + $0x10] sm:$0xff]
    %v3190 = vld [vmem:[%s3186 + $0x18] sm:$0xff]
    %v3191 = vld [vmem:[%s3186 + $0x20] sm:$0xff]
    %v3192 = vld [vmem:[%s3186 + $0x28] sm:$0xff]
    %v3193 = vld [vmem:[%s3186 + $0x30] sm:$0xff]
    %v3194 = vld [vmem:[%s3186 + $0x38] sm:$0xff]
    %v3195 = vld [vmem:[%s3186 + $0x40] sm:$0xff]
    %v3196 = vld [vmem:[%s3186 + $0x48] sm:$0xff]
    %v3197 = vld [vmem:[%s3186 + $0x50] sm:$0xff]
    %v3198 = vld [vmem:[%s3186 + $0x58] sm:$0xff]
    %v3199 = vld [vmem:[%s3186 + $0x60] sm:$0xff]
    %v3200 = vld [vmem:[%s3186 + $0x68] sm:$0xff]
    %v3201 = vld [vmem:[%s3186 + $0x70] sm:$0xff]
    %v3202 = vld [vmem:[%s3186 + $0x78] sm:$0xff]
    %v3219 = vunpack.c.l.b16 %v3187
    %v3220 = vunpack.c.h.b16 %v3187
    %v3221 = vunpack.c.l.b16 %v3188
    %v3222 = vunpack.c.h.b16 %v3188
    %v3223 = vunpack.c.l.b16 %v3189
    %v3224 = vunpack.c.h.b16 %v3189
    %v3225 = vunpack.c.l.b16 %v3190
    %v3226 = vunpack.c.h.b16 %v3190
    %v3227 = vunpack.c.l.b16 %v3191
    %v3228 = vunpack.c.h.b16 %v3191
    %v3229 = vunpack.c.l.b16 %v3192
    %v3230 = vunpack.c.h.b16 %v3192
    %v3231 = vunpack.c.l.b16 %v3193
    %v3232 = vunpack.c.h.b16 %v3193
    %v3233 = vunpack.c.l.b16 %v3194
    %v3234 = vunpack.c.h.b16 %v3194
    %v3235 = vunpack.c.l.b16 %v3195
    %v3236 = vunpack.c.h.b16 %v3195
    %v3237 = vunpack.c.l.b16 %v3196
    %v3238 = vunpack.c.h.b16 %v3196
    %v3239 = vunpack.c.l.b16 %v3197
    %v3240 = vunpack.c.h.b16 %v3197
    %v3241 = vunpack.c.l.b16 %v3198
    %v3242 = vunpack.c.h.b16 %v3198
    %v3243 = vunpack.c.l.b16 %v3199
    %v3244 = vunpack.c.h.b16 %v3199
    %v3245 = vunpack.c.l.b16 %v3200
    %v3246 = vunpack.c.h.b16 %v3200
    %v3247 = vunpack.c.l.b16 %v3201
    %v3248 = vunpack.c.h.b16 %v3201
    %v3249 = vunpack.c.l.b16 %v3202
    %v3250 = vunpack.c.h.b16 %v3202
    %v3251 = vpack.c.b16 %v3221, %v3219
    %v3252 = vpack.c.b16 %v3222, %v3220
    %v3253 = vpack.c.b16 %v3225, %v3223
    %v3254 = vpack.c.b16 %v3226, %v3224
    %v3255 = vpack.c.b16 %v3229, %v3227
    %v3256 = vpack.c.b16 %v3230, %v3228
    %v3257 = vpack.c.b16 %v3233, %v3231
    %v3258 = vpack.c.b16 %v3234, %v3232
    %v3259 = vpack.c.b16 %v3237, %v3235
    %v3260 = vpack.c.b16 %v3238, %v3236
    %v3261 = vpack.c.b16 %v3241, %v3239
    %v3262 = vpack.c.b16 %v3242, %v3240
    %v3263 = vpack.c.b16 %v3245, %v3243
    %v3264 = vpack.c.b16 %v3246, %v3244
    %v3265 = vpack.c.b16 %v3249, %v3247
    %v3266 = vpack.c.b16 %v3250, %v3248
    %3283 = vmatprep.subr.bf16.mxu0 %v3266
    %3284 = vmatpush1.bf16.msra.mxu0 %v3265
    %3285 = vmatprep.subr.bf16.mxu0 %v3264
    %3286 = vmatpush1.bf16.msra.mxu0 %v3263
    %3287 = vmatprep.subr.bf16.mxu0 %v3262
    %3288 = vmatpush1.bf16.msra.mxu0 %v3261
    %3289 = vmatprep.subr.bf16.mxu0 %v3260
    %3290 = vmatpush1.bf16.msra.mxu0 %v3259
    %3291 = vmatprep.subr.bf16.mxu0 %v3258
    %3292 = vmatpush1.bf16.msra.mxu0 %v3257
    %3293 = vmatprep.subr.bf16.mxu0 %v3256
    %3294 = vmatpush1.bf16.msra.mxu0 %v3255
    %3295 = vmatprep.subr.bf16.mxu0 %v3254
    %3296 = vmatpush1.bf16.msra.mxu0 %v3253
    %3297 = vmatprep.subr.bf16.mxu0 %v3252
    %3298 = vmatpush1.bf16.msra.mxu0 %v3251
    %3299 = vmatprep.subr.bf16.mxu0 0
    %3300 = vmatpush2.bf16.msra.mxu0 0
    %3301 = vmatprep.subr.bf16.mxu0 0
    %3302 = vmatpush2.bf16.msra.mxu0 0
    %3303 = vmatprep.subr.bf16.mxu0 0
    %3304 = vmatpush2.bf16.msra.mxu0 0
    %3305 = vmatprep.subr.bf16.mxu0 0
    %3306 = vmatpush2.bf16.msra.mxu0 0
    %3307 = vmatprep.subr.bf16.mxu0 0
    %3308 = vmatpush2.bf16.msra.mxu0 0
    %3309 = vmatprep.subr.bf16.mxu0 0
    %3310 = vmatpush2.bf16.msra.mxu0 0
    %3311 = vmatprep.subr.bf16.mxu0 0
    %3312 = vmatpush2.bf16.msra.mxu0 0
    %3313 = vmatprep.subr.bf16.mxu0 0
    %3314 = vmatpush2.bf16.msra.mxu0 0
    %3315 = vmatprep.mubr.bf16.mxu0 0
    %3316 = vmatmul.mubr.bf16.gmra.mxu0 %v3178
    %v3317 = vpop.f32.mrf.mxu0
    %v3318 = vadd.f32 0.0, %v3317
    %v3319 = vpop.f32.mrf.mxu0
    %v3320 = vadd.f32 0.0, %v3319
    %v3321 = vpop.f32.mrf.mxu0
    %v3322 = vadd.f32 0.0, %v3321
    %v3323 = vpop.f32.mrf.mxu0
    %v3324 = vadd.f32 0.0, %v3323
    %3325 = vmatprep.mubr.bf16.mxu0 0
    %3326 = vmatmul.mubr.bf16.gmra.mxu0 %v3179
    %v3327 = vpop.f32.mrf.mxu0
    %v3328 = vadd.f32 0.0, %v3327
    %v3329 = vpop.f32.mrf.mxu0
    %v3330 = vadd.f32 0.0, %v3329
    %v3331 = vpop.f32.mrf.mxu0
    %v3332 = vadd.f32 0.0, %v3331
    %v3333 = vpop.f32.mrf.mxu0
    %v3334 = vadd.f32 0.0, %v3333
    %3335 = vmatprep.mubr.bf16.mxu0 0
    %3336 = vmatmul.mubr.bf16.gmra.mxu0 %v3180
    %v3337 = vpop.f32.mrf.mxu0
    %v3338 = vadd.f32 0.0, %v3337
    %v3339 = vpop.f32.mrf.mxu0
    %v3340 = vadd.f32 0.0, %v3339
    %v3341 = vpop.f32.mrf.mxu0
    %v3342 = vadd.f32 0.0, %v3341
    %v3343 = vpop.f32.mrf.mxu0
    %v3344 = vadd.f32 0.0, %v3343
    %3345 = vmatprep.mubr.bf16.mxu0 0
    %3346 = vmatmul.mubr.bf16.gmra.mxu0 %v3181
    %v3347 = vpop.f32.mrf.mxu0
    %v3348 = vadd.f32 0.0, %v3347
    %v3349 = vpop.f32.mrf.mxu0
    %v3350 = vadd.f32 0.0, %v3349
    %v3351 = vpop.f32.mrf.mxu0
    %v3352 = vadd.f32 0.0, %v3351
    %v3353 = vpop.f32.mrf.mxu0
    %v3354 = vadd.f32 0.0, %v3353
    %3355 = vmatprep.mubr.bf16.mxu0 0
    %3356 = vmatmul.mubr.bf16.gmra.mxu0 %v3182
    %v3357 = vpop.f32.mrf.mxu0
    %v3358 = vadd.f32 0.0, %v3357
    %v3359 = vpop.f32.mrf.mxu0
    %v3360 = vadd.f32 0.0, %v3359
    %v3361 = vpop.f32.mrf.mxu0
    %v3362 = vadd.f32 0.0, %v3361
    %v3363 = vpop.f32.mrf.mxu0
    %v3364 = vadd.f32 0.0, %v3363
    %3365 = vmatprep.mubr.bf16.mxu0 0
    %3366 = vmatmul.mubr.bf16.gmra.mxu0 %v3183
    %v3367 = vpop.f32.mrf.mxu0
    %v3368 = vadd.f32 0.0, %v3367
    %v3369 = vpop.f32.mrf.mxu0
    %v3370 = vadd.f32 0.0, %v3369
    %v3371 = vpop.f32.mrf.mxu0
    %v3372 = vadd.f32 0.0, %v3371
    %v3373 = vpop.f32.mrf.mxu0
    %v3374 = vadd.f32 0.0, %v3373
    %3375 = vmatprep.mubr.bf16.mxu0 0
    %3376 = vmatmul.mubr.bf16.gmra.mxu0 %v3184
    %v3377 = vpop.f32.mrf.mxu0
    %v3378 = vadd.f32 0.0, %v3377
    %v3379 = vpop.f32.mrf.mxu0
    %v3380 = vadd.f32 0.0, %v3379
    %v3381 = vpop.f32.mrf.mxu0
    %v3382 = vadd.f32 0.0, %v3381
    %v3383 = vpop.f32.mrf.mxu0
    %v3384 = vadd.f32 0.0, %v3383
    %3385 = vmatprep.mubr.bf16.mxu0 0
    %3386 = vmatmul.mubr.bf16.gmra.mxu0 %v3185
    %v3387 = vpop.f32.mrf.mxu0
    %v3388 = vadd.f32 0.0, %v3387
    %v3389 = vpop.f32.mrf.mxu0
    %v3390 = vadd.f32 0.0, %v3389
    %v3391 = vpop.f32.mrf.mxu0
    %v3392 = vadd.f32 0.0, %v3391
    %v3393 = vpop.f32.mrf.mxu0
    %v3394 = vadd.f32 0.0, %v3393
    %3395 = vdwg.mxu0
    %v3396 = vadd.f32 %v3130, %v3318
    %v3397 = vadd.f32 %v3131, %v3320
    %v3398 = vadd.f32 %v3132, %v3322
    %v3399 = vadd.f32 %v3133, %v3324
    %v3400 = vadd.f32 %v3134, %v3328
    %v3401 = vadd.f32 %v3135, %v3330
    %v3402 = vadd.f32 %v3136, %v3332
    %v3403 = vadd.f32 %v3137, %v3334
    %v3404 = vadd.f32 %v3138, %v3338
    %v3405 = vadd.f32 %v3139, %v3340
    %v3406 = vadd.f32 %v3140, %v3342
    %v3407 = vadd.f32 %v3141, %v3344
    %v3408 = vadd.f32 %v3142, %v3348
    %v3409 = vadd.f32 %v3143, %v3350
    %v3410 = vadd.f32 %v3144, %v3352
    %v3411 = vadd.f32 %v3145, %v3354
    %v3412 = vadd.f32 %v3146, %v3358
    %v3413 = vadd.f32 %v3147, %v3360
    %v3414 = vadd.f32 %v3148, %v3362
    %v3415 = vadd.f32 %v3149, %v3364
    %v3416 = vadd.f32 %v3150, %v3368
    %v3417 = vadd.f32 %v3151, %v3370
    %v3418 = vadd.f32 %v3152, %v3372
    %v3419 = vadd.f32 %v3153, %v3374
    %v3420 = vadd.f32 %v3154, %v3378
    %v3421 = vadd.f32 %v3155, %v3380
    %v3422 = vadd.f32 %v3156, %v3382
    %v3423 = vadd.f32 %v3157, %v3384
    %v3424 = vadd.f32 %v3158, %v3388
    %v3425 = vadd.f32 %v3159, %v3390
    %v3426 = vadd.f32 %v3160, %v3392
    %v3427 = vadd.f32 %v3161, %v3394
    %v3428 = vmax.f32 %v3396, %v3397
    %v3429 = vmax.f32 %v3398, %v3399
    %v3430 = vmax.f32 %v3400, %v3401
    %v3431 = vmax.f32 %v3402, %v3403
    %v3432 = vmax.f32 %v3404, %v3405
    %v3433 = vmax.f32 %v3406, %v3407
    %v3434 = vmax.f32 %v3408, %v3409
    %v3435 = vmax.f32 %v3410, %v3411
    %v3436 = vmax.f32 %v3412, %v3413
    %v3437 = vmax.f32 %v3414, %v3415
    %v3438 = vmax.f32 %v3416, %v3417
    %v3439 = vmax.f32 %v3418, %v3419
    %v3440 = vmax.f32 %v3420, %v3421
    %v3441 = vmax.f32 %v3422, %v3423
    %v3442 = vmax.f32 %v3424, %v3425
    %v3443 = vmax.f32 %v3426, %v3427
    %3444 = vst [vmem:[#allocation4] sm:$0xff] %v3428
    %3445 = vst [vmem:[#allocation4 + $0x8] sm:$0xff] %v3429
    %3446 = vst [vmem:[#allocation4 + $0x10] sm:$0xff] %v3430
    %3447 = vst [vmem:[#allocation4 + $0x18] sm:$0xff] %v3431
    %3448 = vst [vmem:[#allocation4 + $0x20] sm:$0xff] %v3432
    %3449 = vst [vmem:[#allocation4 + $0x28] sm:$0xff] %v3433
    %3450 = vst [vmem:[#allocation4 + $0x30] sm:$0xff] %v3434
    %3451 = vst [vmem:[#allocation4 + $0x38] sm:$0xff] %v3435
    %3452 = vst [vmem:[#allocation4 + $0x40] sm:$0xff] %v3436
    %3453 = vst [vmem:[#allocation4 + $0x48] sm:$0xff] %v3437
    %3454 = vst [vmem:[#allocation4 + $0x50] sm:$0xff] %v3438
    %3455 = vst [vmem:[#allocation4 + $0x58] sm:$0xff] %v3439
    %3456 = vst [vmem:[#allocation4 + $0x60] sm:$0xff] %v3440
    %3457 = vst [vmem:[#allocation4 + $0x68] sm:$0xff] %v3441
    %3458 = vst [vmem:[#allocation4 + $0x70] sm:$0xff] %v3442
    %3459 = vst [vmem:[#allocation4 + $0x78] sm:$0xff] %v3443
    %v3460 = vld [vmem:[#allocation4] ss:$2 sm:$0xff]
    %s3461 = scalar_lea.vmem [#allocation4], 16
    %v3462 = vld [vmem:[%s3461] ss:$2 sm:$0xff]
    %s3463 = scalar_lea.vmem [#allocation4], 32
    %v3464 = vld [vmem:[%s3463] ss:$2 sm:$0xff]
    %s3465 = scalar_lea.vmem [#allocation4], 48
    %v3466 = vld [vmem:[%s3465] ss:$2 sm:$0xff]
    %s3467 = scalar_lea.vmem [#allocation4], 64
    %v3468 = vld [vmem:[%s3467] ss:$2 sm:$0xff]
    %s3469 = scalar_lea.vmem [#allocation4], 80
    %v3470 = vld [vmem:[%s3469] ss:$2 sm:$0xff]
    %s3471 = scalar_lea.vmem [#allocation4], 96
    %v3472 = vld [vmem:[%s3471] ss:$2 sm:$0xff]
    %s3473 = scalar_lea.vmem [#allocation4], 112
    %v3474 = vld [vmem:[%s3473] ss:$2 sm:$0xff]
    %s3475 = scalar_lea.vmem [#allocation4], 1
    %v3476 = vld [vmem:[%s3475] ss:$2 sm:$0xff]
    %s3477 = scalar_lea.vmem [#allocation4], 17
    %v3478 = vld [vmem:[%s3477] ss:$2 sm:$0xff]
    %s3479 = scalar_lea.vmem [#allocation4], 33
    %v3480 = vld [vmem:[%s3479] ss:$2 sm:$0xff]
    %s3481 = scalar_lea.vmem [#allocation4], 49
    %v3482 = vld [vmem:[%s3481] ss:$2 sm:$0xff]
    %s3483 = scalar_lea.vmem [#allocation4], 65
    %v3484 = vld [vmem:[%s3483] ss:$2 sm:$0xff]
    %s3485 = scalar_lea.vmem [#allocation4], 81
    %v3486 = vld [vmem:[%s3485] ss:$2 sm:$0xff]
    %s3487 = scalar_lea.vmem [#allocation4], 97
    %v3488 = vld [vmem:[%s3487] ss:$2 sm:$0xff]
    %s3489 = scalar_lea.vmem [#allocation4], 113
    %v3490 = vld [vmem:[%s3489] ss:$2 sm:$0xff]
    %v3491 = vmax.f32 %v3460, %v3476
    %v3492 = vmax.f32 %v3462, %v3478
    %v3493 = vmax.f32 %v3464, %v3480
    %v3494 = vmax.f32 %v3466, %v3482
    %v3495 = vmax.f32 %v3468, %v3484
    %v3496 = vmax.f32 %v3470, %v3486
    %v3497 = vmax.f32 %v3472, %v3488
    %v3498 = vmax.f32 %v3474, %v3490
    %v3499 = vld [vmem:[%s4] sm:$0x1]
    %v3501 = vlaneseq
    %v3502 = vshrl.u32 %v3501, 7
    %v3503 = vsub.s32 0, %v3502
    %v3504 = vrot.slane %v3499, %v3503
    %v3506 = vadd.f32 %v3491, %v3504
    %v3507 = vadd.f32 %v3492, %v3504
    %v3508 = vadd.f32 %v3493, %v3504
    %v3509 = vadd.f32 %v3494, %v3504
    %v3510 = vadd.f32 %v3495, %v3504
    %v3511 = vadd.f32 %v3496, %v3504
    %v3512 = vadd.f32 %v3497, %v3504
    %v3513 = vadd.f32 %v3498, %v3504
    %v3514 = vmax.f32 %v3506, 0.0
    %v3515 = vmax.f32 %v3507, 0.0
    %v3516 = vmax.f32 %v3508, 0.0
    %v3517 = vmax.f32 %v3509, 0.0
    %v3518 = vmax.f32 %v3510, 0.0
    %v3519 = vmax.f32 %v3511, 0.0
    %v3520 = vmax.f32 %v3512, 0.0
    %v3521 = vmax.f32 %v3513, 0.0
    %3522 = vst [vmem:[#allocation5] sm:$0xff] %v3514
    %3523 = vst [vmem:[#allocation5 + $0x8] sm:$0xff] %v3515
    %3524 = vst [vmem:[#allocation5 + $0x10] sm:$0xff] %v3516
    %3525 = vst [vmem:[#allocation5 + $0x18] sm:$0xff] %v3517
    %3526 = vst [vmem:[#allocation5 + $0x20] sm:$0xff] %v3518
    %3527 = vst [vmem:[#allocation5 + $0x28] sm:$0xff] %v3519
    %3528 = vst [vmem:[#allocation5 + $0x30] sm:$0xff] %v3520
    %3529 = vst [vmem:[#allocation5 + $0x38] sm:$0xff] %v3521
    %v3530 = vld [vmem:[#allocation5] ss:$8 sm:$0xf]
    %v3531 = vld [vmem:[#allocation5] ss:$8 sm:$0xf0]
    %v3532 = vor.u32 %v3530, %v3531
    %v3533 = vpack.c.bf16 %v3532, %v3532
    %v3534 = vld [vmem:[%s5] sm:$0xf]
    %v3535 = vld [vmem:[%s5 + $0x4] sm:$0xf]
    %v3536 = vld [vmem:[%s5 + $0x8] sm:$0xf]
    %v3537 = vld [vmem:[%s5 + $0xc] sm:$0xf]
    %v3538 = vld [vmem:[%s5 + $0x10] sm:$0xf]
    %v3539 = vld [vmem:[%s5 + $0x14] sm:$0xf]
    %v3540 = vld [vmem:[%s5 + $0x18] sm:$0xf]
    %v3541 = vld [vmem:[%s5 + $0x1c] sm:$0xf]
    %v3542 = vld [vmem:[%s5 + $0x20] sm:$0xf]
    %v3543 = vld [vmem:[%s5 + $0x24] sm:$0xf]
    %v3544 = vld [vmem:[%s5 + $0x28] sm:$0xf]
    %v3545 = vld [vmem:[%s5 + $0x2c] sm:$0xf]
    %v3546 = vld [vmem:[%s5 + $0x30] sm:$0xf]
    %v3547 = vld [vmem:[%s5 + $0x34] sm:$0xf]
    %v3548 = vld [vmem:[%s5 + $0x38] sm:$0xf]
    %v3549 = vld [vmem:[%s5 + $0x3c] sm:$0xf]
    %s3550 = scalar_lea.vmem [#allocation5], 1
    %v3551 = vld [vmem:[%s3550] ss:$8 sm:$0xf]
    %v3552 = vld [vmem:[%s3550] ss:$8 sm:$0xf0]
    %v3553 = vor.u32 %v3551, %v3552
    %v3554 = vpack.c.bf16 %v3553, %v3553
    %s3555 = scalar_lea.vmem %s5, 64
    %v3556 = vld [vmem:[%s3555] sm:$0xf]
    %v3557 = vld [vmem:[%s3555 + $0x4] sm:$0xf]
    %v3558 = vld [vmem:[%s3555 + $0x8] sm:$0xf]
    %v3559 = vld [vmem:[%s3555 + $0xc] sm:$0xf]
    %v3560 = vld [vmem:[%s3555 + $0x10] sm:$0xf]
    %v3561 = vld [vmem:[%s3555 + $0x14] sm:$0xf]
    %v3562 = vld [vmem:[%s3555 + $0x18] sm:$0xf]
    %v3563 = vld [vmem:[%s3555 + $0x1c] sm:$0xf]
    %v3564 = vld [vmem:[%s3555 + $0x20] sm:$0xf]
    %v3565 = vld [vmem:[%s3555 + $0x24] sm:$0xf]
    %v3566 = vld [vmem:[%s3555 + $0x28] sm:$0xf]
    %v3567 = vld [vmem:[%s3555 + $0x2c] sm:$0xf]
    %v3568 = vld [vmem:[%s3555 + $0x30] sm:$0xf]
    %v3569 = vld [vmem:[%s3555 + $0x34] sm:$0xf]
    %v3570 = vld [vmem:[%s3555 + $0x38] sm:$0xf]
    %v3571 = vld [vmem:[%s3555 + $0x3c] sm:$0xf]
    %v3588 = vunpack.c.l.b16 %v3556
    %v3589 = vunpack.c.l.b16 %v3557
    %v3590 = vunpack.c.l.b16 %v3558
    %v3591 = vunpack.c.l.b16 %v3559
    %v3592 = vunpack.c.l.b16 %v3560
    %v3593 = vunpack.c.l.b16 %v3561
    %v3594 = vunpack.c.l.b16 %v3562
    %v3595 = vunpack.c.l.b16 %v3563
    %v3596 = vunpack.c.l.b16 %v3564
    %v3597 = vunpack.c.l.b16 %v3565
    %v3598 = vunpack.c.l.b16 %v3566
    %v3599 = vunpack.c.l.b16 %v3567
    %v3600 = vunpack.c.l.b16 %v3568
    %v3601 = vunpack.c.l.b16 %v3569
    %v3602 = vunpack.c.l.b16 %v3570
    %v3603 = vunpack.c.l.b16 %v3571
    %v3604 = vpack.c.b16 %v3589, %v3588
    %v3605 = vpack.c.b16 %v3591, %v3590
    %v3606 = vpack.c.b16 %v3593, %v3592
    %v3607 = vpack.c.b16 %v3595, %v3594
    %v3608 = vpack.c.b16 %v3597, %v3596
    %v3609 = vpack.c.b16 %v3599, %v3598
    %v3610 = vpack.c.b16 %v3601, %v3600
    %v3611 = vpack.c.b16 %v3603, %v3602
    %3620 = vmatprep.subr.bf16.mxu0 0
    %3621 = vmatpush1.bf16.msra.mxu0 %v3611
    %3622 = vmatprep.subr.bf16.mxu0 0
    %3623 = vmatpush1.bf16.msra.mxu0 %v3610
    %3624 = vmatprep.subr.bf16.mxu0 0
    %3625 = vmatpush1.bf16.msra.mxu0 %v3609
    %3626 = vmatprep.subr.bf16.mxu0 0
    %3627 = vmatpush1.bf16.msra.mxu0 %v3608
    %3628 = vmatprep.subr.bf16.mxu0 0
    %3629 = vmatpush1.bf16.msra.mxu0 %v3607
    %3630 = vmatprep.subr.bf16.mxu0 0
    %3631 = vmatpush1.bf16.msra.mxu0 %v3606
    %3632 = vmatprep.subr.bf16.mxu0 0
    %3633 = vmatpush1.bf16.msra.mxu0 %v3605
    %3634 = vmatprep.subr.bf16.mxu0 0
    %3635 = vmatpush1.bf16.msra.mxu0 %v3604
    %3636 = vmatprep.subr.bf16.mxu0 0
    %3637 = vmatpush2.bf16.msra.mxu0 0
    %3638 = vmatprep.subr.bf16.mxu0 0
    %3639 = vmatpush2.bf16.msra.mxu0 0
    %3640 = vmatprep.subr.bf16.mxu0 0
    %3641 = vmatpush2.bf16.msra.mxu0 0
    %3642 = vmatprep.subr.bf16.mxu0 0
    %3643 = vmatpush2.bf16.msra.mxu0 0
    %3644 = vmatprep.subr.bf16.mxu0 0
    %3645 = vmatpush2.bf16.msra.mxu0 0
    %3646 = vmatprep.subr.bf16.mxu0 0
    %3647 = vmatpush2.bf16.msra.mxu0 0
    %3648 = vmatprep.subr.bf16.mxu0 0
    %3649 = vmatpush2.bf16.msra.mxu0 0
    %3650 = vmatprep.subr.bf16.mxu0 0
    %3651 = vmatpush2.bf16.msra.mxu0 0
    %3652 = vmatprep.mubr.bf16.mxu0 0
    %3653 = vmatmul.mubr.bf16.gmra.mxu0 %v3554
    %v3654 = vpop.f32.mrf.mxu0
    %v3655 = vadd.f32 0.0, %v3654
    %v3656 = vpop.f32.mrf.mxu0
    %v3657 = vpop.f32.mrf.mxu0
    %v3658 = vpop.f32.mrf.mxu0
    %3659 = vdwg.mxu0
    %v3676 = vunpack.c.l.b16 %v3534
    %v3677 = vunpack.c.l.b16 %v3535
    %v3678 = vunpack.c.l.b16 %v3536
    %v3679 = vunpack.c.l.b16 %v3537
    %v3680 = vunpack.c.l.b16 %v3538
    %v3681 = vunpack.c.l.b16 %v3539
    %v3682 = vunpack.c.l.b16 %v3540
    %v3683 = vunpack.c.l.b16 %v3541
    %v3684 = vunpack.c.l.b16 %v3542
    %v3685 = vunpack.c.l.b16 %v3543
    %v3686 = vunpack.c.l.b16 %v3544
    %v3687 = vunpack.c.l.b16 %v3545
    %v3688 = vunpack.c.l.b16 %v3546
    %v3689 = vunpack.c.l.b16 %v3547
    %v3690 = vunpack.c.l.b16 %v3548
    %v3691 = vunpack.c.l.b16 %v3549
    %v3692 = vpack.c.b16 %v3677, %v3676
    %v3693 = vpack.c.b16 %v3679, %v3678
    %v3694 = vpack.c.b16 %v3681, %v3680
    %v3695 = vpack.c.b16 %v3683, %v3682
    %v3696 = vpack.c.b16 %v3685, %v3684
    %v3697 = vpack.c.b16 %v3687, %v3686
    %v3698 = vpack.c.b16 %v3689, %v3688
    %v3699 = vpack.c.b16 %v3691, %v3690
    %3708 = vmatprep.subr.bf16.mxu0 0
    %3709 = vmatpush1.bf16.msra.mxu0 %v3699
    %3710 = vmatprep.subr.bf16.mxu0 0
    %3711 = vmatpush1.bf16.msra.mxu0 %v3698
    %3712 = vmatprep.subr.bf16.mxu0 0
    %3713 = vmatpush1.bf16.msra.mxu0 %v3697
    %3714 = vmatprep.subr.bf16.mxu0 0
    %3715 = vmatpush1.bf16.msra.mxu0 %v3696
    %3716 = vmatprep.subr.bf16.mxu0 0
    %3717 = vmatpush1.bf16.msra.mxu0 %v3695
    %3718 = vmatprep.subr.bf16.mxu0 0
    %3719 = vmatpush1.bf16.msra.mxu0 %v3694
    %3720 = vmatprep.subr.bf16.mxu0 0
    %3721 = vmatpush1.bf16.msra.mxu0 %v3693
    %3722 = vmatprep.subr.bf16.mxu0 0
    %3723 = vmatpush1.bf16.msra.mxu0 %v3692
    %3724 = vmatprep.subr.bf16.mxu0 0
    %3725 = vmatpush2.bf16.msra.mxu0 0
    %3726 = vmatprep.subr.bf16.mxu0 0
    %3727 = vmatpush2.bf16.msra.mxu0 0
    %3728 = vmatprep.subr.bf16.mxu0 0
    %3729 = vmatpush2.bf16.msra.mxu0 0
    %3730 = vmatprep.subr.bf16.mxu0 0
    %3731 = vmatpush2.bf16.msra.mxu0 0
    %3732 = vmatprep.subr.bf16.mxu0 0
    %3733 = vmatpush2.bf16.msra.mxu0 0
    %3734 = vmatprep.subr.bf16.mxu0 0
    %3735 = vmatpush2.bf16.msra.mxu0 0
    %3736 = vmatprep.subr.bf16.mxu0 0
    %3737 = vmatpush2.bf16.msra.mxu0 0
    %3738 = vmatprep.subr.bf16.mxu0 0
    %3739 = vmatpush2.bf16.msra.mxu0 0
    %3740 = vmatprep.mubr.bf16.mxu0 0
    %3741 = vmatmul.mubr.bf16.gmra.mxu0 %v3533
    %v3742 = vpop.f32.mrf.mxu0
    %v3743 = vadd.f32 %v3655, %v3742
    %v3744 = vpop.f32.mrf.mxu0
    %v3745 = vpop.f32.mrf.mxu0
    %v3746 = vpop.f32.mrf.mxu0
    %3747 = vdwg.mxu0
    %s3748 = scalar_lea.vmem [#allocation5], 2
    %v3749 = vld [vmem:[%s3748] ss:$8 sm:$0xf]
    %v3750 = vld [vmem:[%s3748] ss:$8 sm:$0xf0]
    %v3751 = vor.u32 %v3749, %v3750
    %v3752 = vpack.c.bf16 %v3751, %v3751
    %s3753 = scalar_lea.vmem %s5, 128
    %v3754 = vld [vmem:[%s3753] sm:$0xf]
    %v3755 = vld [vmem:[%s3753 + $0x4] sm:$0xf]
    %v3756 = vld [vmem:[%s3753 + $0x8] sm:$0xf]
    %v3757 = vld [vmem:[%s3753 + $0xc] sm:$0xf]
    %v3758 = vld [vmem:[%s3753 + $0x10] sm:$0xf]
    %v3759 = vld [vmem:[%s3753 + $0x14] sm:$0xf]
    %v3760 = vld [vmem:[%s3753 + $0x18] sm:$0xf]
    %v3761 = vld [vmem:[%s3753 + $0x1c] sm:$0xf]
    %v3762 = vld [vmem:[%s3753 + $0x20] sm:$0xf]
    %v3763 = vld [vmem:[%s3753 + $0x24] sm:$0xf]
    %v3764 = vld [vmem:[%s3753 + $0x28] sm:$0xf]
    %v3765 = vld [vmem:[%s3753 + $0x2c] sm:$0xf]
    %v3766 = vld [vmem:[%s3753 + $0x30] sm:$0xf]
    %v3767 = vld [vmem:[%s3753 + $0x34] sm:$0xf]
    %v3768 = vld [vmem:[%s3753 + $0x38] sm:$0xf]
    %v3769 = vld [vmem:[%s3753 + $0x3c] sm:$0xf]
    %v3786 = vunpack.c.l.b16 %v3754
    %v3787 = vunpack.c.l.b16 %v3755
    %v3788 = vunpack.c.l.b16 %v3756
    %v3789 = vunpack.c.l.b16 %v3757
    %v3790 = vunpack.c.l.b16 %v3758
    %v3791 = vunpack.c.l.b16 %v3759
    %v3792 = vunpack.c.l.b16 %v3760
    %v3793 = vunpack.c.l.b16 %v3761
    %v3794 = vunpack.c.l.b16 %v3762
    %v3795 = vunpack.c.l.b16 %v3763
    %v3796 = vunpack.c.l.b16 %v3764
    %v3797 = vunpack.c.l.b16 %v3765
    %v3798 = vunpack.c.l.b16 %v3766
    %v3799 = vunpack.c.l.b16 %v3767
    %v3800 = vunpack.c.l.b16 %v3768
    %v3801 = vunpack.c.l.b16 %v3769
    %v3802 = vpack.c.b16 %v3787, %v3786
    %v3803 = vpack.c.b16 %v3789, %v3788
    %v3804 = vpack.c.b16 %v3791, %v3790
    %v3805 = vpack.c.b16 %v3793, %v3792
    %v3806 = vpack.c.b16 %v3795, %v3794
    %v3807 = vpack.c.b16 %v3797, %v3796
    %v3808 = vpack.c.b16 %v3799, %v3798
    %v3809 = vpack.c.b16 %v3801, %v3800
    %3818 = vmatprep.subr.bf16.mxu0 0
    %3819 = vmatpush1.bf16.msra.mxu0 %v3809
    %3820 = vmatprep.subr.bf16.mxu0 0
    %3821 = vmatpush1.bf16.msra.mxu0 %v3808
    %3822 = vmatprep.subr.bf16.mxu0 0
    %3823 = vmatpush1.bf16.msra.mxu0 %v3807
    %3824 = vmatprep.subr.bf16.mxu0 0
    %3825 = vmatpush1.bf16.msra.mxu0 %v3806
    %3826 = vmatprep.subr.bf16.mxu0 0
    %3827 = vmatpush1.bf16.msra.mxu0 %v3805
    %3828 = vmatprep.subr.bf16.mxu0 0
    %3829 = vmatpush1.bf16.msra.mxu0 %v3804
    %3830 = vmatprep.subr.bf16.mxu0 0
    %3831 = vmatpush1.bf16.msra.mxu0 %v3803
    %3832 = vmatprep.subr.bf16.mxu0 0
    %3833 = vmatpush1.bf16.msra.mxu0 %v3802
    %3834 = vmatprep.subr.bf16.mxu0 0
    %3835 = vmatpush2.bf16.msra.mxu0 0
    %3836 = vmatprep.subr.bf16.mxu0 0
    %3837 = vmatpush2.bf16.msra.mxu0 0
    %3838 = vmatprep.subr.bf16.mxu0 0
    %3839 = vmatpush2.bf16.msra.mxu0 0
    %3840 = vmatprep.subr.bf16.mxu0 0
    %3841 = vmatpush2.bf16.msra.mxu0 0
    %3842 = vmatprep.subr.bf16.mxu0 0
    %3843 = vmatpush2.bf16.msra.mxu0 0
    %3844 = vmatprep.subr.bf16.mxu0 0
    %3845 = vmatpush2.bf16.msra.mxu0 0
    %3846 = vmatprep.subr.bf16.mxu0 0
    %3847 = vmatpush2.bf16.msra.mxu0 0
    %3848 = vmatprep.subr.bf16.mxu0 0
    %3849 = vmatpush2.bf16.msra.mxu0 0
    %3850 = vmatprep.mubr.bf16.mxu0 0
    %3851 = vmatmul.mubr.bf16.gmra.mxu0 %v3752
    %v3852 = vpop.f32.mrf.mxu0
    %v3853 = vadd.f32 0.0, %v3852
    %v3854 = vpop.f32.mrf.mxu0
    %v3855 = vpop.f32.mrf.mxu0
    %v3856 = vpop.f32.mrf.mxu0
    %3857 = vdwg.mxu0
    %v3858 = vadd.f32 %v3743, %v3853
    %s3859 = scalar_lea.vmem [#allocation5], 3
    %v3860 = vld [vmem:[%s3859] ss:$8 sm:$0xf]
    %v3861 = vld [vmem:[%s3859] ss:$8 sm:$0xf0]
    %v3862 = vor.u32 %v3860, %v3861
    %v3863 = vpack.c.bf16 %v3862, %v3862
    %s3864 = scalar_lea.vmem %s5, 192
    %v3865 = vld [vmem:[%s3864] sm:$0xf]
    %v3866 = vld [vmem:[%s3864 + $0x4] sm:$0xf]
    %v3867 = vld [vmem:[%s3864 + $0x8] sm:$0xf]
    %v3868 = vld [vmem:[%s3864 + $0xc] sm:$0xf]
    %v3869 = vld [vmem:[%s3864 + $0x10] sm:$0xf]
    %v3870 = vld [vmem:[%s3864 + $0x14] sm:$0xf]
    %v3871 = vld [vmem:[%s3864 + $0x18] sm:$0xf]
    %v3872 = vld [vmem:[%s3864 + $0x1c] sm:$0xf]
    %v3873 = vld [vmem:[%s3864 + $0x20] sm:$0xf]
    %v3874 = vld [vmem:[%s3864 + $0x24] sm:$0xf]
    %v3875 = vld [vmem:[%s3864 + $0x28] sm:$0xf]
    %v3876 = vld [vmem:[%s3864 + $0x2c] sm:$0xf]
    %v3877 = vld [vmem:[%s3864 + $0x30] sm:$0xf]
    %v3878 = vld [vmem:[%s3864 + $0x34] sm:$0xf]
    %v3879 = vld [vmem:[%s3864 + $0x38] sm:$0xf]
    %v3880 = vld [vmem:[%s3864 + $0x3c] sm:$0xf]
    %v3897 = vunpack.c.l.b16 %v3865
    %v3898 = vunpack.c.l.b16 %v3866
    %v3899 = vunpack.c.l.b16 %v3867
    %v3900 = vunpack.c.l.b16 %v3868
    %v3901 = vunpack.c.l.b16 %v3869
    %v3902 = vunpack.c.l.b16 %v3870
    %v3903 = vunpack.c.l.b16 %v3871
    %v3904 = vunpack.c.l.b16 %v3872
    %v3905 = vunpack.c.l.b16 %v3873
    %v3906 = vunpack.c.l.b16 %v3874
    %v3907 = vunpack.c.l.b16 %v3875
    %v3908 = vunpack.c.l.b16 %v3876
    %v3909 = vunpack.c.l.b16 %v3877
    %v3910 = vunpack.c.l.b16 %v3878
    %v3911 = vunpack.c.l.b16 %v3879
    %v3912 = vunpack.c.l.b16 %v3880
    %v3913 = vpack.c.b16 %v3898, %v3897
    %v3914 = vpack.c.b16 %v3900, %v3899
    %v3915 = vpack.c.b16 %v3902, %v3901
    %v3916 = vpack.c.b16 %v3904, %v3903
    %v3917 = vpack.c.b16 %v3906, %v3905
    %v3918 = vpack.c.b16 %v3908, %v3907
    %v3919 = vpack.c.b16 %v3910, %v3909
    %v3920 = vpack.c.b16 %v3912, %v3911
    %3929 = vmatprep.subr.bf16.mxu0 0
    %3930 = vmatpush1.bf16.msra.mxu0 %v3920
    %3931 = vmatprep.subr.bf16.mxu0 0
    %3932 = vmatpush1.bf16.msra.mxu0 %v3919
    %3933 = vmatprep.subr.bf16.mxu0 0
    %3934 = vmatpush1.bf16.msra.mxu0 %v3918
    %3935 = vmatprep.subr.bf16.mxu0 0
    %3936 = vmatpush1.bf16.msra.mxu0 %v3917
    %3937 = vmatprep.subr.bf16.mxu0 0
    %3938 = vmatpush1.bf16.msra.mxu0 %v3916
    %3939 = vmatprep.subr.bf16.mxu0 0
    %3940 = vmatpush1.bf16.msra.mxu0 %v3915
    %3941 = vmatprep.subr.bf16.mxu0 0
    %3942 = vmatpush1.bf16.msra.mxu0 %v3914
    %3943 = vmatprep.subr.bf16.mxu0 0
    %3944 = vmatpush1.bf16.msra.mxu0 %v3913
    %3945 = vmatprep.subr.bf16.mxu0 0
    %3946 = vmatpush2.bf16.msra.mxu0 0
    %3947 = vmatprep.subr.bf16.mxu0 0
    %3948 = vmatpush2.bf16.msra.mxu0 0
    %3949 = vmatprep.subr.bf16.mxu0 0
    %3950 = vmatpush2.bf16.msra.mxu0 0
    %3951 = vmatprep.subr.bf16.mxu0 0
    %3952 = vmatpush2.bf16.msra.mxu0 0
    %3953 = vmatprep.subr.bf16.mxu0 0
    %3954 = vmatpush2.bf16.msra.mxu0 0
    %3955 = vmatprep.subr.bf16.mxu0 0
    %3956 = vmatpush2.bf16.msra.mxu0 0
    %3957 = vmatprep.subr.bf16.mxu0 0
    %3958 = vmatpush2.bf16.msra.mxu0 0
    %3959 = vmatprep.subr.bf16.mxu0 0
    %3960 = vmatpush2.bf16.msra.mxu0 0
    %3961 = vmatprep.mubr.bf16.mxu0 0
    %3962 = vmatmul.mubr.bf16.gmra.mxu0 %v3863
    %v3963 = vpop.f32.mrf.mxu0
    %v3964 = vadd.f32 0.0, %v3963
    %v3965 = vpop.f32.mrf.mxu0
    %v3966 = vpop.f32.mrf.mxu0
    %v3967 = vpop.f32.mrf.mxu0
    %3968 = vdwg.mxu0
    %v3969 = vadd.f32 %v3858, %v3964
    %s3970 = scalar_lea.vmem [#allocation5], 4
    %v3971 = vld [vmem:[%s3970] ss:$8 sm:$0xf]
    %v3972 = vld [vmem:[%s3970] ss:$8 sm:$0xf0]
    %v3973 = vor.u32 %v3971, %v3972
    %v3974 = vpack.c.bf16 %v3973, %v3973
    %s3975 = scalar_lea.vmem %s5, 256
    %v3976 = vld [vmem:[%s3975] sm:$0xf]
    %v3977 = vld [vmem:[%s3975 + $0x4] sm:$0xf]
    %v3978 = vld [vmem:[%s3975 + $0x8] sm:$0xf]
    %v3979 = vld [vmem:[%s3975 + $0xc] sm:$0xf]
    %v3980 = vld [vmem:[%s3975 + $0x10] sm:$0xf]
    %v3981 = vld [vmem:[%s3975 + $0x14] sm:$0xf]
    %v3982 = vld [vmem:[%s3975 + $0x18] sm:$0xf]
    %v3983 = vld [vmem:[%s3975 + $0x1c] sm:$0xf]
    %v3984 = vld [vmem:[%s3975 + $0x20] sm:$0xf]
    %v3985 = vld [vmem:[%s3975 + $0x24] sm:$0xf]
    %v3986 = vld [vmem:[%s3975 + $0x28] sm:$0xf]
    %v3987 = vld [vmem:[%s3975 + $0x2c] sm:$0xf]
    %v3988 = vld [vmem:[%s3975 + $0x30] sm:$0xf]
    %v3989 = vld [vmem:[%s3975 + $0x34] sm:$0xf]
    %v3990 = vld [vmem:[%s3975 + $0x38] sm:$0xf]
    %v3991 = vld [vmem:[%s3975 + $0x3c] sm:$0xf]
    %v4008 = vunpack.c.l.b16 %v3976
    %v4009 = vunpack.c.l.b16 %v3977
    %v4010 = vunpack.c.l.b16 %v3978
    %v4011 = vunpack.c.l.b16 %v3979
    %v4012 = vunpack.c.l.b16 %v3980
    %v4013 = vunpack.c.l.b16 %v3981
    %v4014 = vunpack.c.l.b16 %v3982
    %v4015 = vunpack.c.l.b16 %v3983
    %v4016 = vunpack.c.l.b16 %v3984
    %v4017 = vunpack.c.l.b16 %v3985
    %v4018 = vunpack.c.l.b16 %v3986
    %v4019 = vunpack.c.l.b16 %v3987
    %v4020 = vunpack.c.l.b16 %v3988
    %v4021 = vunpack.c.l.b16 %v3989
    %v4022 = vunpack.c.l.b16 %v3990
    %v4023 = vunpack.c.l.b16 %v3991
    %v4024 = vpack.c.b16 %v4009, %v4008
    %v4025 = vpack.c.b16 %v4011, %v4010
    %v4026 = vpack.c.b16 %v4013, %v4012
    %v4027 = vpack.c.b16 %v4015, %v4014
    %v4028 = vpack.c.b16 %v4017, %v4016
    %v4029 = vpack.c.b16 %v4019, %v4018
    %v4030 = vpack.c.b16 %v4021, %v4020
    %v4031 = vpack.c.b16 %v4023, %v4022
    %4040 = vmatprep.subr.bf16.mxu0 0
    %4041 = vmatpush1.bf16.msra.mxu0 %v4031
    %4042 = vmatprep.subr.bf16.mxu0 0
    %4043 = vmatpush1.bf16.msra.mxu0 %v4030
    %4044 = vmatprep.subr.bf16.mxu0 0
    %4045 = vmatpush1.bf16.msra.mxu0 %v4029
    %4046 = vmatprep.subr.bf16.mxu0 0
    %4047 = vmatpush1.bf16.msra.mxu0 %v4028
    %4048 = vmatprep.subr.bf16.mxu0 0
    %4049 = vmatpush1.bf16.msra.mxu0 %v4027
    %4050 = vmatprep.subr.bf16.mxu0 0
    %4051 = vmatpush1.bf16.msra.mxu0 %v4026
    %4052 = vmatprep.subr.bf16.mxu0 0
    %4053 = vmatpush1.bf16.msra.mxu0 %v4025
    %4054 = vmatprep.subr.bf16.mxu0 0
    %4055 = vmatpush1.bf16.msra.mxu0 %v4024
    %4056 = vmatprep.subr.bf16.mxu0 0
    %4057 = vmatpush2.bf16.msra.mxu0 0
    %4058 = vmatprep.subr.bf16.mxu0 0
    %4059 = vmatpush2.bf16.msra.mxu0 0
    %4060 = vmatprep.subr.bf16.mxu0 0
    %4061 = vmatpush2.bf16.msra.mxu0 0
    %4062 = vmatprep.subr.bf16.mxu0 0
    %4063 = vmatpush2.bf16.msra.mxu0 0
    %4064 = vmatprep.subr.bf16.mxu0 0
    %4065 = vmatpush2.bf16.msra.mxu0 0
    %4066 = vmatprep.subr.bf16.mxu0 0
    %4067 = vmatpush2.bf16.msra.mxu0 0
    %4068 = vmatprep.subr.bf16.mxu0 0
    %4069 = vmatpush2.bf16.msra.mxu0 0
    %4070 = vmatprep.subr.bf16.mxu0 0
    %4071 = vmatpush2.bf16.msra.mxu0 0
    %4072 = vmatprep.mubr.bf16.mxu0 0
    %4073 = vmatmul.mubr.bf16.gmra.mxu0 %v3974
    %v4074 = vpop.f32.mrf.mxu0
    %v4075 = vadd.f32 0.0, %v4074
    %v4076 = vpop.f32.mrf.mxu0
    %v4077 = vpop.f32.mrf.mxu0
    %v4078 = vpop.f32.mrf.mxu0
    %4079 = vdwg.mxu0
    %v4080 = vadd.f32 %v3969, %v4075
    %v4081 = vld [vmem:[%s6] sm:$0x1]
    %v4083 = vlaneseq
    %v4084 = vshrl.u32 %v4083, 7
    %v4085 = vsub.s32 0, %v4084
    %v4086 = vrot.slane %v4081, %v4085
    %v4088 = vadd.f32 %v4080, %v4086
    %v4089 = vmax.f32 %v4088, 0.0
    %v4090 = vpack.c.bf16 %v4089, %v4089
    %v4091 = vld [vmem:[%s7] sm:$0xf]
    %v4092 = vld [vmem:[%s7 + $0x4] sm:$0xf]
    %v4093 = vld [vmem:[%s7 + $0x8] sm:$0xf]
    %v4094 = vld [vmem:[%s7 + $0xc] sm:$0xf]
    %v4095 = vld [vmem:[%s7 + $0x10] sm:$0xf]
    %v4096 = vld [vmem:[%s7 + $0x14] sm:$0xf]
    %v4097 = vld [vmem:[%s7 + $0x18] sm:$0xf]
    %v4098 = vld [vmem:[%s7 + $0x1c] sm:$0xf]
    %v4099 = vld [vmem:[%s7 + $0x20] sm:$0xf]
    %v4100 = vld [vmem:[%s7 + $0x24] sm:$0xf]
    %v4101 = vld [vmem:[%s7 + $0x28] sm:$0xf]
    %v4102 = vld [vmem:[%s7 + $0x2c] sm:$0xf]
    %v4103 = vld [vmem:[%s7 + $0x30] sm:$0xf]
    %v4104 = vld [vmem:[%s7 + $0x34] sm:$0xf]
    %v4105 = vld [vmem:[%s7 + $0x38] sm:$0xf]
    %v4106 = vld [vmem:[%s7 + $0x3c] sm:$0xf]
    %v4107 = vld [vmem:[#allocation6] sm:$0x1]
    %v4109 = vlaneseq
    %v4110 = vshrl.u32 %v4109, 7
    %v4111 = vsub.s32 0, %v4110
    %v4112 = vrot.slane %v4107, %v4111
    %v4130 = vunpack.c.l.b16 %v4091
    %v4131 = vunpack.c.l.b16 %v4092
    %v4132 = vunpack.c.l.b16 %v4093
    %v4133 = vunpack.c.l.b16 %v4094
    %v4134 = vunpack.c.l.b16 %v4095
    %v4135 = vunpack.c.l.b16 %v4096
    %v4136 = vunpack.c.l.b16 %v4097
    %v4137 = vunpack.c.l.b16 %v4098
    %v4138 = vunpack.c.l.b16 %v4099
    %v4139 = vunpack.c.l.b16 %v4100
    %v4140 = vunpack.c.l.b16 %v4101
    %v4141 = vunpack.c.l.b16 %v4102
    %v4142 = vunpack.c.l.b16 %v4103
    %v4143 = vunpack.c.l.b16 %v4104
    %v4144 = vunpack.c.l.b16 %v4105
    %v4145 = vunpack.c.l.b16 %v4106
    %v4146 = vpack.c.b16 %v4131, %v4130
    %v4147 = vpack.c.b16 %v4133, %v4132
    %v4148 = vpack.c.b16 %v4135, %v4134
    %v4149 = vpack.c.b16 %v4137, %v4136
    %v4150 = vpack.c.b16 %v4139, %v4138
    %v4151 = vpack.c.b16 %v4141, %v4140
    %v4152 = vpack.c.b16 %v4143, %v4142
    %v4153 = vpack.c.b16 %v4145, %v4144
    %4162 = vmatprep.subr.bf16.mxu0 0
    %4163 = vmatpush1.bf16.msra.mxu0 %v4153
    %4164 = vmatprep.subr.bf16.mxu0 0
    %4165 = vmatpush1.bf16.msra.mxu0 %v4152
    %4166 = vmatprep.subr.bf16.mxu0 0
    %4167 = vmatpush1.bf16.msra.mxu0 %v4151
    %4168 = vmatprep.subr.bf16.mxu0 0
    %4169 = vmatpush1.bf16.msra.mxu0 %v4150
    %4170 = vmatprep.subr.bf16.mxu0 0
    %4171 = vmatpush1.bf16.msra.mxu0 %v4149
    %4172 = vmatprep.subr.bf16.mxu0 0
    %4173 = vmatpush1.bf16.msra.mxu0 %v4148
    %4174 = vmatprep.subr.bf16.mxu0 0
    %4175 = vmatpush1.bf16.msra.mxu0 %v4147
    %4176 = vmatprep.subr.bf16.mxu0 0
    %4177 = vmatpush1.bf16.msra.mxu0 %v4146
    %4178 = vmatprep.subr.bf16.mxu0 0
    %4179 = vmatpush2.bf16.msra.mxu0 0
    %4180 = vmatprep.subr.bf16.mxu0 0
    %4181 = vmatpush2.bf16.msra.mxu0 0
    %4182 = vmatprep.subr.bf16.mxu0 0
    %4183 = vmatpush2.bf16.msra.mxu0 0
    %4184 = vmatprep.subr.bf16.mxu0 0
    %4185 = vmatpush2.bf16.msra.mxu0 0
    %4186 = vmatprep.subr.bf16.mxu0 0
    %4187 = vmatpush2.bf16.msra.mxu0 0
    %4188 = vmatprep.subr.bf16.mxu0 0
    %4189 = vmatpush2.bf16.msra.mxu0 0
    %4190 = vmatprep.subr.bf16.mxu0 0
    %4191 = vmatpush2.bf16.msra.mxu0 0
    %4192 = vmatprep.subr.bf16.mxu0 0
    %4193 = vmatpush2.bf16.msra.mxu0 0
    %4194 = vmatprep.mubr.bf16.mxu0 0
    %4195 = vmatmul.mubr.bf16.gmra.mxu0 %v4090
    %v4196 = vpop.f32.mrf.mxu0
    %v4197 = vadd.f32 %v4112, %v4196
    %v4198 = vpop.f32.mrf.mxu0
    %v4199 = vpop.f32.mrf.mxu0
    %v4200 = vpop.f32.mrf.mxu0
    %4201 = vdwg.mxu0
    %v4202 = vmax.f32 %v4197, 0.0
    %v4203 = vpack.c.bf16 %v4202, %v4202
    %v4204 = vld [vmem:[#allocation8] sm:$0xf]
    %v4205 = vld [vmem:[#allocation8 + $0x4] sm:$0xf]
    %v4206 = vld [vmem:[#allocation8 + $0x8] sm:$0xf]
    %v4207 = vld [vmem:[#allocation8 + $0xc] sm:$0xf]
    %v4208 = vld [vmem:[#allocation8 + $0x10] sm:$0xf]
    %v4209 = vld [vmem:[#allocation8 + $0x14] sm:$0xf]
    %v4210 = vld [vmem:[#allocation8 + $0x18] sm:$0xf]
    %v4211 = vld [vmem:[#allocation8 + $0x1c] sm:$0xf]
    %v4212 = vld [vmem:[#allocation8 + $0x20] sm:$0xf]
    %v4213 = vld [vmem:[#allocation8 + $0x24] sm:$0xf]
    %v4214 = vld [vmem:[#allocation8 + $0x28] sm:$0xf]
    %v4215 = vld [vmem:[#allocation8 + $0x2c] sm:$0xf]
    %v4216 = vld [vmem:[#allocation8 + $0x30] sm:$0xf]
    %v4217 = vld [vmem:[#allocation8 + $0x34] sm:$0xf]
    %v4218 = vld [vmem:[#allocation8 + $0x38] sm:$0xf]
    %v4219 = vld [vmem:[#allocation8 + $0x3c] sm:$0xf]
    %v4220 = vld [vmem:[#allocation10] sm:$0x1]
    %v4222 = vlaneseq
    %v4223 = vshrl.u32 %v4222, 7
    %v4224 = vsub.s32 0, %v4223
    %v4225 = vrot.slane %v4220, %v4224
    %v4243 = vunpack.c.l.b16 %v4204
    %v4244 = vunpack.c.l.b16 %v4205
    %v4245 = vunpack.c.l.b16 %v4206
    %v4246 = vunpack.c.l.b16 %v4207
    %v4247 = vunpack.c.l.b16 %v4208
    %v4248 = vunpack.c.l.b16 %v4209
    %v4249 = vunpack.c.l.b16 %v4210
    %v4250 = vunpack.c.l.b16 %v4211
    %v4251 = vunpack.c.l.b16 %v4212
    %v4252 = vunpack.c.l.b16 %v4213
    %v4253 = vunpack.c.l.b16 %v4214
    %v4254 = vunpack.c.l.b16 %v4215
    %v4255 = vunpack.c.l.b16 %v4216
    %v4256 = vunpack.c.l.b16 %v4217
    %v4257 = vunpack.c.l.b16 %v4218
    %v4258 = vunpack.c.l.b16 %v4219
    %v4259 = vpack.c.b16 %v4244, %v4243
    %v4260 = vpack.c.b16 %v4246, %v4245
    %v4261 = vpack.c.b16 %v4248, %v4247
    %v4262 = vpack.c.b16 %v4250, %v4249
    %v4263 = vpack.c.b16 %v4252, %v4251
    %v4264 = vpack.c.b16 %v4254, %v4253
    %v4265 = vpack.c.b16 %v4256, %v4255
    %v4266 = vpack.c.b16 %v4258, %v4257
    %4275 = vmatprep.subr.bf16.mxu0 0
    %4276 = vmatpush1.bf16.msra.mxu0 %v4266
    %4277 = vmatprep.subr.bf16.mxu0 0
    %4278 = vmatpush1.bf16.msra.mxu0 %v4265
    %4279 = vmatprep.subr.bf16.mxu0 0
    %4280 = vmatpush1.bf16.msra.mxu0 %v4264
    %4281 = vmatprep.subr.bf16.mxu0 0
    %4282 = vmatpush1.bf16.msra.mxu0 %v4263
    %4283 = vmatprep.subr.bf16.mxu0 0
    %4284 = vmatpush1.bf16.msra.mxu0 %v4262
    %4285 = vmatprep.subr.bf16.mxu0 0
    %4286 = vmatpush1.bf16.msra.mxu0 %v4261
    %4287 = vmatprep.subr.bf16.mxu0 0
    %4288 = vmatpush1.bf16.msra.mxu0 %v4260
    %4289 = vmatprep.subr.bf16.mxu0 0
    %4290 = vmatpush1.bf16.msra.mxu0 %v4259
    %4291 = vmatprep.subr.bf16.mxu0 0
    %4292 = vmatpush2.bf16.msra.mxu0 0
    %4293 = vmatprep.subr.bf16.mxu0 0
    %4294 = vmatpush2.bf16.msra.mxu0 0
    %4295 = vmatprep.subr.bf16.mxu0 0
    %4296 = vmatpush2.bf16.msra.mxu0 0
    %4297 = vmatprep.subr.bf16.mxu0 0
    %4298 = vmatpush2.bf16.msra.mxu0 0
    %4299 = vmatprep.subr.bf16.mxu0 0
    %4300 = vmatpush2.bf16.msra.mxu0 0
    %4301 = vmatprep.subr.bf16.mxu0 0
    %4302 = vmatpush2.bf16.msra.mxu0 0
    %4303 = vmatprep.subr.bf16.mxu0 0
    %4304 = vmatpush2.bf16.msra.mxu0 0
    %4305 = vmatprep.subr.bf16.mxu0 0
    %4306 = vmatpush2.bf16.msra.mxu0 0
    %4307 = vmatprep.mubr.bf16.mxu0 0
    %4308 = vmatmul.mubr.bf16.gmra.mxu0 %v4203
    %v4309 = vpop.f32.mrf.mxu0
    %v4310 = vadd.f32 %v4225, %v4309
    %v4311 = vpop.f32.mrf.mxu0
    %v4312 = vpop.f32.mrf.mxu0
    %v4313 = vpop.f32.mrf.mxu0
    %4314 = vdwg.mxu0
    %4315 = vst [vmem:[%s11] sm:$0xff] %v4310
    // Predicated region
    $region58: #{_forward.1} parent=1 // pred_check
      _
    $region59: #{_forward.1} parent=1 // pred_check_branch
      %4317 = sbr.rel (0) target = $region61
    $region60: #{_forward.1} parent=1 // pred_region
      _
    $region61: #{_forward.1} parent=1 // pred_fallthru
      _
    // Predicated region
    $region62: #{_forward.1} parent=1 // pred_check
      _
    $region63: #{_forward.1} parent=1 // pred_check_branch
      %4319 = sbr.rel (0) target = $region65
    $region64: #{_forward.1} parent=1 // pred_region
      _
    $region65: #{_forward.1} parent=1 // pred_fallthru
      _
    %4320 = vsyncpa [#allocation7], 1
    %4321 = vsyncpa [#allocation9], 1

</llo_original>
